<compile_context>
chip_gen: v7x
topology: tpu7x:2x2x1
jax: 0.10.0
libtpu: 0.0.40
codegen_flags: <defaults>
</compile_context>

<pallas_src>
import jax
import jax.numpy as jnp
from jax.experimental import pallas as pl
from jax.experimental.pallas import tpu as pltpu

INPUT_SIZE = 3
HIDDEN = 64
NUM_LAYERS = 3
GATES = 4 * HIDDEN      # 256 (i|f|g|o, each 64 lanes)
IP = 8                  # lane-padded input width for the layer-0 projection


def _lstm_kernel(x_ref, wih0_ref, whh0_ref, misc_ref, w1_hbm, w2_hbm,
                 out_ref, w1_vmem, w2_vmem, sem):
    TB = x_ref.shape[0]
    B = out_ref.shape[0]
    T = TB // B

    # Kick off the layer-1/2 weight DMAs immediately; they overlap with the
    # hoisted layer-0 projection and the first wavefront steps.
    cp1 = pltpu.make_async_copy(w1_hbm, w1_vmem, sem.at[0])
    cp2 = pltpu.make_async_copy(w2_hbm, w2_vmem, sem.at[1])
    cp1.start()
    cp2.start()

    # Tiny parameter rows (loaded once, reused as values).
    b0 = misc_ref[pl.ds(0, 1), :]                     # (1, 256)
    b1 = misc_ref[pl.ds(1, 1), :]                     # (1, 256)
    b2 = misc_ref[pl.ds(2, 1), :]                     # (1, 256)
    wout = misc_ref[pl.ds(3, 1), pl.ds(0, HIDDEN)]    # (1, 64)
    bout = misc_ref[pl.ds(4, 1), pl.ds(0, 1)]         # (1, 1)

    # Hoisted layer-0 input projection for all T timesteps (one K=8 matmul),
    # kept as a value and sliced with static offsets below.
    gx = jnp.dot(x_ref[...], wih0_ref[...],
                 preferred_element_type=jnp.float32) + b0     # (T*B, 256)

    def sig(v):
        # Single-EUP sigmoid via the tanh identity.
        return 0.5 * jnp.tanh(0.5 * v) + 0.5

    def cell(gates, c):
        i = sig(gates[:, 0 * HIDDEN:1 * HIDDEN])
        f = sig(gates[:, 1 * HIDDEN:2 * HIDDEN])
        g = jnp.tanh(gates[:, 2 * HIDDEN:3 * HIDDEN])
        o = sig(gates[:, 3 * HIDDEN:4 * HIDDEN])
        c_new = f * c + i * g
        h_new = o * jnp.tanh(c_new)
        return h_new, c_new

    z = jnp.zeros((B, HIDDEN), jnp.float32)
    h0, c0, h1, c1, h2, c2 = z, z, z, z, z, z

    # Wavefront over the three layers (layer0@t, layer1@t-1, layer2@t-2);
    # fully unrolled (T is static & small).
    for w in range(T + 2):
        if w == 1:
            cp1.wait()          # w1 first needed at wavefront step 1
        if w == 2:
            cp2.wait()          # w2 first needed at wavefront step 2

        nh0, nc0, nh1, nc1, nh2, nc2 = h0, c0, h1, c1, h2, c2
        if w < T:                        # layer 0 @ t = w
            g0 = (gx[w * B:(w + 1) * B, :]
                  + jnp.dot(h0, whh0_ref[...],
                            preferred_element_type=jnp.float32))
            nh0, nc0 = cell(g0, c0)
        if 0 <= w - 1 < T:               # layer 1 @ t = w - 1
            g1 = (jnp.dot(h0, w1_vmem[pl.ds(0, HIDDEN), :],
                          preferred_element_type=jnp.float32)
                  + jnp.dot(h1, w1_vmem[pl.ds(HIDDEN, HIDDEN), :],
                            preferred_element_type=jnp.float32)
                  + b1)
            nh1, nc1 = cell(g1, c1)
        if 0 <= w - 2 < T:               # layer 2 @ t = w - 2
            g2 = (jnp.dot(h1, w2_vmem[pl.ds(0, HIDDEN), :],
                          preferred_element_type=jnp.float32)
                  + jnp.dot(h2, w2_vmem[pl.ds(HIDDEN, HIDDEN), :],
                            preferred_element_type=jnp.float32)
                  + b2)
            nh2, nc2 = cell(g2, c2)
        h0, c0, h1, c1, h2, c2 = nh0, nc0, nh1, nc1, nh2, nc2

    # Final Linear(64, 1): VPU multiply + lane reduction.
    out_ref[...] = jnp.sum(h2 * wout, axis=-1, keepdims=True) + bout


def pack_params(params):
    """One-time weight repacking (run once, cache the result)."""
    f32 = jnp.float32

    wih0, whh0, bih0, bhh0 = params["l0"]
    wih0_p = jnp.zeros((IP, GATES), f32).at[:INPUT_SIZE, :].set(
        wih0.T.astype(f32))                           # (8, 256)
    whh0_p = whh0.T.astype(f32)                       # (64, 256)

    biases = [(bih0 + bhh0).astype(f32)]
    w_cat = []
    for layer in (1, 2):
        wih, whh, bih, bhh = params[f"l{layer}"]
        w_cat.append(jnp.concatenate(
            [wih.T.astype(f32), whh.T.astype(f32)], axis=0))   # (128, 256)
        biases.append((bih + bhh).astype(f32))

    wout, bout = params["out"]
    misc = jnp.zeros((8, GATES), f32)
    misc = misc.at[0, :].set(biases[0])
    misc = misc.at[1, :].set(biases[1])
    misc = misc.at[2, :].set(biases[2])
    misc = misc.at[3, :HIDDEN].set(wout[0].astype(f32))
    misc = misc.at[4, 0].set(bout[0].astype(f32))

    return {"wih0": wih0_p, "whh0": whh0_p,
            "w1": w_cat[0], "w2": w_cat[1], "misc": misc}


@jax.jit
def lstm_forward(x, packed):
    """x: (B, T, INPUT_SIZE) float32 (batch_first, like the PyTorch module)."""
    B, T, I = x.shape
    f32 = jnp.float32

    # time-major, flattened, input-padded activations: (T*B, 8)
    x_tm = jnp.transpose(x, (1, 0, 2)).reshape(T * B, I).astype(f32)
    x2d = jnp.zeros((T * B, IP), f32).at[:, :I].set(x_tm)

    vmem = pl.BlockSpec(memory_space=pltpu.MemorySpace.VMEM)
    hbm = pl.BlockSpec(memory_space=pl.ANY)
    out = pl.pallas_call(
        _lstm_kernel,
        out_shape=jax.ShapeDtypeStruct((B, 1), jnp.float32),
        in_specs=[vmem, vmem, vmem, vmem, hbm, hbm],
        out_specs=vmem,
        scratch_shapes=[
            pltpu.VMEM((2 * HIDDEN, GATES), jnp.float32),   # w1 landing buffer
            pltpu.VMEM((2 * HIDDEN, GATES), jnp.float32),   # w2 landing buffer
            pltpu.SemaphoreType.DMA((2,)),
        ],
    )(x2d, packed["wih0"], packed["whh0"], packed["misc"],
      packed["w1"], packed["w2"])
    return out


def init_params(key):
    """Deterministic params matching nn.LSTM / nn.Linear shapes & default init."""
    params = {}
    bound = 1.0 / (HIDDEN ** 0.5)
    keys = jax.random.split(key, 4 * NUM_LAYERS + 2)
    idx = 0
    for layer in range(NUM_LAYERS):
        in_dim = INPUT_SIZE if layer == 0 else HIDDEN
        wih = jax.random.uniform(keys[idx], (4 * HIDDEN, in_dim),
                                 jnp.float32, -bound, bound); idx += 1
        whh = jax.random.uniform(keys[idx], (4 * HIDDEN, HIDDEN),
                                 jnp.float32, -bound, bound); idx += 1
        bih = jax.random.uniform(keys[idx], (4 * HIDDEN,),
                                 jnp.float32, -bound, bound); idx += 1
        bhh = jax.random.uniform(keys[idx], (4 * HIDDEN,),
                                 jnp.float32, -bound, bound); idx += 1
        params[f"l{layer}"] = (wih, whh, bih, bhh)
    wout = jax.random.uniform(keys[idx], (1, HIDDEN),
                              jnp.float32, -bound, bound); idx += 1
    bout = jax.random.uniform(keys[idx], (1,), jnp.float32, -bound, bound)
    params["out"] = (wout, bout)
    return params


def lstm_reference(x, params):
    """Pure-JAX reference mirroring PyTorch nn.LSTM semantics (gate order ifgo)."""
    B, T, _ = x.shape
    seq = x
    for layer in range(NUM_LAYERS):
        wih, whh, bih, bhh = params[f"l{layer}"]
        h = jnp.zeros((B, HIDDEN), jnp.float32)
        c = jnp.zeros((B, HIDDEN), jnp.float32)
        outs = []
        for t in range(T):
            gates = seq[:, t, :] @ wih.T + bih + h @ whh.T + bhh
            i = jax.nn.sigmoid(gates[:, 0 * HIDDEN:1 * HIDDEN])
            f = jax.nn.sigmoid(gates[:, 1 * HIDDEN:2 * HIDDEN])
            g = jnp.tanh(gates[:, 2 * HIDDEN:3 * HIDDEN])
            o = jax.nn.sigmoid(gates[:, 3 * HIDDEN:4 * HIDDEN])
            c = f * c + i * g
            h = o * jnp.tanh(c)
            outs.append(h)
        seq = jnp.stack(outs, axis=1)
    wout, bout = params["out"]
    return seq[:, -1, :] @ wout.T + bout


if __name__ == "__main__":
    key = jax.random.PRNGKey(0)
    pkey, xkey = jax.random.split(key)
    params = init_params(pkey)

    # One-time packing (cached across forward calls).
    packed = jax.block_until_ready(pack_params(params))

    B, T = 2, 8
    x = jax.random.normal(xkey, (B, T, INPUT_SIZE), jnp.float32)

    out = jax.block_until_ready(lstm_forward(x, packed))
    ref = lstm_reference(x, params)

    assert out.shape == (B, 1), out.shape
    assert jnp.allclose(out, ref, atol=1e-3, rtol=1e-3), (out, ref)
    print("KERNEL_OK")
</pallas_src>

<mosaic_0001>
module attributes {stable_mosaic.version = 11 : i64} {
  func.func @_lstm_kernel(%arg0: memref<16x8xf32, #tpu.memory_space<vmem>>, %arg1: memref<8x256xf32, #tpu.memory_space<vmem>>, %arg2: memref<64x256xf32, #tpu.memory_space<vmem>>, %arg3: memref<8x256xf32, #tpu.memory_space<vmem>>, %arg4: memref<128x256xf32, #tpu.memory_space<any>>, %arg5: memref<128x256xf32, #tpu.memory_space<any>>, %arg6: memref<2x1xf32, #tpu.memory_space<vmem>>, %arg7: memref<128x256xf32, #tpu.memory_space<vmem>>, %arg8: memref<128x256xf32, #tpu.memory_space<vmem>>, %arg9: memref<2x!tpu.dma_semaphore, #tpu.memory_space<semaphore_mem>>) attributes {dimension_semantics = [], scalar_prefetch = 0 : i64, scratch_operands = 3 : i64, tpu.core_type = #tpu.core_type<tc>} {
    %c0_i32 = arith.constant 0 : i32
    %0 = tpu.memref_slice %arg9[%c0_i32] : memref<2x!tpu.dma_semaphore, #tpu.memory_space<semaphore_mem>> -> memref<1x!tpu.dma_semaphore, #tpu.memory_space<semaphore_mem>>
    %1 = tpu.memref_squeeze %0 : memref<1x!tpu.dma_semaphore, #tpu.memory_space<semaphore_mem>> -> memref<!tpu.dma_semaphore, #tpu.memory_space<semaphore_mem>>
    tpu.enqueue_dma source(%arg4 : memref<128x256xf32, #tpu.memory_space<any>>) target(%arg7 : memref<128x256xf32, #tpu.memory_space<vmem>>) target_semaphore(%1 : memref<!tpu.dma_semaphore, #tpu.memory_space<semaphore_mem>>)
    %c1_i32 = arith.constant 1 : i32
    %2 = tpu.memref_slice %arg9[%c1_i32] : memref<2x!tpu.dma_semaphore, #tpu.memory_space<semaphore_mem>> -> memref<1x!tpu.dma_semaphore, #tpu.memory_space<semaphore_mem>>
    %3 = tpu.memref_squeeze %2 : memref<1x!tpu.dma_semaphore, #tpu.memory_space<semaphore_mem>> -> memref<!tpu.dma_semaphore, #tpu.memory_space<semaphore_mem>>
    tpu.enqueue_dma source(%arg5 : memref<128x256xf32, #tpu.memory_space<any>>) target(%arg8 : memref<128x256xf32, #tpu.memory_space<vmem>>) target_semaphore(%3 : memref<!tpu.dma_semaphore, #tpu.memory_space<semaphore_mem>>)
    %c0 = arith.constant 0 : index
    %c0_0 = arith.constant 0 : index
    %4 = vector.load %arg3[%c0, %c0_0] : memref<8x256xf32, #tpu.memory_space<vmem>>, vector<1x256xf32>
    %c1 = arith.constant 1 : index
    %c0_1 = arith.constant 0 : index
    %5 = vector.load %arg3[%c1, %c0_1] : memref<8x256xf32, #tpu.memory_space<vmem>>, vector<1x256xf32>
    %c2 = arith.constant 2 : index
    %c0_2 = arith.constant 0 : index
    %6 = vector.load %arg3[%c2, %c0_2] : memref<8x256xf32, #tpu.memory_space<vmem>>, vector<1x256xf32>
    %c3 = arith.constant 3 : index
    %c0_3 = arith.constant 0 : index
    %7 = vector.load %arg3[%c3, %c0_3] : memref<8x256xf32, #tpu.memory_space<vmem>>, vector<1x64xf32>
    %c4 = arith.constant 4 : index
    %c0_4 = arith.constant 0 : index
    %8 = vector.load %arg3[%c4, %c0_4] : memref<8x256xf32, #tpu.memory_space<vmem>>, vector<1x1xf32>
    %c0_5 = arith.constant 0 : index
    %c0_6 = arith.constant 0 : index
    %9 = vector.load %arg0[%c0_5, %c0_6] : memref<16x8xf32, #tpu.memory_space<vmem>>, vector<16x8xf32>
    %c0_7 = arith.constant 0 : index
    %c0_8 = arith.constant 0 : index
    %10 = vector.load %arg1[%c0_7, %c0_8] : memref<8x256xf32, #tpu.memory_space<vmem>>, vector<8x256xf32>
    %cst = arith.constant dense<0.000000e+00> : vector<16x256xf32>
    %11 = tpu.matmul %9, %10, %cst {dimension_numbers = #tpu.dot_dimension_numbers<[1], [0], [0], [1], [0, 0, 1, 1], [], []>} : vector<16x8xf32>, vector<8x256xf32>, vector<16x256xf32> -> vector<16x256xf32>
    %12 = vector.broadcast %4 : vector<1x256xf32> to vector<16x256xf32>
    %13 = arith.addf %11, %12 : vector<16x256xf32>
    %cst_9 = arith.constant 0.000000e+00 : f32
    %14 = vector.broadcast %cst_9 : f32 to vector<2x64xf32>
    %15 = vector.extract_strided_slice %13 {offsets = [0, 0], sizes = [2, 256], strides = [1, 1]} : vector<16x256xf32> to vector<2x256xf32>
    %c0_10 = arith.constant 0 : index
    %c0_11 = arith.constant 0 : index
    %16 = vector.load %arg2[%c0_10, %c0_11] : memref<64x256xf32, #tpu.memory_space<vmem>>, vector<64x256xf32>
    %cst_12 = arith.constant dense<0.000000e+00> : vector<2x256xf32>
    %17 = tpu.matmul %14, %16, %cst_12 {dimension_numbers = #tpu.dot_dimension_numbers<[1], [0], [0], [1], [0, 0, 1, 1], [], []>} : vector<2x64xf32>, vector<64x256xf32>, vector<2x256xf32> -> vector<2x256xf32>
    %18 = arith.addf %15, %17 : vector<2x256xf32>
    %19 = vector.extract_strided_slice %18 {offsets = [0, 0], sizes = [2, 64], strides = [1, 1]} : vector<2x256xf32> to vector<2x64xf32>
    %cst_13 = arith.constant 5.000000e-01 : f32
    %20 = vector.broadcast %cst_13 : f32 to vector<2x64xf32>
    %21 = arith.mulf %20, %19 : vector<2x64xf32>
    %22 = math.tanh %21 : vector<2x64xf32>
    %cst_14 = arith.constant 5.000000e-01 : f32
    %23 = vector.broadcast %cst_14 : f32 to vector<2x64xf32>
    %24 = arith.mulf %23, %22 : vector<2x64xf32>
    %cst_15 = arith.constant 5.000000e-01 : f32
    %25 = vector.broadcast %cst_15 : f32 to vector<2x64xf32>
    %26 = arith.addf %24, %25 : vector<2x64xf32>
    %27 = vector.extract_strided_slice %18 {offsets = [0, 64], sizes = [2, 64], strides = [1, 1]} : vector<2x256xf32> to vector<2x64xf32>
    %cst_16 = arith.constant 5.000000e-01 : f32
    %28 = vector.broadcast %cst_16 : f32 to vector<2x64xf32>
    %29 = arith.mulf %28, %27 : vector<2x64xf32>
    %30 = math.tanh %29 : vector<2x64xf32>
    %cst_17 = arith.constant 5.000000e-01 : f32
    %31 = vector.broadcast %cst_17 : f32 to vector<2x64xf32>
    %32 = arith.mulf %31, %30 : vector<2x64xf32>
    %cst_18 = arith.constant 5.000000e-01 : f32
    %33 = vector.broadcast %cst_18 : f32 to vector<2x64xf32>
    %34 = arith.addf %32, %33 : vector<2x64xf32>
    %35 = vector.extract_strided_slice %18 {offsets = [0, 128], sizes = [2, 64], strides = [1, 1]} : vector<2x256xf32> to vector<2x64xf32>
    %36 = math.tanh %35 : vector<2x64xf32>
    %37 = vector.extract_strided_slice %18 {offsets = [0, 192], sizes = [2, 64], strides = [1, 1]} : vector<2x256xf32> to vector<2x64xf32>
    %cst_19 = arith.constant 5.000000e-01 : f32
    %38 = vector.broadcast %cst_19 : f32 to vector<2x64xf32>
    %39 = arith.mulf %38, %37 : vector<2x64xf32>
    %40 = math.tanh %39 : vector<2x64xf32>
    %cst_20 = arith.constant 5.000000e-01 : f32
    %41 = vector.broadcast %cst_20 : f32 to vector<2x64xf32>
    %42 = arith.mulf %41, %40 : vector<2x64xf32>
    %cst_21 = arith.constant 5.000000e-01 : f32
    %43 = vector.broadcast %cst_21 : f32 to vector<2x64xf32>
    %44 = arith.addf %42, %43 : vector<2x64xf32>
    %45 = arith.mulf %34, %14 : vector<2x64xf32>
    %46 = arith.mulf %26, %36 : vector<2x64xf32>
    %47 = arith.addf %45, %46 : vector<2x64xf32>
    %48 = math.tanh %47 : vector<2x64xf32>
    %49 = arith.mulf %44, %48 : vector<2x64xf32>
    %c0_i32_22 = arith.constant 0 : i32
    %50 = tpu.memref_slice %arg9[%c0_i32_22] : memref<2x!tpu.dma_semaphore, #tpu.memory_space<semaphore_mem>> -> memref<1x!tpu.dma_semaphore, #tpu.memory_space<semaphore_mem>>
    %51 = tpu.memref_squeeze %50 : memref<1x!tpu.dma_semaphore, #tpu.memory_space<semaphore_mem>> -> memref<!tpu.dma_semaphore, #tpu.memory_space<semaphore_mem>>
    tpu.wait_dma2 semaphore(%51 : memref<!tpu.dma_semaphore, #tpu.memory_space<semaphore_mem>>) src(%arg4 : memref<128x256xf32, #tpu.memory_space<any>>) dst(%arg7 : memref<128x256xf32, #tpu.memory_space<vmem>>)
    %52 = vector.extract_strided_slice %13 {offsets = [2, 0], sizes = [2, 256], strides = [1, 1]} : vector<16x256xf32> to vector<2x256xf32>
    %c0_23 = arith.constant 0 : index
    %c0_24 = arith.constant 0 : index
    %53 = vector.load %arg2[%c0_23, %c0_24] : memref<64x256xf32, #tpu.memory_space<vmem>>, vector<64x256xf32>
    %cst_25 = arith.constant dense<0.000000e+00> : vector<2x256xf32>
    %54 = tpu.matmul %49, %53, %cst_25 {dimension_numbers = #tpu.dot_dimension_numbers<[1], [0], [0], [1], [0, 0, 1, 1], [], []>} : vector<2x64xf32>, vector<64x256xf32>, vector<2x256xf32> -> vector<2x256xf32>
    %55 = arith.addf %52, %54 : vector<2x256xf32>
    %56 = vector.extract_strided_slice %55 {offsets = [0, 0], sizes = [2, 64], strides = [1, 1]} : vector<2x256xf32> to vector<2x64xf32>
    %cst_26 = arith.constant 5.000000e-01 : f32
    %57 = vector.broadcast %cst_26 : f32 to vector<2x64xf32>
    %58 = arith.mulf %57, %56 : vector<2x64xf32>
    %59 = math.tanh %58 : vector<2x64xf32>
    %cst_27 = arith.constant 5.000000e-01 : f32
    %60 = vector.broadcast %cst_27 : f32 to vector<2x64xf32>
    %61 = arith.mulf %60, %59 : vector<2x64xf32>
    %cst_28 = arith.constant 5.000000e-01 : f32
    %62 = vector.broadcast %cst_28 : f32 to vector<2x64xf32>
    %63 = arith.addf %61, %62 : vector<2x64xf32>
    %64 = vector.extract_strided_slice %55 {offsets = [0, 64], sizes = [2, 64], strides = [1, 1]} : vector<2x256xf32> to vector<2x64xf32>
    %cst_29 = arith.constant 5.000000e-01 : f32
    %65 = vector.broadcast %cst_29 : f32 to vector<2x64xf32>
    %66 = arith.mulf %65, %64 : vector<2x64xf32>
    %67 = math.tanh %66 : vector<2x64xf32>
    %cst_30 = arith.constant 5.000000e-01 : f32
    %68 = vector.broadcast %cst_30 : f32 to vector<2x64xf32>
    %69 = arith.mulf %68, %67 : vector<2x64xf32>
    %cst_31 = arith.constant 5.000000e-01 : f32
    %70 = vector.broadcast %cst_31 : f32 to vector<2x64xf32>
    %71 = arith.addf %69, %70 : vector<2x64xf32>
    %72 = vector.extract_strided_slice %55 {offsets = [0, 128], sizes = [2, 64], strides = [1, 1]} : vector<2x256xf32> to vector<2x64xf32>
    %73 = math.tanh %72 : vector<2x64xf32>
    %74 = vector.extract_strided_slice %55 {offsets = [0, 192], sizes = [2, 64], strides = [1, 1]} : vector<2x256xf32> to vector<2x64xf32>
    %cst_32 = arith.constant 5.000000e-01 : f32
    %75 = vector.broadcast %cst_32 : f32 to vector<2x64xf32>
    %76 = arith.mulf %75, %74 : vector<2x64xf32>
    %77 = math.tanh %76 : vector<2x64xf32>
    %cst_33 = arith.constant 5.000000e-01 : f32
    %78 = vector.broadcast %cst_33 : f32 to vector<2x64xf32>
    %79 = arith.mulf %78, %77 : vector<2x64xf32>
    %cst_34 = arith.constant 5.000000e-01 : f32
    %80 = vector.broadcast %cst_34 : f32 to vector<2x64xf32>
    %81 = arith.addf %79, %80 : vector<2x64xf32>
    %82 = arith.mulf %71, %47 : vector<2x64xf32>
    %83 = arith.mulf %63, %73 : vector<2x64xf32>
    %84 = arith.addf %82, %83 : vector<2x64xf32>
    %85 = math.tanh %84 : vector<2x64xf32>
    %86 = arith.mulf %81, %85 : vector<2x64xf32>
    %c0_35 = arith.constant 0 : index
    %c0_36 = arith.constant 0 : index
    %87 = vector.load %arg7[%c0_35, %c0_36] : memref<128x256xf32, #tpu.memory_space<vmem>>, vector<64x256xf32>
    %cst_37 = arith.constant dense<0.000000e+00> : vector<2x256xf32>
    %88 = tpu.matmul %49, %87, %cst_37 {dimension_numbers = #tpu.dot_dimension_numbers<[1], [0], [0], [1], [0, 0, 1, 1], [], []>} : vector<2x64xf32>, vector<64x256xf32>, vector<2x256xf32> -> vector<2x256xf32>
    %c64 = arith.constant 64 : index
    %c0_38 = arith.constant 0 : index
    %89 = vector.load %arg7[%c64, %c0_38] : memref<128x256xf32, #tpu.memory_space<vmem>>, vector<64x256xf32>
    %cst_39 = arith.constant dense<0.000000e+00> : vector<2x256xf32>
    %90 = tpu.matmul %14, %89, %cst_39 {dimension_numbers = #tpu.dot_dimension_numbers<[1], [0], [0], [1], [0, 0, 1, 1], [], []>} : vector<2x64xf32>, vector<64x256xf32>, vector<2x256xf32> -> vector<2x256xf32>
    %91 = arith.addf %88, %90 : vector<2x256xf32>
    %92 = vector.broadcast %5 : vector<1x256xf32> to vector<2x256xf32>
    %93 = arith.addf %91, %92 : vector<2x256xf32>
    %94 = vector.extract_strided_slice %93 {offsets = [0, 0], sizes = [2, 64], strides = [1, 1]} : vector<2x256xf32> to vector<2x64xf32>
    %cst_40 = arith.constant 5.000000e-01 : f32
    %95 = vector.broadcast %cst_40 : f32 to vector<2x64xf32>
    %96 = arith.mulf %95, %94 : vector<2x64xf32>
    %97 = math.tanh %96 : vector<2x64xf32>
    %cst_41 = arith.constant 5.000000e-01 : f32
    %98 = vector.broadcast %cst_41 : f32 to vector<2x64xf32>
    %99 = arith.mulf %98, %97 : vector<2x64xf32>
    %cst_42 = arith.constant 5.000000e-01 : f32
    %100 = vector.broadcast %cst_42 : f32 to vector<2x64xf32>
    %101 = arith.addf %99, %100 : vector<2x64xf32>
    %102 = vector.extract_strided_slice %93 {offsets = [0, 64], sizes = [2, 64], strides = [1, 1]} : vector<2x256xf32> to vector<2x64xf32>
    %cst_43 = arith.constant 5.000000e-01 : f32
    %103 = vector.broadcast %cst_43 : f32 to vector<2x64xf32>
    %104 = arith.mulf %103, %102 : vector<2x64xf32>
    %105 = math.tanh %104 : vector<2x64xf32>
    %cst_44 = arith.constant 5.000000e-01 : f32
    %106 = vector.broadcast %cst_44 : f32 to vector<2x64xf32>
    %107 = arith.mulf %106, %105 : vector<2x64xf32>
    %cst_45 = arith.constant 5.000000e-01 : f32
    %108 = vector.broadcast %cst_45 : f32 to vector<2x64xf32>
    %109 = arith.addf %107, %108 : vector<2x64xf32>
    %110 = vector.extract_strided_slice %93 {offsets = [0, 128], sizes = [2, 64], strides = [1, 1]} : vector<2x256xf32> to vector<2x64xf32>
    %111 = math.tanh %110 : vector<2x64xf32>
    %112 = vector.extract_strided_slice %93 {offsets = [0, 192], sizes = [2, 64], strides = [1, 1]} : vector<2x256xf32> to vector<2x64xf32>
    %cst_46 = arith.constant 5.000000e-01 : f32
    %113 = vector.broadcast %cst_46 : f32 to vector<2x64xf32>
    %114 = arith.mulf %113, %112 : vector<2x64xf32>
    %115 = math.tanh %114 : vector<2x64xf32>
    %cst_47 = arith.constant 5.000000e-01 : f32
    %116 = vector.broadcast %cst_47 : f32 to vector<2x64xf32>
    %117 = arith.mulf %116, %115 : vector<2x64xf32>
    %cst_48 = arith.constant 5.000000e-01 : f32
    %118 = vector.broadcast %cst_48 : f32 to vector<2x64xf32>
    %119 = arith.addf %117, %118 : vector<2x64xf32>
    %120 = arith.mulf %109, %14 : vector<2x64xf32>
    %121 = arith.mulf %101, %111 : vector<2x64xf32>
    %122 = arith.addf %120, %121 : vector<2x64xf32>
    %123 = math.tanh %122 : vector<2x64xf32>
    %124 = arith.mulf %119, %123 : vector<2x64xf32>
    %c1_i32_49 = arith.constant 1 : i32
    %125 = tpu.memref_slice %arg9[%c1_i32_49] : memref<2x!tpu.dma_semaphore, #tpu.memory_space<semaphore_mem>> -> memref<1x!tpu.dma_semaphore, #tpu.memory_space<semaphore_mem>>
    %126 = tpu.memref_squeeze %125 : memref<1x!tpu.dma_semaphore, #tpu.memory_space<semaphore_mem>> -> memref<!tpu.dma_semaphore, #tpu.memory_space<semaphore_mem>>
    tpu.wait_dma2 semaphore(%126 : memref<!tpu.dma_semaphore, #tpu.memory_space<semaphore_mem>>) src(%arg5 : memref<128x256xf32, #tpu.memory_space<any>>) dst(%arg8 : memref<128x256xf32, #tpu.memory_space<vmem>>)
    %127 = vector.extract_strided_slice %13 {offsets = [4, 0], sizes = [2, 256], strides = [1, 1]} : vector<16x256xf32> to vector<2x256xf32>
    %c0_50 = arith.constant 0 : index
    %c0_51 = arith.constant 0 : index
    %128 = vector.load %arg2[%c0_50, %c0_51] : memref<64x256xf32, #tpu.memory_space<vmem>>, vector<64x256xf32>
    %cst_52 = arith.constant dense<0.000000e+00> : vector<2x256xf32>
    %129 = tpu.matmul %86, %128, %cst_52 {dimension_numbers = #tpu.dot_dimension_numbers<[1], [0], [0], [1], [0, 0, 1, 1], [], []>} : vector<2x64xf32>, vector<64x256xf32>, vector<2x256xf32> -> vector<2x256xf32>
    %130 = arith.addf %127, %129 : vector<2x256xf32>
    %131 = vector.extract_strided_slice %130 {offsets = [0, 0], sizes = [2, 64], strides = [1, 1]} : vector<2x256xf32> to vector<2x64xf32>
    %cst_53 = arith.constant 5.000000e-01 : f32
    %132 = vector.broadcast %cst_53 : f32 to vector<2x64xf32>
    %133 = arith.mulf %132, %131 : vector<2x64xf32>
    %134 = math.tanh %133 : vector<2x64xf32>
    %cst_54 = arith.constant 5.000000e-01 : f32
    %135 = vector.broadcast %cst_54 : f32 to vector<2x64xf32>
    %136 = arith.mulf %135, %134 : vector<2x64xf32>
    %cst_55 = arith.constant 5.000000e-01 : f32
    %137 = vector.broadcast %cst_55 : f32 to vector<2x64xf32>
    %138 = arith.addf %136, %137 : vector<2x64xf32>
    %139 = vector.extract_strided_slice %130 {offsets = [0, 64], sizes = [2, 64], strides = [1, 1]} : vector<2x256xf32> to vector<2x64xf32>
    %cst_56 = arith.constant 5.000000e-01 : f32
    %140 = vector.broadcast %cst_56 : f32 to vector<2x64xf32>
    %141 = arith.mulf %140, %139 : vector<2x64xf32>
    %142 = math.tanh %141 : vector<2x64xf32>
    %cst_57 = arith.constant 5.000000e-01 : f32
    %143 = vector.broadcast %cst_57 : f32 to vector<2x64xf32>
    %144 = arith.mulf %143, %142 : vector<2x64xf32>
    %cst_58 = arith.constant 5.000000e-01 : f32
    %145 = vector.broadcast %cst_58 : f32 to vector<2x64xf32>
    %146 = arith.addf %144, %145 : vector<2x64xf32>
    %147 = vector.extract_strided_slice %130 {offsets = [0, 128], sizes = [2, 64], strides = [1, 1]} : vector<2x256xf32> to vector<2x64xf32>
    %148 = math.tanh %147 : vector<2x64xf32>
    %149 = vector.extract_strided_slice %130 {offsets = [0, 192], sizes = [2, 64], strides = [1, 1]} : vector<2x256xf32> to vector<2x64xf32>
    %cst_59 = arith.constant 5.000000e-01 : f32
    %150 = vector.broadcast %cst_59 : f32 to vector<2x64xf32>
    %151 = arith.mulf %150, %149 : vector<2x64xf32>
    %152 = math.tanh %151 : vector<2x64xf32>
    %cst_60 = arith.constant 5.000000e-01 : f32
    %153 = vector.broadcast %cst_60 : f32 to vector<2x64xf32>
    %154 = arith.mulf %153, %152 : vector<2x64xf32>
    %cst_61 = arith.constant 5.000000e-01 : f32
    %155 = vector.broadcast %cst_61 : f32 to vector<2x64xf32>
    %156 = arith.addf %154, %155 : vector<2x64xf32>
    %157 = arith.mulf %146, %84 : vector<2x64xf32>
    %158 = arith.mulf %138, %148 : vector<2x64xf32>
    %159 = arith.addf %157, %158 : vector<2x64xf32>
    %160 = math.tanh %159 : vector<2x64xf32>
    %161 = arith.mulf %156, %160 : vector<2x64xf32>
    %c0_62 = arith.constant 0 : index
    %c0_63 = arith.constant 0 : index
    %162 = vector.load %arg7[%c0_62, %c0_63] : memref<128x256xf32, #tpu.memory_space<vmem>>, vector<64x256xf32>
    %cst_64 = arith.constant dense<0.000000e+00> : vector<2x256xf32>
    %163 = tpu.matmul %86, %162, %cst_64 {dimension_numbers = #tpu.dot_dimension_numbers<[1], [0], [0], [1], [0, 0, 1, 1], [], []>} : vector<2x64xf32>, vector<64x256xf32>, vector<2x256xf32> -> vector<2x256xf32>
    %c64_65 = arith.constant 64 : index
    %c0_66 = arith.constant 0 : index
    %164 = vector.load %arg7[%c64_65, %c0_66] : memref<128x256xf32, #tpu.memory_space<vmem>>, vector<64x256xf32>
    %cst_67 = arith.constant dense<0.000000e+00> : vector<2x256xf32>
    %165 = tpu.matmul %124, %164, %cst_67 {dimension_numbers = #tpu.dot_dimension_numbers<[1], [0], [0], [1], [0, 0, 1, 1], [], []>} : vector<2x64xf32>, vector<64x256xf32>, vector<2x256xf32> -> vector<2x256xf32>
    %166 = arith.addf %163, %165 : vector<2x256xf32>
    %167 = vector.broadcast %5 : vector<1x256xf32> to vector<2x256xf32>
    %168 = arith.addf %166, %167 : vector<2x256xf32>
    %169 = vector.extract_strided_slice %168 {offsets = [0, 0], sizes = [2, 64], strides = [1, 1]} : vector<2x256xf32> to vector<2x64xf32>
    %cst_68 = arith.constant 5.000000e-01 : f32
    %170 = vector.broadcast %cst_68 : f32 to vector<2x64xf32>
    %171 = arith.mulf %170, %169 : vector<2x64xf32>
    %172 = math.tanh %171 : vector<2x64xf32>
    %cst_69 = arith.constant 5.000000e-01 : f32
    %173 = vector.broadcast %cst_69 : f32 to vector<2x64xf32>
    %174 = arith.mulf %173, %172 : vector<2x64xf32>
    %cst_70 = arith.constant 5.000000e-01 : f32
    %175 = vector.broadcast %cst_70 : f32 to vector<2x64xf32>
    %176 = arith.addf %174, %175 : vector<2x64xf32>
    %177 = vector.extract_strided_slice %168 {offsets = [0, 64], sizes = [2, 64], strides = [1, 1]} : vector<2x256xf32> to vector<2x64xf32>
    %cst_71 = arith.constant 5.000000e-01 : f32
    %178 = vector.broadcast %cst_71 : f32 to vector<2x64xf32>
    %179 = arith.mulf %178, %177 : vector<2x64xf32>
    %180 = math.tanh %179 : vector<2x64xf32>
    %cst_72 = arith.constant 5.000000e-01 : f32
    %181 = vector.broadcast %cst_72 : f32 to vector<2x64xf32>
    %182 = arith.mulf %181, %180 : vector<2x64xf32>
    %cst_73 = arith.constant 5.000000e-01 : f32
    %183 = vector.broadcast %cst_73 : f32 to vector<2x64xf32>
    %184 = arith.addf %182, %183 : vector<2x64xf32>
    %185 = vector.extract_strided_slice %168 {offsets = [0, 128], sizes = [2, 64], strides = [1, 1]} : vector<2x256xf32> to vector<2x64xf32>
    %186 = math.tanh %185 : vector<2x64xf32>
    %187 = vector.extract_strided_slice %168 {offsets = [0, 192], sizes = [2, 64], strides = [1, 1]} : vector<2x256xf32> to vector<2x64xf32>
    %cst_74 = arith.constant 5.000000e-01 : f32
    %188 = vector.broadcast %cst_74 : f32 to vector<2x64xf32>
    %189 = arith.mulf %188, %187 : vector<2x64xf32>
    %190 = math.tanh %189 : vector<2x64xf32>
    %cst_75 = arith.constant 5.000000e-01 : f32
    %191 = vector.broadcast %cst_75 : f32 to vector<2x64xf32>
    %192 = arith.mulf %191, %190 : vector<2x64xf32>
    %cst_76 = arith.constant 5.000000e-01 : f32
    %193 = vector.broadcast %cst_76 : f32 to vector<2x64xf32>
    %194 = arith.addf %192, %193 : vector<2x64xf32>
    %195 = arith.mulf %184, %122 : vector<2x64xf32>
    %196 = arith.mulf %176, %186 : vector<2x64xf32>
    %197 = arith.addf %195, %196 : vector<2x64xf32>
    %198 = math.tanh %197 : vector<2x64xf32>
    %199 = arith.mulf %194, %198 : vector<2x64xf32>
    %c0_77 = arith.constant 0 : index
    %c0_78 = arith.constant 0 : index
    %200 = vector.load %arg8[%c0_77, %c0_78] : memref<128x256xf32, #tpu.memory_space<vmem>>, vector<64x256xf32>
    %cst_79 = arith.constant dense<0.000000e+00> : vector<2x256xf32>
    %201 = tpu.matmul %124, %200, %cst_79 {dimension_numbers = #tpu.dot_dimension_numbers<[1], [0], [0], [1], [0, 0, 1, 1], [], []>} : vector<2x64xf32>, vector<64x256xf32>, vector<2x256xf32> -> vector<2x256xf32>
    %c64_80 = arith.constant 64 : index
    %c0_81 = arith.constant 0 : index
    %202 = vector.load %arg8[%c64_80, %c0_81] : memref<128x256xf32, #tpu.memory_space<vmem>>, vector<64x256xf32>
    %cst_82 = arith.constant dense<0.000000e+00> : vector<2x256xf32>
    %203 = tpu.matmul %14, %202, %cst_82 {dimension_numbers = #tpu.dot_dimension_numbers<[1], [0], [0], [1], [0, 0, 1, 1], [], []>} : vector<2x64xf32>, vector<64x256xf32>, vector<2x256xf32> -> vector<2x256xf32>
    %204 = arith.addf %201, %203 : vector<2x256xf32>
    %205 = vector.broadcast %6 : vector<1x256xf32> to vector<2x256xf32>
    %206 = arith.addf %204, %205 : vector<2x256xf32>
    %207 = vector.extract_strided_slice %206 {offsets = [0, 0], sizes = [2, 64], strides = [1, 1]} : vector<2x256xf32> to vector<2x64xf32>
    %cst_83 = arith.constant 5.000000e-01 : f32
    %208 = vector.broadcast %cst_83 : f32 to vector<2x64xf32>
    %209 = arith.mulf %208, %207 : vector<2x64xf32>
    %210 = math.tanh %209 : vector<2x64xf32>
    %cst_84 = arith.constant 5.000000e-01 : f32
    %211 = vector.broadcast %cst_84 : f32 to vector<2x64xf32>
    %212 = arith.mulf %211, %210 : vector<2x64xf32>
    %cst_85 = arith.constant 5.000000e-01 : f32
    %213 = vector.broadcast %cst_85 : f32 to vector<2x64xf32>
    %214 = arith.addf %212, %213 : vector<2x64xf32>
    %215 = vector.extract_strided_slice %206 {offsets = [0, 64], sizes = [2, 64], strides = [1, 1]} : vector<2x256xf32> to vector<2x64xf32>
    %cst_86 = arith.constant 5.000000e-01 : f32
    %216 = vector.broadcast %cst_86 : f32 to vector<2x64xf32>
    %217 = arith.mulf %216, %215 : vector<2x64xf32>
    %218 = math.tanh %217 : vector<2x64xf32>
    %cst_87 = arith.constant 5.000000e-01 : f32
    %219 = vector.broadcast %cst_87 : f32 to vector<2x64xf32>
    %220 = arith.mulf %219, %218 : vector<2x64xf32>
    %cst_88 = arith.constant 5.000000e-01 : f32
    %221 = vector.broadcast %cst_88 : f32 to vector<2x64xf32>
    %222 = arith.addf %220, %221 : vector<2x64xf32>
    %223 = vector.extract_strided_slice %206 {offsets = [0, 128], sizes = [2, 64], strides = [1, 1]} : vector<2x256xf32> to vector<2x64xf32>
    %224 = math.tanh %223 : vector<2x64xf32>
    %225 = vector.extract_strided_slice %206 {offsets = [0, 192], sizes = [2, 64], strides = [1, 1]} : vector<2x256xf32> to vector<2x64xf32>
    %cst_89 = arith.constant 5.000000e-01 : f32
    %226 = vector.broadcast %cst_89 : f32 to vector<2x64xf32>
    %227 = arith.mulf %226, %225 : vector<2x64xf32>
    %228 = math.tanh %227 : vector<2x64xf32>
    %cst_90 = arith.constant 5.000000e-01 : f32
    %229 = vector.broadcast %cst_90 : f32 to vector<2x64xf32>
    %230 = arith.mulf %229, %228 : vector<2x64xf32>
    %cst_91 = arith.constant 5.000000e-01 : f32
    %231 = vector.broadcast %cst_91 : f32 to vector<2x64xf32>
    %232 = arith.addf %230, %231 : vector<2x64xf32>
    %233 = arith.mulf %222, %14 : vector<2x64xf32>
    %234 = arith.mulf %214, %224 : vector<2x64xf32>
    %235 = arith.addf %233, %234 : vector<2x64xf32>
    %236 = math.tanh %235 : vector<2x64xf32>
    %237 = arith.mulf %232, %236 : vector<2x64xf32>
    %238 = vector.extract_strided_slice %13 {offsets = [6, 0], sizes = [2, 256], strides = [1, 1]} : vector<16x256xf32> to vector<2x256xf32>
    %c0_92 = arith.constant 0 : index
    %c0_93 = arith.constant 0 : index
    %239 = vector.load %arg2[%c0_92, %c0_93] : memref<64x256xf32, #tpu.memory_space<vmem>>, vector<64x256xf32>
    %cst_94 = arith.constant dense<0.000000e+00> : vector<2x256xf32>
    %240 = tpu.matmul %161, %239, %cst_94 {dimension_numbers = #tpu.dot_dimension_numbers<[1], [0], [0], [1], [0, 0, 1, 1], [], []>} : vector<2x64xf32>, vector<64x256xf32>, vector<2x256xf32> -> vector<2x256xf32>
    %241 = arith.addf %238, %240 : vector<2x256xf32>
    %242 = vector.extract_strided_slice %241 {offsets = [0, 0], sizes = [2, 64], strides = [1, 1]} : vector<2x256xf32> to vector<2x64xf32>
    %cst_95 = arith.constant 5.000000e-01 : f32
    %243 = vector.broadcast %cst_95 : f32 to vector<2x64xf32>
    %244 = arith.mulf %243, %242 : vector<2x64xf32>
    %245 = math.tanh %244 : vector<2x64xf32>
    %cst_96 = arith.constant 5.000000e-01 : f32
    %246 = vector.broadcast %cst_96 : f32 to vector<2x64xf32>
    %247 = arith.mulf %246, %245 : vector<2x64xf32>
    %cst_97 = arith.constant 5.000000e-01 : f32
    %248 = vector.broadcast %cst_97 : f32 to vector<2x64xf32>
    %249 = arith.addf %247, %248 : vector<2x64xf32>
    %250 = vector.extract_strided_slice %241 {offsets = [0, 64], sizes = [2, 64], strides = [1, 1]} : vector<2x256xf32> to vector<2x64xf32>
    %cst_98 = arith.constant 5.000000e-01 : f32
    %251 = vector.broadcast %cst_98 : f32 to vector<2x64xf32>
    %252 = arith.mulf %251, %250 : vector<2x64xf32>
    %253 = math.tanh %252 : vector<2x64xf32>
    %cst_99 = arith.constant 5.000000e-01 : f32
    %254 = vector.broadcast %cst_99 : f32 to vector<2x64xf32>
    %255 = arith.mulf %254, %253 : vector<2x64xf32>
    %cst_100 = arith.constant 5.000000e-01 : f32
    %256 = vector.broadcast %cst_100 : f32 to vector<2x64xf32>
    %257 = arith.addf %255, %256 : vector<2x64xf32>
    %258 = vector.extract_strided_slice %241 {offsets = [0, 128], sizes = [2, 64], strides = [1, 1]} : vector<2x256xf32> to vector<2x64xf32>
    %259 = math.tanh %258 : vector<2x64xf32>
    %260 = vector.extract_strided_slice %241 {offsets = [0, 192], sizes = [2, 64], strides = [1, 1]} : vector<2x256xf32> to vector<2x64xf32>
    %cst_101 = arith.constant 5.000000e-01 : f32
    %261 = vector.broadcast %cst_101 : f32 to vector<2x64xf32>
    %262 = arith.mulf %261, %260 : vector<2x64xf32>
    %263 = math.tanh %262 : vector<2x64xf32>
    %cst_102 = arith.constant 5.000000e-01 : f32
    %264 = vector.broadcast %cst_102 : f32 to vector<2x64xf32>
    %265 = arith.mulf %264, %263 : vector<2x64xf32>
    %cst_103 = arith.constant 5.000000e-01 : f32
    %266 = vector.broadcast %cst_103 : f32 to vector<2x64xf32>
    %267 = arith.addf %265, %266 : vector<2x64xf32>
    %268 = arith.mulf %257, %159 : vector<2x64xf32>
    %269 = arith.mulf %249, %259 : vector<2x64xf32>
    %270 = arith.addf %268, %269 : vector<2x64xf32>
    %271 = math.tanh %270 : vector<2x64xf32>
    %272 = arith.mulf %267, %271 : vector<2x64xf32>
    %c0_104 = arith.constant 0 : index
    %c0_105 = arith.constant 0 : index
    %273 = vector.load %arg7[%c0_104, %c0_105] : memref<128x256xf32, #tpu.memory_space<vmem>>, vector<64x256xf32>
    %cst_106 = arith.constant dense<0.000000e+00> : vector<2x256xf32>
    %274 = tpu.matmul %161, %273, %cst_106 {dimension_numbers = #tpu.dot_dimension_numbers<[1], [0], [0], [1], [0, 0, 1, 1], [], []>} : vector<2x64xf32>, vector<64x256xf32>, vector<2x256xf32> -> vector<2x256xf32>
    %c64_107 = arith.constant 64 : index
    %c0_108 = arith.constant 0 : index
    %275 = vector.load %arg7[%c64_107, %c0_108] : memref<128x256xf32, #tpu.memory_space<vmem>>, vector<64x256xf32>
    %cst_109 = arith.constant dense<0.000000e+00> : vector<2x256xf32>
    %276 = tpu.matmul %199, %275, %cst_109 {dimension_numbers = #tpu.dot_dimension_numbers<[1], [0], [0], [1], [0, 0, 1, 1], [], []>} : vector<2x64xf32>, vector<64x256xf32>, vector<2x256xf32> -> vector<2x256xf32>
    %277 = arith.addf %274, %276 : vector<2x256xf32>
    %278 = vector.broadcast %5 : vector<1x256xf32> to vector<2x256xf32>
    %279 = arith.addf %277, %278 : vector<2x256xf32>
    %280 = vector.extract_strided_slice %279 {offsets = [0, 0], sizes = [2, 64], strides = [1, 1]} : vector<2x256xf32> to vector<2x64xf32>
    %cst_110 = arith.constant 5.000000e-01 : f32
    %281 = vector.broadcast %cst_110 : f32 to vector<2x64xf32>
    %282 = arith.mulf %281, %280 : vector<2x64xf32>
    %283 = math.tanh %282 : vector<2x64xf32>
    %cst_111 = arith.constant 5.000000e-01 : f32
    %284 = vector.broadcast %cst_111 : f32 to vector<2x64xf32>
    %285 = arith.mulf %284, %283 : vector<2x64xf32>
    %cst_112 = arith.constant 5.000000e-01 : f32
    %286 = vector.broadcast %cst_112 : f32 to vector<2x64xf32>
    %287 = arith.addf %285, %286 : vector<2x64xf32>
    %288 = vector.extract_strided_slice %279 {offsets = [0, 64], sizes = [2, 64], strides = [1, 1]} : vector<2x256xf32> to vector<2x64xf32>
    %cst_113 = arith.constant 5.000000e-01 : f32
    %289 = vector.broadcast %cst_113 : f32 to vector<2x64xf32>
    %290 = arith.mulf %289, %288 : vector<2x64xf32>
    %291 = math.tanh %290 : vector<2x64xf32>
    %cst_114 = arith.constant 5.000000e-01 : f32
    %292 = vector.broadcast %cst_114 : f32 to vector<2x64xf32>
    %293 = arith.mulf %292, %291 : vector<2x64xf32>
    %cst_115 = arith.constant 5.000000e-01 : f32
    %294 = vector.broadcast %cst_115 : f32 to vector<2x64xf32>
    %295 = arith.addf %293, %294 : vector<2x64xf32>
    %296 = vector.extract_strided_slice %279 {offsets = [0, 128], sizes = [2, 64], strides = [1, 1]} : vector<2x256xf32> to vector<2x64xf32>
    %297 = math.tanh %296 : vector<2x64xf32>
    %298 = vector.extract_strided_slice %279 {offsets = [0, 192], sizes = [2, 64], strides = [1, 1]} : vector<2x256xf32> to vector<2x64xf32>
    %cst_116 = arith.constant 5.000000e-01 : f32
    %299 = vector.broadcast %cst_116 : f32 to vector<2x64xf32>
    %300 = arith.mulf %299, %298 : vector<2x64xf32>
    %301 = math.tanh %300 : vector<2x64xf32>
    %cst_117 = arith.constant 5.000000e-01 : f32
    %302 = vector.broadcast %cst_117 : f32 to vector<2x64xf32>
    %303 = arith.mulf %302, %301 : vector<2x64xf32>
    %cst_118 = arith.constant 5.000000e-01 : f32
    %304 = vector.broadcast %cst_118 : f32 to vector<2x64xf32>
    %305 = arith.addf %303, %304 : vector<2x64xf32>
    %306 = arith.mulf %295, %197 : vector<2x64xf32>
    %307 = arith.mulf %287, %297 : vector<2x64xf32>
    %308 = arith.addf %306, %307 : vector<2x64xf32>
    %309 = math.tanh %308 : vector<2x64xf32>
    %310 = arith.mulf %305, %309 : vector<2x64xf32>
    %c0_119 = arith.constant 0 : index
    %c0_120 = arith.constant 0 : index
    %311 = vector.load %arg8[%c0_119, %c0_120] : memref<128x256xf32, #tpu.memory_space<vmem>>, vector<64x256xf32>
    %cst_121 = arith.constant dense<0.000000e+00> : vector<2x256xf32>
    %312 = tpu.matmul %199, %311, %cst_121 {dimension_numbers = #tpu.dot_dimension_numbers<[1], [0], [0], [1], [0, 0, 1, 1], [], []>} : vector<2x64xf32>, vector<64x256xf32>, vector<2x256xf32> -> vector<2x256xf32>
    %c64_122 = arith.constant 64 : index
    %c0_123 = arith.constant 0 : index
    %313 = vector.load %arg8[%c64_122, %c0_123] : memref<128x256xf32, #tpu.memory_space<vmem>>, vector<64x256xf32>
    %cst_124 = arith.constant dense<0.000000e+00> : vector<2x256xf32>
    %314 = tpu.matmul %237, %313, %cst_124 {dimension_numbers = #tpu.dot_dimension_numbers<[1], [0], [0], [1], [0, 0, 1, 1], [], []>} : vector<2x64xf32>, vector<64x256xf32>, vector<2x256xf32> -> vector<2x256xf32>
    %315 = arith.addf %312, %314 : vector<2x256xf32>
    %316 = vector.broadcast %6 : vector<1x256xf32> to vector<2x256xf32>
    %317 = arith.addf %315, %316 : vector<2x256xf32>
    %318 = vector.extract_strided_slice %317 {offsets = [0, 0], sizes = [2, 64], strides = [1, 1]} : vector<2x256xf32> to vector<2x64xf32>
    %cst_125 = arith.constant 5.000000e-01 : f32
    %319 = vector.broadcast %cst_125 : f32 to vector<2x64xf32>
    %320 = arith.mulf %319, %318 : vector<2x64xf32>
    %321 = math.tanh %320 : vector<2x64xf32>
    %cst_126 = arith.constant 5.000000e-01 : f32
    %322 = vector.broadcast %cst_126 : f32 to vector<2x64xf32>
    %323 = arith.mulf %322, %321 : vector<2x64xf32>
    %cst_127 = arith.constant 5.000000e-01 : f32
    %324 = vector.broadcast %cst_127 : f32 to vector<2x64xf32>
    %325 = arith.addf %323, %324 : vector<2x64xf32>
    %326 = vector.extract_strided_slice %317 {offsets = [0, 64], sizes = [2, 64], strides = [1, 1]} : vector<2x256xf32> to vector<2x64xf32>
    %cst_128 = arith.constant 5.000000e-01 : f32
    %327 = vector.broadcast %cst_128 : f32 to vector<2x64xf32>
    %328 = arith.mulf %327, %326 : vector<2x64xf32>
    %329 = math.tanh %328 : vector<2x64xf32>
    %cst_129 = arith.constant 5.000000e-01 : f32
    %330 = vector.broadcast %cst_129 : f32 to vector<2x64xf32>
    %331 = arith.mulf %330, %329 : vector<2x64xf32>
    %cst_130 = arith.constant 5.000000e-01 : f32
    %332 = vector.broadcast %cst_130 : f32 to vector<2x64xf32>
    %333 = arith.addf %331, %332 : vector<2x64xf32>
    %334 = vector.extract_strided_slice %317 {offsets = [0, 128], sizes = [2, 64], strides = [1, 1]} : vector<2x256xf32> to vector<2x64xf32>
    %335 = math.tanh %334 : vector<2x64xf32>
    %336 = vector.extract_strided_slice %317 {offsets = [0, 192], sizes = [2, 64], strides = [1, 1]} : vector<2x256xf32> to vector<2x64xf32>
    %cst_131 = arith.constant 5.000000e-01 : f32
    %337 = vector.broadcast %cst_131 : f32 to vector<2x64xf32>
    %338 = arith.mulf %337, %336 : vector<2x64xf32>
    %339 = math.tanh %338 : vector<2x64xf32>
    %cst_132 = arith.constant 5.000000e-01 : f32
    %340 = vector.broadcast %cst_132 : f32 to vector<2x64xf32>
    %341 = arith.mulf %340, %339 : vector<2x64xf32>
    %cst_133 = arith.constant 5.000000e-01 : f32
    %342 = vector.broadcast %cst_133 : f32 to vector<2x64xf32>
    %343 = arith.addf %341, %342 : vector<2x64xf32>
    %344 = arith.mulf %333, %235 : vector<2x64xf32>
    %345 = arith.mulf %325, %335 : vector<2x64xf32>
    %346 = arith.addf %344, %345 : vector<2x64xf32>
    %347 = math.tanh %346 : vector<2x64xf32>
    %348 = arith.mulf %343, %347 : vector<2x64xf32>
    %349 = vector.extract_strided_slice %13 {offsets = [8, 0], sizes = [2, 256], strides = [1, 1]} : vector<16x256xf32> to vector<2x256xf32>
    %c0_134 = arith.constant 0 : index
    %c0_135 = arith.constant 0 : index
    %350 = vector.load %arg2[%c0_134, %c0_135] : memref<64x256xf32, #tpu.memory_space<vmem>>, vector<64x256xf32>
    %cst_136 = arith.constant dense<0.000000e+00> : vector<2x256xf32>
    %351 = tpu.matmul %272, %350, %cst_136 {dimension_numbers = #tpu.dot_dimension_numbers<[1], [0], [0], [1], [0, 0, 1, 1], [], []>} : vector<2x64xf32>, vector<64x256xf32>, vector<2x256xf32> -> vector<2x256xf32>
    %352 = arith.addf %349, %351 : vector<2x256xf32>
    %353 = vector.extract_strided_slice %352 {offsets = [0, 0], sizes = [2, 64], strides = [1, 1]} : vector<2x256xf32> to vector<2x64xf32>
    %cst_137 = arith.constant 5.000000e-01 : f32
    %354 = vector.broadcast %cst_137 : f32 to vector<2x64xf32>
    %355 = arith.mulf %354, %353 : vector<2x64xf32>
    %356 = math.tanh %355 : vector<2x64xf32>
    %cst_138 = arith.constant 5.000000e-01 : f32
    %357 = vector.broadcast %cst_138 : f32 to vector<2x64xf32>
    %358 = arith.mulf %357, %356 : vector<2x64xf32>
    %cst_139 = arith.constant 5.000000e-01 : f32
    %359 = vector.broadcast %cst_139 : f32 to vector<2x64xf32>
    %360 = arith.addf %358, %359 : vector<2x64xf32>
    %361 = vector.extract_strided_slice %352 {offsets = [0, 64], sizes = [2, 64], strides = [1, 1]} : vector<2x256xf32> to vector<2x64xf32>
    %cst_140 = arith.constant 5.000000e-01 : f32
    %362 = vector.broadcast %cst_140 : f32 to vector<2x64xf32>
    %363 = arith.mulf %362, %361 : vector<2x64xf32>
    %364 = math.tanh %363 : vector<2x64xf32>
    %cst_141 = arith.constant 5.000000e-01 : f32
    %365 = vector.broadcast %cst_141 : f32 to vector<2x64xf32>
    %366 = arith.mulf %365, %364 : vector<2x64xf32>
    %cst_142 = arith.constant 5.000000e-01 : f32
    %367 = vector.broadcast %cst_142 : f32 to vector<2x64xf32>
    %368 = arith.addf %366, %367 : vector<2x64xf32>
    %369 = vector.extract_strided_slice %352 {offsets = [0, 128], sizes = [2, 64], strides = [1, 1]} : vector<2x256xf32> to vector<2x64xf32>
    %370 = math.tanh %369 : vector<2x64xf32>
    %371 = vector.extract_strided_slice %352 {offsets = [0, 192], sizes = [2, 64], strides = [1, 1]} : vector<2x256xf32> to vector<2x64xf32>
    %cst_143 = arith.constant 5.000000e-01 : f32
    %372 = vector.broadcast %cst_143 : f32 to vector<2x64xf32>
    %373 = arith.mulf %372, %371 : vector<2x64xf32>
    %374 = math.tanh %373 : vector<2x64xf32>
    %cst_144 = arith.constant 5.000000e-01 : f32
    %375 = vector.broadcast %cst_144 : f32 to vector<2x64xf32>
    %376 = arith.mulf %375, %374 : vector<2x64xf32>
    %cst_145 = arith.constant 5.000000e-01 : f32
    %377 = vector.broadcast %cst_145 : f32 to vector<2x64xf32>
    %378 = arith.addf %376, %377 : vector<2x64xf32>
    %379 = arith.mulf %368, %270 : vector<2x64xf32>
    %380 = arith.mulf %360, %370 : vector<2x64xf32>
    %381 = arith.addf %379, %380 : vector<2x64xf32>
    %382 = math.tanh %381 : vector<2x64xf32>
    %383 = arith.mulf %378, %382 : vector<2x64xf32>
    %c0_146 = arith.constant 0 : index
    %c0_147 = arith.constant 0 : index
    %384 = vector.load %arg7[%c0_146, %c0_147] : memref<128x256xf32, #tpu.memory_space<vmem>>, vector<64x256xf32>
    %cst_148 = arith.constant dense<0.000000e+00> : vector<2x256xf32>
    %385 = tpu.matmul %272, %384, %cst_148 {dimension_numbers = #tpu.dot_dimension_numbers<[1], [0], [0], [1], [0, 0, 1, 1], [], []>} : vector<2x64xf32>, vector<64x256xf32>, vector<2x256xf32> -> vector<2x256xf32>
    %c64_149 = arith.constant 64 : index
    %c0_150 = arith.constant 0 : index
    %386 = vector.load %arg7[%c64_149, %c0_150] : memref<128x256xf32, #tpu.memory_space<vmem>>, vector<64x256xf32>
    %cst_151 = arith.constant dense<0.000000e+00> : vector<2x256xf32>
    %387 = tpu.matmul %310, %386, %cst_151 {dimension_numbers = #tpu.dot_dimension_numbers<[1], [0], [0], [1], [0, 0, 1, 1], [], []>} : vector<2x64xf32>, vector<64x256xf32>, vector<2x256xf32> -> vector<2x256xf32>
    %388 = arith.addf %385, %387 : vector<2x256xf32>
    %389 = vector.broadcast %5 : vector<1x256xf32> to vector<2x256xf32>
    %390 = arith.addf %388, %389 : vector<2x256xf32>
    %391 = vector.extract_strided_slice %390 {offsets = [0, 0], sizes = [2, 64], strides = [1, 1]} : vector<2x256xf32> to vector<2x64xf32>
    %cst_152 = arith.constant 5.000000e-01 : f32
    %392 = vector.broadcast %cst_152 : f32 to vector<2x64xf32>
    %393 = arith.mulf %392, %391 : vector<2x64xf32>
    %394 = math.tanh %393 : vector<2x64xf32>
    %cst_153 = arith.constant 5.000000e-01 : f32
    %395 = vector.broadcast %cst_153 : f32 to vector<2x64xf32>
    %396 = arith.mulf %395, %394 : vector<2x64xf32>
    %cst_154 = arith.constant 5.000000e-01 : f32
    %397 = vector.broadcast %cst_154 : f32 to vector<2x64xf32>
    %398 = arith.addf %396, %397 : vector<2x64xf32>
    %399 = vector.extract_strided_slice %390 {offsets = [0, 64], sizes = [2, 64], strides = [1, 1]} : vector<2x256xf32> to vector<2x64xf32>
    %cst_155 = arith.constant 5.000000e-01 : f32
    %400 = vector.broadcast %cst_155 : f32 to vector<2x64xf32>
    %401 = arith.mulf %400, %399 : vector<2x64xf32>
    %402 = math.tanh %401 : vector<2x64xf32>
    %cst_156 = arith.constant 5.000000e-01 : f32
    %403 = vector.broadcast %cst_156 : f32 to vector<2x64xf32>
    %404 = arith.mulf %403, %402 : vector<2x64xf32>
    %cst_157 = arith.constant 5.000000e-01 : f32
    %405 = vector.broadcast %cst_157 : f32 to vector<2x64xf32>
    %406 = arith.addf %404, %405 : vector<2x64xf32>
    %407 = vector.extract_strided_slice %390 {offsets = [0, 128], sizes = [2, 64], strides = [1, 1]} : vector<2x256xf32> to vector<2x64xf32>
    %408 = math.tanh %407 : vector<2x64xf32>
    %409 = vector.extract_strided_slice %390 {offsets = [0, 192], sizes = [2, 64], strides = [1, 1]} : vector<2x256xf32> to vector<2x64xf32>
    %cst_158 = arith.constant 5.000000e-01 : f32
    %410 = vector.broadcast %cst_158 : f32 to vector<2x64xf32>
    %411 = arith.mulf %410, %409 : vector<2x64xf32>
    %412 = math.tanh %411 : vector<2x64xf32>
    %cst_159 = arith.constant 5.000000e-01 : f32
    %413 = vector.broadcast %cst_159 : f32 to vector<2x64xf32>
    %414 = arith.mulf %413, %412 : vector<2x64xf32>
    %cst_160 = arith.constant 5.000000e-01 : f32
    %415 = vector.broadcast %cst_160 : f32 to vector<2x64xf32>
    %416 = arith.addf %414, %415 : vector<2x64xf32>
    %417 = arith.mulf %406, %308 : vector<2x64xf32>
    %418 = arith.mulf %398, %408 : vector<2x64xf32>
    %419 = arith.addf %417, %418 : vector<2x64xf32>
    %420 = math.tanh %419 : vector<2x64xf32>
    %421 = arith.mulf %416, %420 : vector<2x64xf32>
    %c0_161 = arith.constant 0 : index
    %c0_162 = arith.constant 0 : index
    %422 = vector.load %arg8[%c0_161, %c0_162] : memref<128x256xf32, #tpu.memory_space<vmem>>, vector<64x256xf32>
    %cst_163 = arith.constant dense<0.000000e+00> : vector<2x256xf32>
    %423 = tpu.matmul %310, %422, %cst_163 {dimension_numbers = #tpu.dot_dimension_numbers<[1], [0], [0], [1], [0, 0, 1, 1], [], []>} : vector<2x64xf32>, vector<64x256xf32>, vector<2x256xf32> -> vector<2x256xf32>
    %c64_164 = arith.constant 64 : index
    %c0_165 = arith.constant 0 : index
    %424 = vector.load %arg8[%c64_164, %c0_165] : memref<128x256xf32, #tpu.memory_space<vmem>>, vector<64x256xf32>
    %cst_166 = arith.constant dense<0.000000e+00> : vector<2x256xf32>
    %425 = tpu.matmul %348, %424, %cst_166 {dimension_numbers = #tpu.dot_dimension_numbers<[1], [0], [0], [1], [0, 0, 1, 1], [], []>} : vector<2x64xf32>, vector<64x256xf32>, vector<2x256xf32> -> vector<2x256xf32>
    %426 = arith.addf %423, %425 : vector<2x256xf32>
    %427 = vector.broadcast %6 : vector<1x256xf32> to vector<2x256xf32>
    %428 = arith.addf %426, %427 : vector<2x256xf32>
    %429 = vector.extract_strided_slice %428 {offsets = [0, 0], sizes = [2, 64], strides = [1, 1]} : vector<2x256xf32> to vector<2x64xf32>
    %cst_167 = arith.constant 5.000000e-01 : f32
    %430 = vector.broadcast %cst_167 : f32 to vector<2x64xf32>
    %431 = arith.mulf %430, %429 : vector<2x64xf32>
    %432 = math.tanh %431 : vector<2x64xf32>
    %cst_168 = arith.constant 5.000000e-01 : f32
    %433 = vector.broadcast %cst_168 : f32 to vector<2x64xf32>
    %434 = arith.mulf %433, %432 : vector<2x64xf32>
    %cst_169 = arith.constant 5.000000e-01 : f32
    %435 = vector.broadcast %cst_169 : f32 to vector<2x64xf32>
    %436 = arith.addf %434, %435 : vector<2x64xf32>
    %437 = vector.extract_strided_slice %428 {offsets = [0, 64], sizes = [2, 64], strides = [1, 1]} : vector<2x256xf32> to vector<2x64xf32>
    %cst_170 = arith.constant 5.000000e-01 : f32
    %438 = vector.broadcast %cst_170 : f32 to vector<2x64xf32>
    %439 = arith.mulf %438, %437 : vector<2x64xf32>
    %440 = math.tanh %439 : vector<2x64xf32>
    %cst_171 = arith.constant 5.000000e-01 : f32
    %441 = vector.broadcast %cst_171 : f32 to vector<2x64xf32>
    %442 = arith.mulf %441, %440 : vector<2x64xf32>
    %cst_172 = arith.constant 5.000000e-01 : f32
    %443 = vector.broadcast %cst_172 : f32 to vector<2x64xf32>
    %444 = arith.addf %442, %443 : vector<2x64xf32>
    %445 = vector.extract_strided_slice %428 {offsets = [0, 128], sizes = [2, 64], strides = [1, 1]} : vector<2x256xf32> to vector<2x64xf32>
    %446 = math.tanh %445 : vector<2x64xf32>
    %447 = vector.extract_strided_slice %428 {offsets = [0, 192], sizes = [2, 64], strides = [1, 1]} : vector<2x256xf32> to vector<2x64xf32>
    %cst_173 = arith.constant 5.000000e-01 : f32
    %448 = vector.broadcast %cst_173 : f32 to vector<2x64xf32>
    %449 = arith.mulf %448, %447 : vector<2x64xf32>
    %450 = math.tanh %449 : vector<2x64xf32>
    %cst_174 = arith.constant 5.000000e-01 : f32
    %451 = vector.broadcast %cst_174 : f32 to vector<2x64xf32>
    %452 = arith.mulf %451, %450 : vector<2x64xf32>
    %cst_175 = arith.constant 5.000000e-01 : f32
    %453 = vector.broadcast %cst_175 : f32 to vector<2x64xf32>
    %454 = arith.addf %452, %453 : vector<2x64xf32>
    %455 = arith.mulf %444, %346 : vector<2x64xf32>
    %456 = arith.mulf %436, %446 : vector<2x64xf32>
    %457 = arith.addf %455, %456 : vector<2x64xf32>
    %458 = math.tanh %457 : vector<2x64xf32>
    %459 = arith.mulf %454, %458 : vector<2x64xf32>
    %460 = vector.extract_strided_slice %13 {offsets = [10, 0], sizes = [2, 256], strides = [1, 1]} : vector<16x256xf32> to vector<2x256xf32>
    %c0_176 = arith.constant 0 : index
    %c0_177 = arith.constant 0 : index
    %461 = vector.load %arg2[%c0_176, %c0_177] : memref<64x256xf32, #tpu.memory_space<vmem>>, vector<64x256xf32>
    %cst_178 = arith.constant dense<0.000000e+00> : vector<2x256xf32>
    %462 = tpu.matmul %383, %461, %cst_178 {dimension_numbers = #tpu.dot_dimension_numbers<[1], [0], [0], [1], [0, 0, 1, 1], [], []>} : vector<2x64xf32>, vector<64x256xf32>, vector<2x256xf32> -> vector<2x256xf32>
    %463 = arith.addf %460, %462 : vector<2x256xf32>
    %464 = vector.extract_strided_slice %463 {offsets = [0, 0], sizes = [2, 64], strides = [1, 1]} : vector<2x256xf32> to vector<2x64xf32>
    %cst_179 = arith.constant 5.000000e-01 : f32
    %465 = vector.broadcast %cst_179 : f32 to vector<2x64xf32>
    %466 = arith.mulf %465, %464 : vector<2x64xf32>
    %467 = math.tanh %466 : vector<2x64xf32>
    %cst_180 = arith.constant 5.000000e-01 : f32
    %468 = vector.broadcast %cst_180 : f32 to vector<2x64xf32>
    %469 = arith.mulf %468, %467 : vector<2x64xf32>
    %cst_181 = arith.constant 5.000000e-01 : f32
    %470 = vector.broadcast %cst_181 : f32 to vector<2x64xf32>
    %471 = arith.addf %469, %470 : vector<2x64xf32>
    %472 = vector.extract_strided_slice %463 {offsets = [0, 64], sizes = [2, 64], strides = [1, 1]} : vector<2x256xf32> to vector<2x64xf32>
    %cst_182 = arith.constant 5.000000e-01 : f32
    %473 = vector.broadcast %cst_182 : f32 to vector<2x64xf32>
    %474 = arith.mulf %473, %472 : vector<2x64xf32>
    %475 = math.tanh %474 : vector<2x64xf32>
    %cst_183 = arith.constant 5.000000e-01 : f32
    %476 = vector.broadcast %cst_183 : f32 to vector<2x64xf32>
    %477 = arith.mulf %476, %475 : vector<2x64xf32>
    %cst_184 = arith.constant 5.000000e-01 : f32
    %478 = vector.broadcast %cst_184 : f32 to vector<2x64xf32>
    %479 = arith.addf %477, %478 : vector<2x64xf32>
    %480 = vector.extract_strided_slice %463 {offsets = [0, 128], sizes = [2, 64], strides = [1, 1]} : vector<2x256xf32> to vector<2x64xf32>
    %481 = math.tanh %480 : vector<2x64xf32>
    %482 = vector.extract_strided_slice %463 {offsets = [0, 192], sizes = [2, 64], strides = [1, 1]} : vector<2x256xf32> to vector<2x64xf32>
    %cst_185 = arith.constant 5.000000e-01 : f32
    %483 = vector.broadcast %cst_185 : f32 to vector<2x64xf32>
    %484 = arith.mulf %483, %482 : vector<2x64xf32>
    %485 = math.tanh %484 : vector<2x64xf32>
    %cst_186 = arith.constant 5.000000e-01 : f32
    %486 = vector.broadcast %cst_186 : f32 to vector<2x64xf32>
    %487 = arith.mulf %486, %485 : vector<2x64xf32>
    %cst_187 = arith.constant 5.000000e-01 : f32
    %488 = vector.broadcast %cst_187 : f32 to vector<2x64xf32>
    %489 = arith.addf %487, %488 : vector<2x64xf32>
    %490 = arith.mulf %479, %381 : vector<2x64xf32>
    %491 = arith.mulf %471, %481 : vector<2x64xf32>
    %492 = arith.addf %490, %491 : vector<2x64xf32>
    %493 = math.tanh %492 : vector<2x64xf32>
    %494 = arith.mulf %489, %493 : vector<2x64xf32>
    %c0_188 = arith.constant 0 : index
    %c0_189 = arith.constant 0 : index
    %495 = vector.load %arg7[%c0_188, %c0_189] : memref<128x256xf32, #tpu.memory_space<vmem>>, vector<64x256xf32>
    %cst_190 = arith.constant dense<0.000000e+00> : vector<2x256xf32>
    %496 = tpu.matmul %383, %495, %cst_190 {dimension_numbers = #tpu.dot_dimension_numbers<[1], [0], [0], [1], [0, 0, 1, 1], [], []>} : vector<2x64xf32>, vector<64x256xf32>, vector<2x256xf32> -> vector<2x256xf32>
    %c64_191 = arith.constant 64 : index
    %c0_192 = arith.constant 0 : index
    %497 = vector.load %arg7[%c64_191, %c0_192] : memref<128x256xf32, #tpu.memory_space<vmem>>, vector<64x256xf32>
    %cst_193 = arith.constant dense<0.000000e+00> : vector<2x256xf32>
    %498 = tpu.matmul %421, %497, %cst_193 {dimension_numbers = #tpu.dot_dimension_numbers<[1], [0], [0], [1], [0, 0, 1, 1], [], []>} : vector<2x64xf32>, vector<64x256xf32>, vector<2x256xf32> -> vector<2x256xf32>
    %499 = arith.addf %496, %498 : vector<2x256xf32>
    %500 = vector.broadcast %5 : vector<1x256xf32> to vector<2x256xf32>
    %501 = arith.addf %499, %500 : vector<2x256xf32>
    %502 = vector.extract_strided_slice %501 {offsets = [0, 0], sizes = [2, 64], strides = [1, 1]} : vector<2x256xf32> to vector<2x64xf32>
    %cst_194 = arith.constant 5.000000e-01 : f32
    %503 = vector.broadcast %cst_194 : f32 to vector<2x64xf32>
    %504 = arith.mulf %503, %502 : vector<2x64xf32>
    %505 = math.tanh %504 : vector<2x64xf32>
    %cst_195 = arith.constant 5.000000e-01 : f32
    %506 = vector.broadcast %cst_195 : f32 to vector<2x64xf32>
    %507 = arith.mulf %506, %505 : vector<2x64xf32>
    %cst_196 = arith.constant 5.000000e-01 : f32
    %508 = vector.broadcast %cst_196 : f32 to vector<2x64xf32>
    %509 = arith.addf %507, %508 : vector<2x64xf32>
    %510 = vector.extract_strided_slice %501 {offsets = [0, 64], sizes = [2, 64], strides = [1, 1]} : vector<2x256xf32> to vector<2x64xf32>
    %cst_197 = arith.constant 5.000000e-01 : f32
    %511 = vector.broadcast %cst_197 : f32 to vector<2x64xf32>
    %512 = arith.mulf %511, %510 : vector<2x64xf32>
    %513 = math.tanh %512 : vector<2x64xf32>
    %cst_198 = arith.constant 5.000000e-01 : f32
    %514 = vector.broadcast %cst_198 : f32 to vector<2x64xf32>
    %515 = arith.mulf %514, %513 : vector<2x64xf32>
    %cst_199 = arith.constant 5.000000e-01 : f32
    %516 = vector.broadcast %cst_199 : f32 to vector<2x64xf32>
    %517 = arith.addf %515, %516 : vector<2x64xf32>
    %518 = vector.extract_strided_slice %501 {offsets = [0, 128], sizes = [2, 64], strides = [1, 1]} : vector<2x256xf32> to vector<2x64xf32>
    %519 = math.tanh %518 : vector<2x64xf32>
    %520 = vector.extract_strided_slice %501 {offsets = [0, 192], sizes = [2, 64], strides = [1, 1]} : vector<2x256xf32> to vector<2x64xf32>
    %cst_200 = arith.constant 5.000000e-01 : f32
    %521 = vector.broadcast %cst_200 : f32 to vector<2x64xf32>
    %522 = arith.mulf %521, %520 : vector<2x64xf32>
    %523 = math.tanh %522 : vector<2x64xf32>
    %cst_201 = arith.constant 5.000000e-01 : f32
    %524 = vector.broadcast %cst_201 : f32 to vector<2x64xf32>
    %525 = arith.mulf %524, %523 : vector<2x64xf32>
    %cst_202 = arith.constant 5.000000e-01 : f32
    %526 = vector.broadcast %cst_202 : f32 to vector<2x64xf32>
    %527 = arith.addf %525, %526 : vector<2x64xf32>
    %528 = arith.mulf %517, %419 : vector<2x64xf32>
    %529 = arith.mulf %509, %519 : vector<2x64xf32>
    %530 = arith.addf %528, %529 : vector<2x64xf32>
    %531 = math.tanh %530 : vector<2x64xf32>
    %532 = arith.mulf %527, %531 : vector<2x64xf32>
    %c0_203 = arith.constant 0 : index
    %c0_204 = arith.constant 0 : index
    %533 = vector.load %arg8[%c0_203, %c0_204] : memref<128x256xf32, #tpu.memory_space<vmem>>, vector<64x256xf32>
    %cst_205 = arith.constant dense<0.000000e+00> : vector<2x256xf32>
    %534 = tpu.matmul %421, %533, %cst_205 {dimension_numbers = #tpu.dot_dimension_numbers<[1], [0], [0], [1], [0, 0, 1, 1], [], []>} : vector<2x64xf32>, vector<64x256xf32>, vector<2x256xf32> -> vector<2x256xf32>
    %c64_206 = arith.constant 64 : index
    %c0_207 = arith.constant 0 : index
    %535 = vector.load %arg8[%c64_206, %c0_207] : memref<128x256xf32, #tpu.memory_space<vmem>>, vector<64x256xf32>
    %cst_208 = arith.constant dense<0.000000e+00> : vector<2x256xf32>
    %536 = tpu.matmul %459, %535, %cst_208 {dimension_numbers = #tpu.dot_dimension_numbers<[1], [0], [0], [1], [0, 0, 1, 1], [], []>} : vector<2x64xf32>, vector<64x256xf32>, vector<2x256xf32> -> vector<2x256xf32>
    %537 = arith.addf %534, %536 : vector<2x256xf32>
    %538 = vector.broadcast %6 : vector<1x256xf32> to vector<2x256xf32>
    %539 = arith.addf %537, %538 : vector<2x256xf32>
    %540 = vector.extract_strided_slice %539 {offsets = [0, 0], sizes = [2, 64], strides = [1, 1]} : vector<2x256xf32> to vector<2x64xf32>
    %cst_209 = arith.constant 5.000000e-01 : f32
    %541 = vector.broadcast %cst_209 : f32 to vector<2x64xf32>
    %542 = arith.mulf %541, %540 : vector<2x64xf32>
    %543 = math.tanh %542 : vector<2x64xf32>
    %cst_210 = arith.constant 5.000000e-01 : f32
    %544 = vector.broadcast %cst_210 : f32 to vector<2x64xf32>
    %545 = arith.mulf %544, %543 : vector<2x64xf32>
    %cst_211 = arith.constant 5.000000e-01 : f32
    %546 = vector.broadcast %cst_211 : f32 to vector<2x64xf32>
    %547 = arith.addf %545, %546 : vector<2x64xf32>
    %548 = vector.extract_strided_slice %539 {offsets = [0, 64], sizes = [2, 64], strides = [1, 1]} : vector<2x256xf32> to vector<2x64xf32>
    %cst_212 = arith.constant 5.000000e-01 : f32
    %549 = vector.broadcast %cst_212 : f32 to vector<2x64xf32>
    %550 = arith.mulf %549, %548 : vector<2x64xf32>
    %551 = math.tanh %550 : vector<2x64xf32>
    %cst_213 = arith.constant 5.000000e-01 : f32
    %552 = vector.broadcast %cst_213 : f32 to vector<2x64xf32>
    %553 = arith.mulf %552, %551 : vector<2x64xf32>
    %cst_214 = arith.constant 5.000000e-01 : f32
    %554 = vector.broadcast %cst_214 : f32 to vector<2x64xf32>
    %555 = arith.addf %553, %554 : vector<2x64xf32>
    %556 = vector.extract_strided_slice %539 {offsets = [0, 128], sizes = [2, 64], strides = [1, 1]} : vector<2x256xf32> to vector<2x64xf32>
    %557 = math.tanh %556 : vector<2x64xf32>
    %558 = vector.extract_strided_slice %539 {offsets = [0, 192], sizes = [2, 64], strides = [1, 1]} : vector<2x256xf32> to vector<2x64xf32>
    %cst_215 = arith.constant 5.000000e-01 : f32
    %559 = vector.broadcast %cst_215 : f32 to vector<2x64xf32>
    %560 = arith.mulf %559, %558 : vector<2x64xf32>
    %561 = math.tanh %560 : vector<2x64xf32>
    %cst_216 = arith.constant 5.000000e-01 : f32
    %562 = vector.broadcast %cst_216 : f32 to vector<2x64xf32>
    %563 = arith.mulf %562, %561 : vector<2x64xf32>
    %cst_217 = arith.constant 5.000000e-01 : f32
    %564 = vector.broadcast %cst_217 : f32 to vector<2x64xf32>
    %565 = arith.addf %563, %564 : vector<2x64xf32>
    %566 = arith.mulf %555, %457 : vector<2x64xf32>
    %567 = arith.mulf %547, %557 : vector<2x64xf32>
    %568 = arith.addf %566, %567 : vector<2x64xf32>
    %569 = math.tanh %568 : vector<2x64xf32>
    %570 = arith.mulf %565, %569 : vector<2x64xf32>
    %571 = vector.extract_strided_slice %13 {offsets = [12, 0], sizes = [2, 256], strides = [1, 1]} : vector<16x256xf32> to vector<2x256xf32>
    %c0_218 = arith.constant 0 : index
    %c0_219 = arith.constant 0 : index
    %572 = vector.load %arg2[%c0_218, %c0_219] : memref<64x256xf32, #tpu.memory_space<vmem>>, vector<64x256xf32>
    %cst_220 = arith.constant dense<0.000000e+00> : vector<2x256xf32>
    %573 = tpu.matmul %494, %572, %cst_220 {dimension_numbers = #tpu.dot_dimension_numbers<[1], [0], [0], [1], [0, 0, 1, 1], [], []>} : vector<2x64xf32>, vector<64x256xf32>, vector<2x256xf32> -> vector<2x256xf32>
    %574 = arith.addf %571, %573 : vector<2x256xf32>
    %575 = vector.extract_strided_slice %574 {offsets = [0, 0], sizes = [2, 64], strides = [1, 1]} : vector<2x256xf32> to vector<2x64xf32>
    %cst_221 = arith.constant 5.000000e-01 : f32
    %576 = vector.broadcast %cst_221 : f32 to vector<2x64xf32>
    %577 = arith.mulf %576, %575 : vector<2x64xf32>
    %578 = math.tanh %577 : vector<2x64xf32>
    %cst_222 = arith.constant 5.000000e-01 : f32
    %579 = vector.broadcast %cst_222 : f32 to vector<2x64xf32>
    %580 = arith.mulf %579, %578 : vector<2x64xf32>
    %cst_223 = arith.constant 5.000000e-01 : f32
    %581 = vector.broadcast %cst_223 : f32 to vector<2x64xf32>
    %582 = arith.addf %580, %581 : vector<2x64xf32>
    %583 = vector.extract_strided_slice %574 {offsets = [0, 64], sizes = [2, 64], strides = [1, 1]} : vector<2x256xf32> to vector<2x64xf32>
    %cst_224 = arith.constant 5.000000e-01 : f32
    %584 = vector.broadcast %cst_224 : f32 to vector<2x64xf32>
    %585 = arith.mulf %584, %583 : vector<2x64xf32>
    %586 = math.tanh %585 : vector<2x64xf32>
    %cst_225 = arith.constant 5.000000e-01 : f32
    %587 = vector.broadcast %cst_225 : f32 to vector<2x64xf32>
    %588 = arith.mulf %587, %586 : vector<2x64xf32>
    %cst_226 = arith.constant 5.000000e-01 : f32
    %589 = vector.broadcast %cst_226 : f32 to vector<2x64xf32>
    %590 = arith.addf %588, %589 : vector<2x64xf32>
    %591 = vector.extract_strided_slice %574 {offsets = [0, 128], sizes = [2, 64], strides = [1, 1]} : vector<2x256xf32> to vector<2x64xf32>
    %592 = math.tanh %591 : vector<2x64xf32>
    %593 = vector.extract_strided_slice %574 {offsets = [0, 192], sizes = [2, 64], strides = [1, 1]} : vector<2x256xf32> to vector<2x64xf32>
    %cst_227 = arith.constant 5.000000e-01 : f32
    %594 = vector.broadcast %cst_227 : f32 to vector<2x64xf32>
    %595 = arith.mulf %594, %593 : vector<2x64xf32>
    %596 = math.tanh %595 : vector<2x64xf32>
    %cst_228 = arith.constant 5.000000e-01 : f32
    %597 = vector.broadcast %cst_228 : f32 to vector<2x64xf32>
    %598 = arith.mulf %597, %596 : vector<2x64xf32>
    %cst_229 = arith.constant 5.000000e-01 : f32
    %599 = vector.broadcast %cst_229 : f32 to vector<2x64xf32>
    %600 = arith.addf %598, %599 : vector<2x64xf32>
    %601 = arith.mulf %590, %492 : vector<2x64xf32>
    %602 = arith.mulf %582, %592 : vector<2x64xf32>
    %603 = arith.addf %601, %602 : vector<2x64xf32>
    %604 = math.tanh %603 : vector<2x64xf32>
    %605 = arith.mulf %600, %604 : vector<2x64xf32>
    %c0_230 = arith.constant 0 : index
    %c0_231 = arith.constant 0 : index
    %606 = vector.load %arg7[%c0_230, %c0_231] : memref<128x256xf32, #tpu.memory_space<vmem>>, vector<64x256xf32>
    %cst_232 = arith.constant dense<0.000000e+00> : vector<2x256xf32>
    %607 = tpu.matmul %494, %606, %cst_232 {dimension_numbers = #tpu.dot_dimension_numbers<[1], [0], [0], [1], [0, 0, 1, 1], [], []>} : vector<2x64xf32>, vector<64x256xf32>, vector<2x256xf32> -> vector<2x256xf32>
    %c64_233 = arith.constant 64 : index
    %c0_234 = arith.constant 0 : index
    %608 = vector.load %arg7[%c64_233, %c0_234] : memref<128x256xf32, #tpu.memory_space<vmem>>, vector<64x256xf32>
    %cst_235 = arith.constant dense<0.000000e+00> : vector<2x256xf32>
    %609 = tpu.matmul %532, %608, %cst_235 {dimension_numbers = #tpu.dot_dimension_numbers<[1], [0], [0], [1], [0, 0, 1, 1], [], []>} : vector<2x64xf32>, vector<64x256xf32>, vector<2x256xf32> -> vector<2x256xf32>
    %610 = arith.addf %607, %609 : vector<2x256xf32>
    %611 = vector.broadcast %5 : vector<1x256xf32> to vector<2x256xf32>
    %612 = arith.addf %610, %611 : vector<2x256xf32>
    %613 = vector.extract_strided_slice %612 {offsets = [0, 0], sizes = [2, 64], strides = [1, 1]} : vector<2x256xf32> to vector<2x64xf32>
    %cst_236 = arith.constant 5.000000e-01 : f32
    %614 = vector.broadcast %cst_236 : f32 to vector<2x64xf32>
    %615 = arith.mulf %614, %613 : vector<2x64xf32>
    %616 = math.tanh %615 : vector<2x64xf32>
    %cst_237 = arith.constant 5.000000e-01 : f32
    %617 = vector.broadcast %cst_237 : f32 to vector<2x64xf32>
    %618 = arith.mulf %617, %616 : vector<2x64xf32>
    %cst_238 = arith.constant 5.000000e-01 : f32
    %619 = vector.broadcast %cst_238 : f32 to vector<2x64xf32>
    %620 = arith.addf %618, %619 : vector<2x64xf32>
    %621 = vector.extract_strided_slice %612 {offsets = [0, 64], sizes = [2, 64], strides = [1, 1]} : vector<2x256xf32> to vector<2x64xf32>
    %cst_239 = arith.constant 5.000000e-01 : f32
    %622 = vector.broadcast %cst_239 : f32 to vector<2x64xf32>
    %623 = arith.mulf %622, %621 : vector<2x64xf32>
    %624 = math.tanh %623 : vector<2x64xf32>
    %cst_240 = arith.constant 5.000000e-01 : f32
    %625 = vector.broadcast %cst_240 : f32 to vector<2x64xf32>
    %626 = arith.mulf %625, %624 : vector<2x64xf32>
    %cst_241 = arith.constant 5.000000e-01 : f32
    %627 = vector.broadcast %cst_241 : f32 to vector<2x64xf32>
    %628 = arith.addf %626, %627 : vector<2x64xf32>
    %629 = vector.extract_strided_slice %612 {offsets = [0, 128], sizes = [2, 64], strides = [1, 1]} : vector<2x256xf32> to vector<2x64xf32>
    %630 = math.tanh %629 : vector<2x64xf32>
    %631 = vector.extract_strided_slice %612 {offsets = [0, 192], sizes = [2, 64], strides = [1, 1]} : vector<2x256xf32> to vector<2x64xf32>
    %cst_242 = arith.constant 5.000000e-01 : f32
    %632 = vector.broadcast %cst_242 : f32 to vector<2x64xf32>
    %633 = arith.mulf %632, %631 : vector<2x64xf32>
    %634 = math.tanh %633 : vector<2x64xf32>
    %cst_243 = arith.constant 5.000000e-01 : f32
    %635 = vector.broadcast %cst_243 : f32 to vector<2x64xf32>
    %636 = arith.mulf %635, %634 : vector<2x64xf32>
    %cst_244 = arith.constant 5.000000e-01 : f32
    %637 = vector.broadcast %cst_244 : f32 to vector<2x64xf32>
    %638 = arith.addf %636, %637 : vector<2x64xf32>
    %639 = arith.mulf %628, %530 : vector<2x64xf32>
    %640 = arith.mulf %620, %630 : vector<2x64xf32>
    %641 = arith.addf %639, %640 : vector<2x64xf32>
    %642 = math.tanh %641 : vector<2x64xf32>
    %643 = arith.mulf %638, %642 : vector<2x64xf32>
    %c0_245 = arith.constant 0 : index
    %c0_246 = arith.constant 0 : index
    %644 = vector.load %arg8[%c0_245, %c0_246] : memref<128x256xf32, #tpu.memory_space<vmem>>, vector<64x256xf32>
    %cst_247 = arith.constant dense<0.000000e+00> : vector<2x256xf32>
    %645 = tpu.matmul %532, %644, %cst_247 {dimension_numbers = #tpu.dot_dimension_numbers<[1], [0], [0], [1], [0, 0, 1, 1], [], []>} : vector<2x64xf32>, vector<64x256xf32>, vector<2x256xf32> -> vector<2x256xf32>
    %c64_248 = arith.constant 64 : index
    %c0_249 = arith.constant 0 : index
    %646 = vector.load %arg8[%c64_248, %c0_249] : memref<128x256xf32, #tpu.memory_space<vmem>>, vector<64x256xf32>
    %cst_250 = arith.constant dense<0.000000e+00> : vector<2x256xf32>
    %647 = tpu.matmul %570, %646, %cst_250 {dimension_numbers = #tpu.dot_dimension_numbers<[1], [0], [0], [1], [0, 0, 1, 1], [], []>} : vector<2x64xf32>, vector<64x256xf32>, vector<2x256xf32> -> vector<2x256xf32>
    %648 = arith.addf %645, %647 : vector<2x256xf32>
    %649 = vector.broadcast %6 : vector<1x256xf32> to vector<2x256xf32>
    %650 = arith.addf %648, %649 : vector<2x256xf32>
    %651 = vector.extract_strided_slice %650 {offsets = [0, 0], sizes = [2, 64], strides = [1, 1]} : vector<2x256xf32> to vector<2x64xf32>
    %cst_251 = arith.constant 5.000000e-01 : f32
    %652 = vector.broadcast %cst_251 : f32 to vector<2x64xf32>
    %653 = arith.mulf %652, %651 : vector<2x64xf32>
    %654 = math.tanh %653 : vector<2x64xf32>
    %cst_252 = arith.constant 5.000000e-01 : f32
    %655 = vector.broadcast %cst_252 : f32 to vector<2x64xf32>
    %656 = arith.mulf %655, %654 : vector<2x64xf32>
    %cst_253 = arith.constant 5.000000e-01 : f32
    %657 = vector.broadcast %cst_253 : f32 to vector<2x64xf32>
    %658 = arith.addf %656, %657 : vector<2x64xf32>
    %659 = vector.extract_strided_slice %650 {offsets = [0, 64], sizes = [2, 64], strides = [1, 1]} : vector<2x256xf32> to vector<2x64xf32>
    %cst_254 = arith.constant 5.000000e-01 : f32
    %660 = vector.broadcast %cst_254 : f32 to vector<2x64xf32>
    %661 = arith.mulf %660, %659 : vector<2x64xf32>
    %662 = math.tanh %661 : vector<2x64xf32>
    %cst_255 = arith.constant 5.000000e-01 : f32
    %663 = vector.broadcast %cst_255 : f32 to vector<2x64xf32>
    %664 = arith.mulf %663, %662 : vector<2x64xf32>
    %cst_256 = arith.constant 5.000000e-01 : f32
    %665 = vector.broadcast %cst_256 : f32 to vector<2x64xf32>
    %666 = arith.addf %664, %665 : vector<2x64xf32>
    %667 = vector.extract_strided_slice %650 {offsets = [0, 128], sizes = [2, 64], strides = [1, 1]} : vector<2x256xf32> to vector<2x64xf32>
    %668 = math.tanh %667 : vector<2x64xf32>
    %669 = vector.extract_strided_slice %650 {offsets = [0, 192], sizes = [2, 64], strides = [1, 1]} : vector<2x256xf32> to vector<2x64xf32>
    %cst_257 = arith.constant 5.000000e-01 : f32
    %670 = vector.broadcast %cst_257 : f32 to vector<2x64xf32>
    %671 = arith.mulf %670, %669 : vector<2x64xf32>
    %672 = math.tanh %671 : vector<2x64xf32>
    %cst_258 = arith.constant 5.000000e-01 : f32
    %673 = vector.broadcast %cst_258 : f32 to vector<2x64xf32>
    %674 = arith.mulf %673, %672 : vector<2x64xf32>
    %cst_259 = arith.constant 5.000000e-01 : f32
    %675 = vector.broadcast %cst_259 : f32 to vector<2x64xf32>
    %676 = arith.addf %674, %675 : vector<2x64xf32>
    %677 = arith.mulf %666, %568 : vector<2x64xf32>
    %678 = arith.mulf %658, %668 : vector<2x64xf32>
    %679 = arith.addf %677, %678 : vector<2x64xf32>
    %680 = math.tanh %679 : vector<2x64xf32>
    %681 = arith.mulf %676, %680 : vector<2x64xf32>
    %682 = vector.extract_strided_slice %13 {offsets = [14, 0], sizes = [2, 256], strides = [1, 1]} : vector<16x256xf32> to vector<2x256xf32>
    %c0_260 = arith.constant 0 : index
    %c0_261 = arith.constant 0 : index
    %683 = vector.load %arg2[%c0_260, %c0_261] : memref<64x256xf32, #tpu.memory_space<vmem>>, vector<64x256xf32>
    %cst_262 = arith.constant dense<0.000000e+00> : vector<2x256xf32>
    %684 = tpu.matmul %605, %683, %cst_262 {dimension_numbers = #tpu.dot_dimension_numbers<[1], [0], [0], [1], [0, 0, 1, 1], [], []>} : vector<2x64xf32>, vector<64x256xf32>, vector<2x256xf32> -> vector<2x256xf32>
    %685 = arith.addf %682, %684 : vector<2x256xf32>
    %686 = vector.extract_strided_slice %685 {offsets = [0, 0], sizes = [2, 64], strides = [1, 1]} : vector<2x256xf32> to vector<2x64xf32>
    %cst_263 = arith.constant 5.000000e-01 : f32
    %687 = vector.broadcast %cst_263 : f32 to vector<2x64xf32>
    %688 = arith.mulf %687, %686 : vector<2x64xf32>
    %689 = math.tanh %688 : vector<2x64xf32>
    %cst_264 = arith.constant 5.000000e-01 : f32
    %690 = vector.broadcast %cst_264 : f32 to vector<2x64xf32>
    %691 = arith.mulf %690, %689 : vector<2x64xf32>
    %cst_265 = arith.constant 5.000000e-01 : f32
    %692 = vector.broadcast %cst_265 : f32 to vector<2x64xf32>
    %693 = arith.addf %691, %692 : vector<2x64xf32>
    %694 = vector.extract_strided_slice %685 {offsets = [0, 64], sizes = [2, 64], strides = [1, 1]} : vector<2x256xf32> to vector<2x64xf32>
    %cst_266 = arith.constant 5.000000e-01 : f32
    %695 = vector.broadcast %cst_266 : f32 to vector<2x64xf32>
    %696 = arith.mulf %695, %694 : vector<2x64xf32>
    %697 = math.tanh %696 : vector<2x64xf32>
    %cst_267 = arith.constant 5.000000e-01 : f32
    %698 = vector.broadcast %cst_267 : f32 to vector<2x64xf32>
    %699 = arith.mulf %698, %697 : vector<2x64xf32>
    %cst_268 = arith.constant 5.000000e-01 : f32
    %700 = vector.broadcast %cst_268 : f32 to vector<2x64xf32>
    %701 = arith.addf %699, %700 : vector<2x64xf32>
    %702 = vector.extract_strided_slice %685 {offsets = [0, 128], sizes = [2, 64], strides = [1, 1]} : vector<2x256xf32> to vector<2x64xf32>
    %703 = math.tanh %702 : vector<2x64xf32>
    %704 = vector.extract_strided_slice %685 {offsets = [0, 192], sizes = [2, 64], strides = [1, 1]} : vector<2x256xf32> to vector<2x64xf32>
    %cst_269 = arith.constant 5.000000e-01 : f32
    %705 = vector.broadcast %cst_269 : f32 to vector<2x64xf32>
    %706 = arith.mulf %705, %704 : vector<2x64xf32>
    %707 = math.tanh %706 : vector<2x64xf32>
    %cst_270 = arith.constant 5.000000e-01 : f32
    %708 = vector.broadcast %cst_270 : f32 to vector<2x64xf32>
    %709 = arith.mulf %708, %707 : vector<2x64xf32>
    %cst_271 = arith.constant 5.000000e-01 : f32
    %710 = vector.broadcast %cst_271 : f32 to vector<2x64xf32>
    %711 = arith.addf %709, %710 : vector<2x64xf32>
    %712 = arith.mulf %701, %603 : vector<2x64xf32>
    %713 = arith.mulf %693, %703 : vector<2x64xf32>
    %714 = arith.addf %712, %713 : vector<2x64xf32>
    %715 = math.tanh %714 : vector<2x64xf32>
    %716 = arith.mulf %711, %715 : vector<2x64xf32>
    %c0_272 = arith.constant 0 : index
    %c0_273 = arith.constant 0 : index
    %717 = vector.load %arg7[%c0_272, %c0_273] : memref<128x256xf32, #tpu.memory_space<vmem>>, vector<64x256xf32>
    %cst_274 = arith.constant dense<0.000000e+00> : vector<2x256xf32>
    %718 = tpu.matmul %605, %717, %cst_274 {dimension_numbers = #tpu.dot_dimension_numbers<[1], [0], [0], [1], [0, 0, 1, 1], [], []>} : vector<2x64xf32>, vector<64x256xf32>, vector<2x256xf32> -> vector<2x256xf32>
    %c64_275 = arith.constant 64 : index
    %c0_276 = arith.constant 0 : index
    %719 = vector.load %arg7[%c64_275, %c0_276] : memref<128x256xf32, #tpu.memory_space<vmem>>, vector<64x256xf32>
    %cst_277 = arith.constant dense<0.000000e+00> : vector<2x256xf32>
    %720 = tpu.matmul %643, %719, %cst_277 {dimension_numbers = #tpu.dot_dimension_numbers<[1], [0], [0], [1], [0, 0, 1, 1], [], []>} : vector<2x64xf32>, vector<64x256xf32>, vector<2x256xf32> -> vector<2x256xf32>
    %721 = arith.addf %718, %720 : vector<2x256xf32>
    %722 = vector.broadcast %5 : vector<1x256xf32> to vector<2x256xf32>
    %723 = arith.addf %721, %722 : vector<2x256xf32>
    %724 = vector.extract_strided_slice %723 {offsets = [0, 0], sizes = [2, 64], strides = [1, 1]} : vector<2x256xf32> to vector<2x64xf32>
    %cst_278 = arith.constant 5.000000e-01 : f32
    %725 = vector.broadcast %cst_278 : f32 to vector<2x64xf32>
    %726 = arith.mulf %725, %724 : vector<2x64xf32>
    %727 = math.tanh %726 : vector<2x64xf32>
    %cst_279 = arith.constant 5.000000e-01 : f32
    %728 = vector.broadcast %cst_279 : f32 to vector<2x64xf32>
    %729 = arith.mulf %728, %727 : vector<2x64xf32>
    %cst_280 = arith.constant 5.000000e-01 : f32
    %730 = vector.broadcast %cst_280 : f32 to vector<2x64xf32>
    %731 = arith.addf %729, %730 : vector<2x64xf32>
    %732 = vector.extract_strided_slice %723 {offsets = [0, 64], sizes = [2, 64], strides = [1, 1]} : vector<2x256xf32> to vector<2x64xf32>
    %cst_281 = arith.constant 5.000000e-01 : f32
    %733 = vector.broadcast %cst_281 : f32 to vector<2x64xf32>
    %734 = arith.mulf %733, %732 : vector<2x64xf32>
    %735 = math.tanh %734 : vector<2x64xf32>
    %cst_282 = arith.constant 5.000000e-01 : f32
    %736 = vector.broadcast %cst_282 : f32 to vector<2x64xf32>
    %737 = arith.mulf %736, %735 : vector<2x64xf32>
    %cst_283 = arith.constant 5.000000e-01 : f32
    %738 = vector.broadcast %cst_283 : f32 to vector<2x64xf32>
    %739 = arith.addf %737, %738 : vector<2x64xf32>
    %740 = vector.extract_strided_slice %723 {offsets = [0, 128], sizes = [2, 64], strides = [1, 1]} : vector<2x256xf32> to vector<2x64xf32>
    %741 = math.tanh %740 : vector<2x64xf32>
    %742 = vector.extract_strided_slice %723 {offsets = [0, 192], sizes = [2, 64], strides = [1, 1]} : vector<2x256xf32> to vector<2x64xf32>
    %cst_284 = arith.constant 5.000000e-01 : f32
    %743 = vector.broadcast %cst_284 : f32 to vector<2x64xf32>
    %744 = arith.mulf %743, %742 : vector<2x64xf32>
    %745 = math.tanh %744 : vector<2x64xf32>
    %cst_285 = arith.constant 5.000000e-01 : f32
    %746 = vector.broadcast %cst_285 : f32 to vector<2x64xf32>
    %747 = arith.mulf %746, %745 : vector<2x64xf32>
    %cst_286 = arith.constant 5.000000e-01 : f32
    %748 = vector.broadcast %cst_286 : f32 to vector<2x64xf32>
    %749 = arith.addf %747, %748 : vector<2x64xf32>
    %750 = arith.mulf %739, %641 : vector<2x64xf32>
    %751 = arith.mulf %731, %741 : vector<2x64xf32>
    %752 = arith.addf %750, %751 : vector<2x64xf32>
    %753 = math.tanh %752 : vector<2x64xf32>
    %754 = arith.mulf %749, %753 : vector<2x64xf32>
    %c0_287 = arith.constant 0 : index
    %c0_288 = arith.constant 0 : index
    %755 = vector.load %arg8[%c0_287, %c0_288] : memref<128x256xf32, #tpu.memory_space<vmem>>, vector<64x256xf32>
    %cst_289 = arith.constant dense<0.000000e+00> : vector<2x256xf32>
    %756 = tpu.matmul %643, %755, %cst_289 {dimension_numbers = #tpu.dot_dimension_numbers<[1], [0], [0], [1], [0, 0, 1, 1], [], []>} : vector<2x64xf32>, vector<64x256xf32>, vector<2x256xf32> -> vector<2x256xf32>
    %c64_290 = arith.constant 64 : index
    %c0_291 = arith.constant 0 : index
    %757 = vector.load %arg8[%c64_290, %c0_291] : memref<128x256xf32, #tpu.memory_space<vmem>>, vector<64x256xf32>
    %cst_292 = arith.constant dense<0.000000e+00> : vector<2x256xf32>
    %758 = tpu.matmul %681, %757, %cst_292 {dimension_numbers = #tpu.dot_dimension_numbers<[1], [0], [0], [1], [0, 0, 1, 1], [], []>} : vector<2x64xf32>, vector<64x256xf32>, vector<2x256xf32> -> vector<2x256xf32>
    %759 = arith.addf %756, %758 : vector<2x256xf32>
    %760 = vector.broadcast %6 : vector<1x256xf32> to vector<2x256xf32>
    %761 = arith.addf %759, %760 : vector<2x256xf32>
    %762 = vector.extract_strided_slice %761 {offsets = [0, 0], sizes = [2, 64], strides = [1, 1]} : vector<2x256xf32> to vector<2x64xf32>
    %cst_293 = arith.constant 5.000000e-01 : f32
    %763 = vector.broadcast %cst_293 : f32 to vector<2x64xf32>
    %764 = arith.mulf %763, %762 : vector<2x64xf32>
    %765 = math.tanh %764 : vector<2x64xf32>
    %cst_294 = arith.constant 5.000000e-01 : f32
    %766 = vector.broadcast %cst_294 : f32 to vector<2x64xf32>
    %767 = arith.mulf %766, %765 : vector<2x64xf32>
    %cst_295 = arith.constant 5.000000e-01 : f32
    %768 = vector.broadcast %cst_295 : f32 to vector<2x64xf32>
    %769 = arith.addf %767, %768 : vector<2x64xf32>
    %770 = vector.extract_strided_slice %761 {offsets = [0, 64], sizes = [2, 64], strides = [1, 1]} : vector<2x256xf32> to vector<2x64xf32>
    %cst_296 = arith.constant 5.000000e-01 : f32
    %771 = vector.broadcast %cst_296 : f32 to vector<2x64xf32>
    %772 = arith.mulf %771, %770 : vector<2x64xf32>
    %773 = math.tanh %772 : vector<2x64xf32>
    %cst_297 = arith.constant 5.000000e-01 : f32
    %774 = vector.broadcast %cst_297 : f32 to vector<2x64xf32>
    %775 = arith.mulf %774, %773 : vector<2x64xf32>
    %cst_298 = arith.constant 5.000000e-01 : f32
    %776 = vector.broadcast %cst_298 : f32 to vector<2x64xf32>
    %777 = arith.addf %775, %776 : vector<2x64xf32>
    %778 = vector.extract_strided_slice %761 {offsets = [0, 128], sizes = [2, 64], strides = [1, 1]} : vector<2x256xf32> to vector<2x64xf32>
    %779 = math.tanh %778 : vector<2x64xf32>
    %780 = vector.extract_strided_slice %761 {offsets = [0, 192], sizes = [2, 64], strides = [1, 1]} : vector<2x256xf32> to vector<2x64xf32>
    %cst_299 = arith.constant 5.000000e-01 : f32
    %781 = vector.broadcast %cst_299 : f32 to vector<2x64xf32>
    %782 = arith.mulf %781, %780 : vector<2x64xf32>
    %783 = math.tanh %782 : vector<2x64xf32>
    %cst_300 = arith.constant 5.000000e-01 : f32
    %784 = vector.broadcast %cst_300 : f32 to vector<2x64xf32>
    %785 = arith.mulf %784, %783 : vector<2x64xf32>
    %cst_301 = arith.constant 5.000000e-01 : f32
    %786 = vector.broadcast %cst_301 : f32 to vector<2x64xf32>
    %787 = arith.addf %785, %786 : vector<2x64xf32>
    %788 = arith.mulf %777, %679 : vector<2x64xf32>
    %789 = arith.mulf %769, %779 : vector<2x64xf32>
    %790 = arith.addf %788, %789 : vector<2x64xf32>
    %791 = math.tanh %790 : vector<2x64xf32>
    %792 = arith.mulf %787, %791 : vector<2x64xf32>
    %c0_302 = arith.constant 0 : index
    %c0_303 = arith.constant 0 : index
    %793 = vector.load %arg7[%c0_302, %c0_303] : memref<128x256xf32, #tpu.memory_space<vmem>>, vector<64x256xf32>
    %cst_304 = arith.constant dense<0.000000e+00> : vector<2x256xf32>
    %794 = tpu.matmul %716, %793, %cst_304 {dimension_numbers = #tpu.dot_dimension_numbers<[1], [0], [0], [1], [0, 0, 1, 1], [], []>} : vector<2x64xf32>, vector<64x256xf32>, vector<2x256xf32> -> vector<2x256xf32>
    %c64_305 = arith.constant 64 : index
    %c0_306 = arith.constant 0 : index
    %795 = vector.load %arg7[%c64_305, %c0_306] : memref<128x256xf32, #tpu.memory_space<vmem>>, vector<64x256xf32>
    %cst_307 = arith.constant dense<0.000000e+00> : vector<2x256xf32>
    %796 = tpu.matmul %754, %795, %cst_307 {dimension_numbers = #tpu.dot_dimension_numbers<[1], [0], [0], [1], [0, 0, 1, 1], [], []>} : vector<2x64xf32>, vector<64x256xf32>, vector<2x256xf32> -> vector<2x256xf32>
    %797 = arith.addf %794, %796 : vector<2x256xf32>
    %798 = vector.broadcast %5 : vector<1x256xf32> to vector<2x256xf32>
    %799 = arith.addf %797, %798 : vector<2x256xf32>
    %800 = vector.extract_strided_slice %799 {offsets = [0, 0], sizes = [2, 64], strides = [1, 1]} : vector<2x256xf32> to vector<2x64xf32>
    %cst_308 = arith.constant 5.000000e-01 : f32
    %801 = vector.broadcast %cst_308 : f32 to vector<2x64xf32>
    %802 = arith.mulf %801, %800 : vector<2x64xf32>
    %803 = math.tanh %802 : vector<2x64xf32>
    %cst_309 = arith.constant 5.000000e-01 : f32
    %804 = vector.broadcast %cst_309 : f32 to vector<2x64xf32>
    %805 = arith.mulf %804, %803 : vector<2x64xf32>
    %cst_310 = arith.constant 5.000000e-01 : f32
    %806 = vector.broadcast %cst_310 : f32 to vector<2x64xf32>
    %807 = arith.addf %805, %806 : vector<2x64xf32>
    %808 = vector.extract_strided_slice %799 {offsets = [0, 64], sizes = [2, 64], strides = [1, 1]} : vector<2x256xf32> to vector<2x64xf32>
    %cst_311 = arith.constant 5.000000e-01 : f32
    %809 = vector.broadcast %cst_311 : f32 to vector<2x64xf32>
    %810 = arith.mulf %809, %808 : vector<2x64xf32>
    %811 = math.tanh %810 : vector<2x64xf32>
    %cst_312 = arith.constant 5.000000e-01 : f32
    %812 = vector.broadcast %cst_312 : f32 to vector<2x64xf32>
    %813 = arith.mulf %812, %811 : vector<2x64xf32>
    %cst_313 = arith.constant 5.000000e-01 : f32
    %814 = vector.broadcast %cst_313 : f32 to vector<2x64xf32>
    %815 = arith.addf %813, %814 : vector<2x64xf32>
    %816 = vector.extract_strided_slice %799 {offsets = [0, 128], sizes = [2, 64], strides = [1, 1]} : vector<2x256xf32> to vector<2x64xf32>
    %817 = math.tanh %816 : vector<2x64xf32>
    %818 = vector.extract_strided_slice %799 {offsets = [0, 192], sizes = [2, 64], strides = [1, 1]} : vector<2x256xf32> to vector<2x64xf32>
    %cst_314 = arith.constant 5.000000e-01 : f32
    %819 = vector.broadcast %cst_314 : f32 to vector<2x64xf32>
    %820 = arith.mulf %819, %818 : vector<2x64xf32>
    %821 = math.tanh %820 : vector<2x64xf32>
    %cst_315 = arith.constant 5.000000e-01 : f32
    %822 = vector.broadcast %cst_315 : f32 to vector<2x64xf32>
    %823 = arith.mulf %822, %821 : vector<2x64xf32>
    %cst_316 = arith.constant 5.000000e-01 : f32
    %824 = vector.broadcast %cst_316 : f32 to vector<2x64xf32>
    %825 = arith.addf %823, %824 : vector<2x64xf32>
    %826 = arith.mulf %815, %752 : vector<2x64xf32>
    %827 = arith.mulf %807, %817 : vector<2x64xf32>
    %828 = arith.addf %826, %827 : vector<2x64xf32>
    %829 = math.tanh %828 : vector<2x64xf32>
    %830 = arith.mulf %825, %829 : vector<2x64xf32>
    %c0_317 = arith.constant 0 : index
    %c0_318 = arith.constant 0 : index
    %831 = vector.load %arg8[%c0_317, %c0_318] : memref<128x256xf32, #tpu.memory_space<vmem>>, vector<64x256xf32>
    %cst_319 = arith.constant dense<0.000000e+00> : vector<2x256xf32>
    %832 = tpu.matmul %754, %831, %cst_319 {dimension_numbers = #tpu.dot_dimension_numbers<[1], [0], [0], [1], [0, 0, 1, 1], [], []>} : vector<2x64xf32>, vector<64x256xf32>, vector<2x256xf32> -> vector<2x256xf32>
    %c64_320 = arith.constant 64 : index
    %c0_321 = arith.constant 0 : index
    %833 = vector.load %arg8[%c64_320, %c0_321] : memref<128x256xf32, #tpu.memory_space<vmem>>, vector<64x256xf32>
    %cst_322 = arith.constant dense<0.000000e+00> : vector<2x256xf32>
    %834 = tpu.matmul %792, %833, %cst_322 {dimension_numbers = #tpu.dot_dimension_numbers<[1], [0], [0], [1], [0, 0, 1, 1], [], []>} : vector<2x64xf32>, vector<64x256xf32>, vector<2x256xf32> -> vector<2x256xf32>
    %835 = arith.addf %832, %834 : vector<2x256xf32>
    %836 = vector.broadcast %6 : vector<1x256xf32> to vector<2x256xf32>
    %837 = arith.addf %835, %836 : vector<2x256xf32>
    %838 = vector.extract_strided_slice %837 {offsets = [0, 0], sizes = [2, 64], strides = [1, 1]} : vector<2x256xf32> to vector<2x64xf32>
    %cst_323 = arith.constant 5.000000e-01 : f32
    %839 = vector.broadcast %cst_323 : f32 to vector<2x64xf32>
    %840 = arith.mulf %839, %838 : vector<2x64xf32>
    %841 = math.tanh %840 : vector<2x64xf32>
    %cst_324 = arith.constant 5.000000e-01 : f32
    %842 = vector.broadcast %cst_324 : f32 to vector<2x64xf32>
    %843 = arith.mulf %842, %841 : vector<2x64xf32>
    %cst_325 = arith.constant 5.000000e-01 : f32
    %844 = vector.broadcast %cst_325 : f32 to vector<2x64xf32>
    %845 = arith.addf %843, %844 : vector<2x64xf32>
    %846 = vector.extract_strided_slice %837 {offsets = [0, 64], sizes = [2, 64], strides = [1, 1]} : vector<2x256xf32> to vector<2x64xf32>
    %cst_326 = arith.constant 5.000000e-01 : f32
    %847 = vector.broadcast %cst_326 : f32 to vector<2x64xf32>
    %848 = arith.mulf %847, %846 : vector<2x64xf32>
    %849 = math.tanh %848 : vector<2x64xf32>
    %cst_327 = arith.constant 5.000000e-01 : f32
    %850 = vector.broadcast %cst_327 : f32 to vector<2x64xf32>
    %851 = arith.mulf %850, %849 : vector<2x64xf32>
    %cst_328 = arith.constant 5.000000e-01 : f32
    %852 = vector.broadcast %cst_328 : f32 to vector<2x64xf32>
    %853 = arith.addf %851, %852 : vector<2x64xf32>
    %854 = vector.extract_strided_slice %837 {offsets = [0, 128], sizes = [2, 64], strides = [1, 1]} : vector<2x256xf32> to vector<2x64xf32>
    %855 = math.tanh %854 : vector<2x64xf32>
    %856 = vector.extract_strided_slice %837 {offsets = [0, 192], sizes = [2, 64], strides = [1, 1]} : vector<2x256xf32> to vector<2x64xf32>
    %cst_329 = arith.constant 5.000000e-01 : f32
    %857 = vector.broadcast %cst_329 : f32 to vector<2x64xf32>
    %858 = arith.mulf %857, %856 : vector<2x64xf32>
    %859 = math.tanh %858 : vector<2x64xf32>
    %cst_330 = arith.constant 5.000000e-01 : f32
    %860 = vector.broadcast %cst_330 : f32 to vector<2x64xf32>
    %861 = arith.mulf %860, %859 : vector<2x64xf32>
    %cst_331 = arith.constant 5.000000e-01 : f32
    %862 = vector.broadcast %cst_331 : f32 to vector<2x64xf32>
    %863 = arith.addf %861, %862 : vector<2x64xf32>
    %864 = arith.mulf %853, %790 : vector<2x64xf32>
    %865 = arith.mulf %845, %855 : vector<2x64xf32>
    %866 = arith.addf %864, %865 : vector<2x64xf32>
    %867 = math.tanh %866 : vector<2x64xf32>
    %868 = arith.mulf %863, %867 : vector<2x64xf32>
    %c0_332 = arith.constant 0 : index
    %c0_333 = arith.constant 0 : index
    %869 = vector.load %arg8[%c0_332, %c0_333] : memref<128x256xf32, #tpu.memory_space<vmem>>, vector<64x256xf32>
    %cst_334 = arith.constant dense<0.000000e+00> : vector<2x256xf32>
    %870 = tpu.matmul %830, %869, %cst_334 {dimension_numbers = #tpu.dot_dimension_numbers<[1], [0], [0], [1], [0, 0, 1, 1], [], []>} : vector<2x64xf32>, vector<64x256xf32>, vector<2x256xf32> -> vector<2x256xf32>
    %c64_335 = arith.constant 64 : index
    %c0_336 = arith.constant 0 : index
    %871 = vector.load %arg8[%c64_335, %c0_336] : memref<128x256xf32, #tpu.memory_space<vmem>>, vector<64x256xf32>
    %cst_337 = arith.constant dense<0.000000e+00> : vector<2x256xf32>
    %872 = tpu.matmul %868, %871, %cst_337 {dimension_numbers = #tpu.dot_dimension_numbers<[1], [0], [0], [1], [0, 0, 1, 1], [], []>} : vector<2x64xf32>, vector<64x256xf32>, vector<2x256xf32> -> vector<2x256xf32>
    %873 = arith.addf %870, %872 : vector<2x256xf32>
    %874 = vector.broadcast %6 : vector<1x256xf32> to vector<2x256xf32>
    %875 = arith.addf %873, %874 : vector<2x256xf32>
    %876 = vector.extract_strided_slice %875 {offsets = [0, 0], sizes = [2, 64], strides = [1, 1]} : vector<2x256xf32> to vector<2x64xf32>
    %cst_338 = arith.constant 5.000000e-01 : f32
    %877 = vector.broadcast %cst_338 : f32 to vector<2x64xf32>
    %878 = arith.mulf %877, %876 : vector<2x64xf32>
    %879 = math.tanh %878 : vector<2x64xf32>
    %cst_339 = arith.constant 5.000000e-01 : f32
    %880 = vector.broadcast %cst_339 : f32 to vector<2x64xf32>
    %881 = arith.mulf %880, %879 : vector<2x64xf32>
    %cst_340 = arith.constant 5.000000e-01 : f32
    %882 = vector.broadcast %cst_340 : f32 to vector<2x64xf32>
    %883 = arith.addf %881, %882 : vector<2x64xf32>
    %884 = vector.extract_strided_slice %875 {offsets = [0, 64], sizes = [2, 64], strides = [1, 1]} : vector<2x256xf32> to vector<2x64xf32>
    %cst_341 = arith.constant 5.000000e-01 : f32
    %885 = vector.broadcast %cst_341 : f32 to vector<2x64xf32>
    %886 = arith.mulf %885, %884 : vector<2x64xf32>
    %887 = math.tanh %886 : vector<2x64xf32>
    %cst_342 = arith.constant 5.000000e-01 : f32
    %888 = vector.broadcast %cst_342 : f32 to vector<2x64xf32>
    %889 = arith.mulf %888, %887 : vector<2x64xf32>
    %cst_343 = arith.constant 5.000000e-01 : f32
    %890 = vector.broadcast %cst_343 : f32 to vector<2x64xf32>
    %891 = arith.addf %889, %890 : vector<2x64xf32>
    %892 = vector.extract_strided_slice %875 {offsets = [0, 128], sizes = [2, 64], strides = [1, 1]} : vector<2x256xf32> to vector<2x64xf32>
    %893 = math.tanh %892 : vector<2x64xf32>
    %894 = vector.extract_strided_slice %875 {offsets = [0, 192], sizes = [2, 64], strides = [1, 1]} : vector<2x256xf32> to vector<2x64xf32>
    %cst_344 = arith.constant 5.000000e-01 : f32
    %895 = vector.broadcast %cst_344 : f32 to vector<2x64xf32>
    %896 = arith.mulf %895, %894 : vector<2x64xf32>
    %897 = math.tanh %896 : vector<2x64xf32>
    %cst_345 = arith.constant 5.000000e-01 : f32
    %898 = vector.broadcast %cst_345 : f32 to vector<2x64xf32>
    %899 = arith.mulf %898, %897 : vector<2x64xf32>
    %cst_346 = arith.constant 5.000000e-01 : f32
    %900 = vector.broadcast %cst_346 : f32 to vector<2x64xf32>
    %901 = arith.addf %899, %900 : vector<2x64xf32>
    %902 = arith.mulf %891, %866 : vector<2x64xf32>
    %903 = arith.mulf %883, %893 : vector<2x64xf32>
    %904 = arith.addf %902, %903 : vector<2x64xf32>
    %905 = math.tanh %904 : vector<2x64xf32>
    %906 = arith.mulf %901, %905 : vector<2x64xf32>
    %907 = vector.broadcast %7 : vector<1x64xf32> to vector<2x64xf32>
    %908 = arith.mulf %906, %907 : vector<2x64xf32>
    %cst_347 = arith.constant dense<0.000000e+00> : vector<2xf32>
    %909 = vector.multi_reduction <add>, %908, %cst_347 [1] : vector<2x64xf32> to vector<2xf32>
    %910 = vector.shape_cast %909 : vector<2xf32> to vector<2x1xf32>
    %911 = vector.broadcast %8 : vector<1x1xf32> to vector<2x1xf32>
    %912 = arith.addf %910, %911 : vector<2x1xf32>
    %c0_348 = arith.constant 0 : index
    %c0_349 = arith.constant 0 : index
    %913 = vector.load %arg6[%c0_348, %c0_349] : memref<2x1xf32, #tpu.memory_space<vmem>>, vector<2x1xf32>
    tpu.vector_store %arg6[%c0_348, %c0_349], %912 {strides = array<i32>} : memref<2x1xf32, #tpu.memory_space<vmem>>, vector<2x1xf32>,
    return
  }
}

</mosaic_0001>

<llo_original>
// kernel: lstm_forward.1
$region0: #{lstm_forward.1}
  #allocation0 [shape = 'u32[]', space=smem, size = 0x4, offset = 0x4, fixed_abs, tag = 'smem constant byte address 0x4 - core index']
  #allocation1 [shape = 'u32[144,128]{1,0:T(1,128)}', space=vmem, size = 0x12000, scoped, tag = 'internal scratch']
  #allocation2 [shape = 'f32[128,256]{1,0:T(8,128)}', space=vmem, size = 0x20000, scoped, tag = 'scratch operand']
  #allocation3 [shape = 'f32[128,256]{1,0:T(8,128)}', space=vmem, size = 0x20000, scoped, tag = 'scratch operand']
  #allocation4 [shape = 's32[2]{0}', space=sflag, size = 0x8, scoped, tag = 'scratch operand']
  #allocation7 [shape = 's32[]', space=sflag, size = 0x4, offset = 0, fixed_abs, tag = 'sflag constant byte address 0x0 - dummy sync flag']
  #allocation8 [shape = 's32[]', space=sflag, size = 0x4, offset = 0, fixed_abs, tag = 'sflag constant byte address 0x0 - dummy sync flag']
  #allocation9 [shape = 'u32[]', space=smem, size = 0x4, offset = 0x44, fixed_abs, tag = 'smem constant byte address 0x44 - assertion arg 0']
  #allocation10 [shape = 'u32[]', space=smem, size = 0x4, offset = 0x48, fixed_abs, tag = 'smem constant byte address 0x48 - assertion arg 1']
  #allocation11 [shape = 's32[]', space=sflag, size = 0x4, offset = 0, fixed_abs, tag = 'sflag constant byte address 0x0 - dummy sync flag']
  #allocation12 [shape = 's32[]', space=sflag, size = 0x4, offset = 0, fixed_abs, tag = 'sflag constant byte address 0x0 - dummy sync flag']
  %s0 = inlined_call_operand.vmem [shape: f32[16,8], index: 0, kind: input, shape index: {}]
  %s1 = inlined_call_operand.vmem [shape: f32[8,256], index: 1, kind: input, shape index: {}]
  %s2 = inlined_call_operand.hbm [shape: f32[64,256], index: 2, kind: input, shape index: {}]
  %s3 = inlined_call_operand.vmem [shape: f32[8,256], index: 3, kind: input, shape index: {}]
  %s4 = inlined_call_operand.hbm [shape: f32[128,256], index: 4, kind: input, shape index: {}]
  %s5 = inlined_call_operand.hbm [shape: f32[128,256], index: 5, kind: input, shape index: {}]
  %s6 = inlined_call_operand.vmem [shape: f32[2,1], index: 6, kind: output, shape index: {}]
  %s7 = sld [smem:[#allocation0]]
  $region38: #{lstm_forward.1} parent=0
    _
  %s9 = ssub.s32 1, %s7
  %s10 = scalar_select 0, %s9, %s7
  $region1: #{lstm_forward.1} parent=0
    #allocation5 [shape = 'u8[65536]{0}', space=vmem, size = 0x10000, scoped, tag = 'input window, operand 2, single buffered']
    #allocation6 [shape = 's32[1]{0}', space=sflag, size = 0x4, scoped, tag = 'scoped memory for lstm_forward.1']
    %11 = vsyncpa [#allocation6], 0
    // Predicated region
    $region2: #{lstm_forward.1} parent=1 // pred_check
      _
    $region3: #{lstm_forward.1} parent=1 // pred_check_branch
      %13 = sbr.rel (0) target = $region5
    $region4: #{lstm_forward.1} parent=1 // pred_region
      _
    $region5: #{lstm_forward.1} parent=1 // pred_fallthru
      _
    // Predicated region
    $region6: #{lstm_forward.1} parent=1 // pred_check
      _
    $region7: #{lstm_forward.1} parent=1 // pred_check_branch
      %15 = sbr.rel (0) target = $region9
    $region8: #{lstm_forward.1} parent=1 // pred_region
      _
    $region9: #{lstm_forward.1} parent=1 // pred_fallthru
      _
    // Predicated region
    $region10: #{lstm_forward.1} parent=1 // pred_check
      _
    $region11: #{lstm_forward.1} parent=1 // pred_check_branch
      %17 = sbr.rel (0) target = $region13
    $region12: #{lstm_forward.1} parent=1 // pred_region
      %s19 = ssub.s32 2048, 2048
      %20 = vsyncadd [#allocation6], %s19
      %s21 = sshll.u32 [#allocation5], 4
      %s22 = int_to_ptr.vmem [resolvable:$true] %s21
      %27 = dma.hbm_to_vmem [thread:$0]  %s2, 2048, %s22, [#allocation6], 256, 256, 16
    $region13: #{lstm_forward.1} parent=1 // pred_fallthru
      _
    // Predicated region
    $region14: #{lstm_forward.1} parent=1 // pred_check
      _
    $region15: #{lstm_forward.1} parent=1 // pred_check_branch
      %29 = sbr.rel (0) target = $region17
    $region16: #{lstm_forward.1} parent=1 // pred_region
      _
    $region17: #{lstm_forward.1} parent=1 // pred_fallthru
      _
    // Predicated region
    $region18: #{lstm_forward.1} parent=1 // pred_check
      _
    $region19: #{lstm_forward.1} parent=1 // pred_check_branch
      %31 = sbr.rel (0) target = $region21
    $region20: #{lstm_forward.1} parent=1 // pred_region
      %32 = dma.done [#allocation6], 2048
    $region21: #{lstm_forward.1} parent=1 // pred_fallthru
      _
    // Predicated region
    $region22: #{lstm_forward.1} parent=1 // pred_check
      _
    $region23: #{lstm_forward.1} parent=1 // pred_check_branch
      %34 = sbr.rel target = $region25
    $region24: #{lstm_forward.1} parent=1 // pred_region
      %35 = sst [smem:[#allocation9]] [#allocation8]
      %36 = sst [smem:[#allocation10]] [#allocation7]
    $region25: #{lstm_forward.1} parent=1 // pred_fallthru
      _
    %38 = shalt.err (0)
    %s40 = sshll.u32 [#allocation2], 4
    %s41 = int_to_ptr.vmem [resolvable:$true] %s40
    %43 = dma.hbm_to_vmem [thread:$0]  %s4, 4096, %s41, [#allocation4]
    %s44 = scalar_lea.sflag [#allocation4], 1
    // Predicated region
    $region26: #{lstm_forward.1} parent=1 // pred_check
      _
    $region27: #{lstm_forward.1} parent=1 // pred_check_branch
      %46 = sbr.rel target = $region29
    $region28: #{lstm_forward.1} parent=1 // pred_region
      %47 = sst [smem:[#allocation9]] [#allocation12]
      %48 = sst [smem:[#allocation10]] [#allocation11]
    $region29: #{lstm_forward.1} parent=1 // pred_fallthru
      _
    %50 = shalt.err (0)
    %s52 = sshll.u32 [#allocation3], 4
    %s53 = int_to_ptr.vmem [resolvable:$true] %s52
    %55 = dma.hbm_to_vmem [thread:$0]  %s5, 4096, %s53, %s44
    %v56 = vld [vmem:[%s3] ss:$8 sm:$0x3]
    %s57 = scalar_lea.vmem %s3, 1
    %v58 = vld [vmem:[%s57] ss:$8 sm:$0x3]
    %s59 = scalar_lea.vmem %s3, 2
    %v60 = vld [vmem:[%s59] ss:$8 sm:$0x3]
    %v61 = vld [vmem:[%s3 + $0x3] ss:$0 sm:$0xff]
    %v62 = vld [vmem:[%s3 + $0x4] ss:$0 sm:$0xff]
    %v63 = vld [vmem:[%s0] sm:$0xff]
    %v64 = vld [vmem:[%s0 + $0x8] sm:$0xff]
    %v65 = vld [vmem:[%s1] sm:$0xff]
    %v66 = vld [vmem:[%s1 + $0x8] sm:$0xff]
    %v68 = vlaneseq
    %v69 = vshrl.u32 %v68, 7
    %v70 = vsub.s32 0, %v69
    %v71 = vrot.slane %v56, %v70
    %v72 = vlaneseq
    %v73 = vshrl.u32 %v72, 7
    %v74 = vsub.s32 1, %v73
    %v75 = vrot.slane %v56, %v74
    %vm78 = vcmask 64512
    %v80 = vsel %vm78, %v63, 0
    %v83 = vsel %vm78, %v64, 0
    %85 = vmatprep.subr.mxu0 %v66
    %86 = vmatpush1.msra.mxu0 %v65
    %87 = vmatprep.subr.mxu0 0.0
    %88 = vmatpush1.msra.mxu0 0.0
    %89 = vmatprep.subr.mxu0 0.0
    %90 = vmatpush1.msra.mxu0 0.0
    %91 = vmatprep.subr.mxu0 0.0
    %92 = vmatpush1.msra.mxu0 0.0
    %93 = vmatprep.subr.mxu0 0.0
    %94 = vmatpush1.msra.mxu0 0.0
    %95 = vmatprep.subr.mxu0 0.0
    %96 = vmatpush1.msra.mxu0 0.0
    %97 = vmatprep.subr.mxu0 0.0
    %98 = vmatpush1.msra.mxu0 0.0
    %99 = vmatprep.subr.mxu0 0.0
    %100 = vmatpush1.msra.mxu0 0.0
    %101 = vmatprep.subr.mxu0 0.0
    %102 = vmatpush1.msra.mxu0 0.0
    %103 = vmatprep.subr.mxu0 0.0
    %104 = vmatpush1.msra.mxu0 0.0
    %105 = vmatprep.subr.mxu0 0.0
    %106 = vmatpush1.msra.mxu0 0.0
    %107 = vmatprep.subr.mxu0 0.0
    %108 = vmatpush1.msra.mxu0 0.0
    %109 = vmatprep.subr.mxu0 0.0
    %110 = vmatpush1.msra.mxu0 0.0
    %111 = vmatprep.subr.mxu0 0.0
    %112 = vmatpush1.msra.mxu0 0.0
    %113 = vmatprep.subr.mxu0 0.0
    %114 = vmatpush1.msra.mxu0 0.0
    %115 = vmatprep.subr.mxu0 0.0
    %116 = vmatpush1.msra.mxu0 0.0
    %117 = vmatprep.subr.mxu0 0.0
    %118 = vmatpush1.msra.mxu0 0.0
    %119 = vmatprep.subr.mxu0 0.0
    %120 = vmatpush1.msra.mxu0 0.0
    %121 = vmatprep.subr.mxu0 0.0
    %122 = vmatpush1.msra.mxu0 0.0
    %123 = vmatprep.subr.mxu0 0.0
    %124 = vmatpush1.msra.mxu0 0.0
    %125 = vmatprep.subr.mxu0 0.0
    %126 = vmatpush1.msra.mxu0 0.0
    %127 = vmatprep.subr.mxu0 0.0
    %128 = vmatpush1.msra.mxu0 0.0
    %129 = vmatprep.subr.mxu0 0.0
    %130 = vmatpush1.msra.mxu0 0.0
    %131 = vmatprep.subr.mxu0 0.0
    %132 = vmatpush1.msra.mxu0 0.0
    %133 = vmatprep.subr.mxu0 0.0
    %134 = vmatpush1.msra.mxu0 0.0
    %135 = vmatprep.subr.mxu0 0.0
    %136 = vmatpush1.msra.mxu0 0.0
    %137 = vmatprep.subr.mxu0 0.0
    %138 = vmatpush1.msra.mxu0 0.0
    %139 = vmatprep.subr.mxu0 0.0
    %140 = vmatpush1.msra.mxu0 0.0
    %141 = vmatprep.subr.mxu0 0.0
    %142 = vmatpush1.msra.mxu0 0.0
    %143 = vmatprep.subr.mxu0 0.0
    %144 = vmatpush1.msra.mxu0 0.0
    %145 = vmatprep.subr.mxu0 0.0
    %146 = vmatpush1.msra.mxu0 0.0
    %147 = vmatprep.subr.mxu0 0.0
    %148 = vmatpush1.msra.mxu0 0.0
    %149 = vmatprep.mubr.f32.mxu0 0.0
    %150 = vmatmul.mubr.f32.gmra.mrb[0].mxu0 %v80
    %v151 = vpop.f32.mrb[0].mxu0
    %v152 = vadd.f32 %v71, %v151
    %v153 = vpop.f32.mrb[0].mxu0
    %v154 = vadd.f32 %v75, %v153
    %155 = vmatprep.mubr.f32.mxu0 0.0
    %156 = vmatmul.mubr.f32.gmra.mrb[0].mxu0 %v83
    %v157 = vpop.f32.mrb[0].mxu0
    %v158 = vadd.f32 %v71, %v157
    %v159 = vpop.f32.mrb[0].mxu0
    %v160 = vadd.f32 %v75, %v159
    %161 = vdwg.mxu0
    %v162 = vld [vmem:[#allocation5] sm:$0xff]
    %v163 = vld [vmem:[#allocation5 + $0x8] sm:$0xff]
    %v164 = vld [vmem:[#allocation5 + $0x10] sm:$0xff]
    %v165 = vld [vmem:[#allocation5 + $0x18] sm:$0xff]
    %v166 = vld [vmem:[#allocation5 + $0x20] sm:$0xff]
    %v167 = vld [vmem:[#allocation5 + $0x28] sm:$0xff]
    %v168 = vld [vmem:[#allocation5 + $0x30] sm:$0xff]
    %v169 = vld [vmem:[#allocation5 + $0x38] sm:$0xff]
    %v170 = vld [vmem:[#allocation5 + $0x40] sm:$0xff]
    %v171 = vld [vmem:[#allocation5 + $0x48] sm:$0xff]
    %v172 = vld [vmem:[#allocation5 + $0x50] sm:$0xff]
    %v173 = vld [vmem:[#allocation5 + $0x58] sm:$0xff]
    %v174 = vld [vmem:[#allocation5 + $0x60] sm:$0xff]
    %v175 = vld [vmem:[#allocation5 + $0x68] sm:$0xff]
    %v176 = vld [vmem:[#allocation5 + $0x70] sm:$0xff]
    %v177 = vld [vmem:[#allocation5 + $0x78] sm:$0xff]
    %vm178 = vcmask 523264
    %v180 = vsel %vm178, 0.0, 0
    %182 = vmatprep.subr.mxu0 %v163
    %183 = vmatpush1.msra.mxu0 %v162
    %184 = vmatprep.subr.mxu0 %v165
    %185 = vmatpush1.msra.mxu0 %v164
    %186 = vmatprep.subr.mxu0 %v167
    %187 = vmatpush1.msra.mxu0 %v166
    %188 = vmatprep.subr.mxu0 %v169
    %189 = vmatpush1.msra.mxu0 %v168
    %190 = vmatprep.subr.mxu0 %v171
    %191 = vmatpush1.msra.mxu0 %v170
    %192 = vmatprep.subr.mxu0 %v173
    %193 = vmatpush1.msra.mxu0 %v172
    %194 = vmatprep.subr.mxu0 %v175
    %195 = vmatpush1.msra.mxu0 %v174
    %196 = vmatprep.subr.mxu0 %v177
    %197 = vmatpush1.msra.mxu0 %v176
    %198 = vmatprep.subr.mxu0 0.0
    %199 = vmatpush1.msra.mxu0 0.0
    %200 = vmatprep.subr.mxu0 0.0
    %201 = vmatpush1.msra.mxu0 0.0
    %202 = vmatprep.subr.mxu0 0.0
    %203 = vmatpush1.msra.mxu0 0.0
    %204 = vmatprep.subr.mxu0 0.0
    %205 = vmatpush1.msra.mxu0 0.0
    %206 = vmatprep.subr.mxu0 0.0
    %207 = vmatpush1.msra.mxu0 0.0
    %208 = vmatprep.subr.mxu0 0.0
    %209 = vmatpush1.msra.mxu0 0.0
    %210 = vmatprep.subr.mxu0 0.0
    %211 = vmatpush1.msra.mxu0 0.0
    %212 = vmatprep.subr.mxu0 0.0
    %213 = vmatpush1.msra.mxu0 0.0
    %214 = vmatprep.subr.mxu0 0.0
    %215 = vmatpush1.msra.mxu0 0.0
    %216 = vmatprep.subr.mxu0 0.0
    %217 = vmatpush1.msra.mxu0 0.0
    %218 = vmatprep.subr.mxu0 0.0
    %219 = vmatpush1.msra.mxu0 0.0
    %220 = vmatprep.subr.mxu0 0.0
    %221 = vmatpush1.msra.mxu0 0.0
    %222 = vmatprep.subr.mxu0 0.0
    %223 = vmatpush1.msra.mxu0 0.0
    %224 = vmatprep.subr.mxu0 0.0
    %225 = vmatpush1.msra.mxu0 0.0
    %226 = vmatprep.subr.mxu0 0.0
    %227 = vmatpush1.msra.mxu0 0.0
    %228 = vmatprep.subr.mxu0 0.0
    %229 = vmatpush1.msra.mxu0 0.0
    %230 = vmatprep.subr.mxu0 0.0
    %231 = vmatpush1.msra.mxu0 0.0
    %232 = vmatprep.subr.mxu0 0.0
    %233 = vmatpush1.msra.mxu0 0.0
    %234 = vmatprep.subr.mxu0 0.0
    %235 = vmatpush1.msra.mxu0 0.0
    %236 = vmatprep.subr.mxu0 0.0
    %237 = vmatpush1.msra.mxu0 0.0
    %238 = vmatprep.subr.mxu0 0.0
    %239 = vmatpush1.msra.mxu0 0.0
    %240 = vmatprep.subr.mxu0 0.0
    %241 = vmatpush1.msra.mxu0 0.0
    %242 = vmatprep.subr.mxu0 0.0
    %243 = vmatpush1.msra.mxu0 0.0
    %244 = vmatprep.subr.mxu0 0.0
    %245 = vmatpush1.msra.mxu0 0.0
    %246 = vmatprep.mubr.f32.mxu0 0.0
    %247 = vmatmul.mubr.f32.gmra.mrb[0].mxu0 %v180
    %v248 = vpop.f32.mrb[0].mxu0
    %v249 = vadd.f32 0.0, %v248
    %v250 = vpop.f32.mrb[0].mxu0
    %v251 = vadd.f32 0.0, %v250
    %252 = vdwg.mxu0
    %v253 = vadd.f32 %v152, %v249
    %v254 = vadd.f32 %v154, %v251
    %v255 = vmul.f32 %v253, 0.5
    %v256 = vtanh.pop %v255
    %v257 = vmul.f32 %v256, 0.5
    %v258 = vadd.f32 %v257, 0.5
    %v259 = vtanh.pop %v254
    %v260 = vmul.f32 %v254, 0.5
    %v261 = vtanh.pop %v260
    %v262 = vmul.f32 %v261, 0.5
    %v263 = vadd.f32 %v262, 0.5
    %v264 = vmul.f32 %v258, 0.0
    %v265 = vmul.f32 %v258, %v259
    %267 = vrot.lane.b32.xlu0 %v265, 64
    %v268 = vpop.permute.xlu0 %267
    %v270 = vadd.f32 %v264, %v268
    %v271 = vtanh.pop %v270
    %v272 = vmul.f32 %v263, %v271
    %s273 = smul.u32 8, 16
    %s274 = smul.u32 %s273, 2
    %s275 = sshll.u32 %s274, 4
    %276 = dma.done [#allocation4], %s275
    %v277 = vld [vmem:[#allocation5] sm:$0xff]
    %v278 = vld [vmem:[#allocation5 + $0x8] sm:$0xff]
    %v279 = vld [vmem:[#allocation5 + $0x10] sm:$0xff]
    %v280 = vld [vmem:[#allocation5 + $0x18] sm:$0xff]
    %v281 = vld [vmem:[#allocation5 + $0x20] sm:$0xff]
    %v282 = vld [vmem:[#allocation5 + $0x28] sm:$0xff]
    %v283 = vld [vmem:[#allocation5 + $0x30] sm:$0xff]
    %v284 = vld [vmem:[#allocation5 + $0x38] sm:$0xff]
    %v285 = vld [vmem:[#allocation5 + $0x40] sm:$0xff]
    %v286 = vld [vmem:[#allocation5 + $0x48] sm:$0xff]
    %v287 = vld [vmem:[#allocation5 + $0x50] sm:$0xff]
    %v288 = vld [vmem:[#allocation5 + $0x58] sm:$0xff]
    %v289 = vld [vmem:[#allocation5 + $0x60] sm:$0xff]
    %v290 = vld [vmem:[#allocation5 + $0x68] sm:$0xff]
    %v291 = vld [vmem:[#allocation5 + $0x70] sm:$0xff]
    %v292 = vld [vmem:[#allocation5 + $0x78] sm:$0xff]
    %294 = vrot.lane.b32.xlu0 %v272, 64
    %v295 = vpop.permute.xlu0 %294
    %v296 = vsel %vm178, %v295, 0
    %298 = vmatprep.subr.mxu0 %v278
    %299 = vmatpush1.msra.mxu0 %v277
    %300 = vmatprep.subr.mxu0 %v280
    %301 = vmatpush1.msra.mxu0 %v279
    %302 = vmatprep.subr.mxu0 %v282
    %303 = vmatpush1.msra.mxu0 %v281
    %304 = vmatprep.subr.mxu0 %v284
    %305 = vmatpush1.msra.mxu0 %v283
    %306 = vmatprep.subr.mxu0 %v286
    %307 = vmatpush1.msra.mxu0 %v285
    %308 = vmatprep.subr.mxu0 %v288
    %309 = vmatpush1.msra.mxu0 %v287
    %310 = vmatprep.subr.mxu0 %v290
    %311 = vmatpush1.msra.mxu0 %v289
    %312 = vmatprep.subr.mxu0 %v292
    %313 = vmatpush1.msra.mxu0 %v291
    %314 = vmatprep.subr.mxu0 0.0
    %315 = vmatpush1.msra.mxu0 0.0
    %316 = vmatprep.subr.mxu0 0.0
    %317 = vmatpush1.msra.mxu0 0.0
    %318 = vmatprep.subr.mxu0 0.0
    %319 = vmatpush1.msra.mxu0 0.0
    %320 = vmatprep.subr.mxu0 0.0
    %321 = vmatpush1.msra.mxu0 0.0
    %322 = vmatprep.subr.mxu0 0.0
    %323 = vmatpush1.msra.mxu0 0.0
    %324 = vmatprep.subr.mxu0 0.0
    %325 = vmatpush1.msra.mxu0 0.0
    %326 = vmatprep.subr.mxu0 0.0
    %327 = vmatpush1.msra.mxu0 0.0
    %328 = vmatprep.subr.mxu0 0.0
    %329 = vmatpush1.msra.mxu0 0.0
    %330 = vmatprep.subr.mxu0 0.0
    %331 = vmatpush1.msra.mxu0 0.0
    %332 = vmatprep.subr.mxu0 0.0
    %333 = vmatpush1.msra.mxu0 0.0
    %334 = vmatprep.subr.mxu0 0.0
    %335 = vmatpush1.msra.mxu0 0.0
    %336 = vmatprep.subr.mxu0 0.0
    %337 = vmatpush1.msra.mxu0 0.0
    %338 = vmatprep.subr.mxu0 0.0
    %339 = vmatpush1.msra.mxu0 0.0
    %340 = vmatprep.subr.mxu0 0.0
    %341 = vmatpush1.msra.mxu0 0.0
    %342 = vmatprep.subr.mxu0 0.0
    %343 = vmatpush1.msra.mxu0 0.0
    %344 = vmatprep.subr.mxu0 0.0
    %345 = vmatpush1.msra.mxu0 0.0
    %346 = vmatprep.subr.mxu0 0.0
    %347 = vmatpush1.msra.mxu0 0.0
    %348 = vmatprep.subr.mxu0 0.0
    %349 = vmatpush1.msra.mxu0 0.0
    %350 = vmatprep.subr.mxu0 0.0
    %351 = vmatpush1.msra.mxu0 0.0
    %352 = vmatprep.subr.mxu0 0.0
    %353 = vmatpush1.msra.mxu0 0.0
    %354 = vmatprep.subr.mxu0 0.0
    %355 = vmatpush1.msra.mxu0 0.0
    %356 = vmatprep.subr.mxu0 0.0
    %357 = vmatpush1.msra.mxu0 0.0
    %358 = vmatprep.subr.mxu0 0.0
    %359 = vmatpush1.msra.mxu0 0.0
    %360 = vmatprep.subr.mxu0 0.0
    %361 = vmatpush1.msra.mxu0 0.0
    %362 = vmatprep.mubr.f32.mxu0 0.0
    %363 = vmatmul.mubr.f32.gmra.mrb[0].mxu0 %v296
    %v364 = vpop.f32.mrb[0].mxu0
    %v365 = vadd.f32 0.0, %v364
    %v366 = vpop.f32.mrb[0].mxu0
    %v367 = vadd.f32 0.0, %v366
    %368 = vdwg.mxu0
    %v371 = vrot.slane %v365, 6
    %v372 = vrot.slane %v367, 6
    %v375 = vadd.f32 %v152, %v371
    %v376 = vadd.f32 %v154, %v372
    %v377 = vmul.f32 %v375, 0.5
    %v378 = vtanh.pop %v377
    %v379 = vmul.f32 %v378, 0.5
    %v380 = vadd.f32 %v379, 0.5
    %v381 = vtanh.pop %v376
    %v382 = vmul.f32 %v376, 0.5
    %v383 = vtanh.pop %v382
    %v384 = vmul.f32 %v383, 0.5
    %v385 = vadd.f32 %v384, 0.5
    %v387 = vrot.slane %v270, 6
    %v389 = vmul.f32 %v380, %v387
    %v390 = vmul.f32 %v380, %v381
    %392 = vrot.lane.b32.xlu0 %v390, 64
    %v393 = vpop.permute.xlu0 %392
    %v395 = vadd.f32 %v389, %v393
    %v396 = vtanh.pop %v395
    %v397 = vmul.f32 %v385, %v396
    %v398 = vld [vmem:[#allocation2] sm:$0xff]
    %v399 = vld [vmem:[#allocation2 + $0x8] sm:$0xff]
    %v400 = vld [vmem:[#allocation2 + $0x10] sm:$0xff]
    %v401 = vld [vmem:[#allocation2 + $0x18] sm:$0xff]
    %v402 = vld [vmem:[#allocation2 + $0x20] sm:$0xff]
    %v403 = vld [vmem:[#allocation2 + $0x28] sm:$0xff]
    %v404 = vld [vmem:[#allocation2 + $0x30] sm:$0xff]
    %v405 = vld [vmem:[#allocation2 + $0x38] sm:$0xff]
    %v406 = vld [vmem:[#allocation2 + $0x40] sm:$0xff]
    %v407 = vld [vmem:[#allocation2 + $0x48] sm:$0xff]
    %v408 = vld [vmem:[#allocation2 + $0x50] sm:$0xff]
    %v409 = vld [vmem:[#allocation2 + $0x58] sm:$0xff]
    %v410 = vld [vmem:[#allocation2 + $0x60] sm:$0xff]
    %v411 = vld [vmem:[#allocation2 + $0x68] sm:$0xff]
    %v412 = vld [vmem:[#allocation2 + $0x70] sm:$0xff]
    %v413 = vld [vmem:[#allocation2 + $0x78] sm:$0xff]
    %v414 = vld [vmem:[#allocation2 + $0x80] sm:$0xff]
    %v415 = vld [vmem:[#allocation2 + $0x88] sm:$0xff]
    %v416 = vld [vmem:[#allocation2 + $0x90] sm:$0xff]
    %v417 = vld [vmem:[#allocation2 + $0x98] sm:$0xff]
    %v418 = vld [vmem:[#allocation2 + $0xa0] sm:$0xff]
    %v419 = vld [vmem:[#allocation2 + $0xa8] sm:$0xff]
    %v420 = vld [vmem:[#allocation2 + $0xb0] sm:$0xff]
    %v421 = vld [vmem:[#allocation2 + $0xb8] sm:$0xff]
    %v422 = vld [vmem:[#allocation2 + $0xc0] sm:$0xff]
    %v423 = vld [vmem:[#allocation2 + $0xc8] sm:$0xff]
    %v424 = vld [vmem:[#allocation2 + $0xd0] sm:$0xff]
    %v425 = vld [vmem:[#allocation2 + $0xd8] sm:$0xff]
    %v426 = vld [vmem:[#allocation2 + $0xe0] sm:$0xff]
    %v427 = vld [vmem:[#allocation2 + $0xe8] sm:$0xff]
    %v428 = vld [vmem:[#allocation2 + $0xf0] sm:$0xff]
    %v429 = vld [vmem:[#allocation2 + $0xf8] sm:$0xff]
    %430 = vmatprep.subr.mxu0 %v415
    %431 = vmatpush1.msra.mxu0 %v414
    %432 = vmatprep.subr.mxu0 %v417
    %433 = vmatpush1.msra.mxu0 %v416
    %434 = vmatprep.subr.mxu0 %v419
    %435 = vmatpush1.msra.mxu0 %v418
    %436 = vmatprep.subr.mxu0 %v421
    %437 = vmatpush1.msra.mxu0 %v420
    %438 = vmatprep.subr.mxu0 %v423
    %439 = vmatpush1.msra.mxu0 %v422
    %440 = vmatprep.subr.mxu0 %v425
    %441 = vmatpush1.msra.mxu0 %v424
    %442 = vmatprep.subr.mxu0 %v427
    %443 = vmatpush1.msra.mxu0 %v426
    %444 = vmatprep.subr.mxu0 %v429
    %445 = vmatpush1.msra.mxu0 %v428
    %446 = vmatprep.subr.mxu0 0.0
    %447 = vmatpush1.msra.mxu0 0.0
    %448 = vmatprep.subr.mxu0 0.0
    %449 = vmatpush1.msra.mxu0 0.0
    %450 = vmatprep.subr.mxu0 0.0
    %451 = vmatpush1.msra.mxu0 0.0
    %452 = vmatprep.subr.mxu0 0.0
    %453 = vmatpush1.msra.mxu0 0.0
    %454 = vmatprep.subr.mxu0 0.0
    %455 = vmatpush1.msra.mxu0 0.0
    %456 = vmatprep.subr.mxu0 0.0
    %457 = vmatpush1.msra.mxu0 0.0
    %458 = vmatprep.subr.mxu0 0.0
    %459 = vmatpush1.msra.mxu0 0.0
    %460 = vmatprep.subr.mxu0 0.0
    %461 = vmatpush1.msra.mxu0 0.0
    %462 = vmatprep.subr.mxu0 0.0
    %463 = vmatpush1.msra.mxu0 0.0
    %464 = vmatprep.subr.mxu0 0.0
    %465 = vmatpush1.msra.mxu0 0.0
    %466 = vmatprep.subr.mxu0 0.0
    %467 = vmatpush1.msra.mxu0 0.0
    %468 = vmatprep.subr.mxu0 0.0
    %469 = vmatpush1.msra.mxu0 0.0
    %470 = vmatprep.subr.mxu0 0.0
    %471 = vmatpush1.msra.mxu0 0.0
    %472 = vmatprep.subr.mxu0 0.0
    %473 = vmatpush1.msra.mxu0 0.0
    %474 = vmatprep.subr.mxu0 0.0
    %475 = vmatpush1.msra.mxu0 0.0
    %476 = vmatprep.subr.mxu0 0.0
    %477 = vmatpush1.msra.mxu0 0.0
    %478 = vmatprep.subr.mxu0 0.0
    %479 = vmatpush1.msra.mxu0 0.0
    %480 = vmatprep.subr.mxu0 0.0
    %481 = vmatpush1.msra.mxu0 0.0
    %482 = vmatprep.subr.mxu0 0.0
    %483 = vmatpush1.msra.mxu0 0.0
    %484 = vmatprep.subr.mxu0 0.0
    %485 = vmatpush1.msra.mxu0 0.0
    %486 = vmatprep.subr.mxu0 0.0
    %487 = vmatpush1.msra.mxu0 0.0
    %488 = vmatprep.subr.mxu0 0.0
    %489 = vmatpush1.msra.mxu0 0.0
    %490 = vmatprep.subr.mxu0 0.0
    %491 = vmatpush1.msra.mxu0 0.0
    %492 = vmatprep.subr.mxu0 0.0
    %493 = vmatpush1.msra.mxu0 0.0
    %494 = vmatprep.mubr.f32.mxu0 0.0
    %495 = vmatmul.mubr.f32.gmra.mrb[0].mxu0 %v180
    %v496 = vpop.f32.mrb[0].mxu0
    %v497 = vadd.f32 0.0, %v496
    %v498 = vpop.f32.mrb[0].mxu0
    %v499 = vadd.f32 0.0, %v498
    %500 = vdwg.mxu0
    %501 = vmatprep.subr.mxu0 %v399
    %502 = vmatpush1.msra.mxu0 %v398
    %503 = vmatprep.subr.mxu0 %v401
    %504 = vmatpush1.msra.mxu0 %v400
    %505 = vmatprep.subr.mxu0 %v403
    %506 = vmatpush1.msra.mxu0 %v402
    %507 = vmatprep.subr.mxu0 %v405
    %508 = vmatpush1.msra.mxu0 %v404
    %509 = vmatprep.subr.mxu0 %v407
    %510 = vmatpush1.msra.mxu0 %v406
    %511 = vmatprep.subr.mxu0 %v409
    %512 = vmatpush1.msra.mxu0 %v408
    %513 = vmatprep.subr.mxu0 %v411
    %514 = vmatpush1.msra.mxu0 %v410
    %515 = vmatprep.subr.mxu0 %v413
    %516 = vmatpush1.msra.mxu0 %v412
    %517 = vmatprep.subr.mxu0 0.0
    %518 = vmatpush1.msra.mxu0 0.0
    %519 = vmatprep.subr.mxu0 0.0
    %520 = vmatpush1.msra.mxu0 0.0
    %521 = vmatprep.subr.mxu0 0.0
    %522 = vmatpush1.msra.mxu0 0.0
    %523 = vmatprep.subr.mxu0 0.0
    %524 = vmatpush1.msra.mxu0 0.0
    %525 = vmatprep.subr.mxu0 0.0
    %526 = vmatpush1.msra.mxu0 0.0
    %527 = vmatprep.subr.mxu0 0.0
    %528 = vmatpush1.msra.mxu0 0.0
    %529 = vmatprep.subr.mxu0 0.0
    %530 = vmatpush1.msra.mxu0 0.0
    %531 = vmatprep.subr.mxu0 0.0
    %532 = vmatpush1.msra.mxu0 0.0
    %533 = vmatprep.subr.mxu0 0.0
    %534 = vmatpush1.msra.mxu0 0.0
    %535 = vmatprep.subr.mxu0 0.0
    %536 = vmatpush1.msra.mxu0 0.0
    %537 = vmatprep.subr.mxu0 0.0
    %538 = vmatpush1.msra.mxu0 0.0
    %539 = vmatprep.subr.mxu0 0.0
    %540 = vmatpush1.msra.mxu0 0.0
    %541 = vmatprep.subr.mxu0 0.0
    %542 = vmatpush1.msra.mxu0 0.0
    %543 = vmatprep.subr.mxu0 0.0
    %544 = vmatpush1.msra.mxu0 0.0
    %545 = vmatprep.subr.mxu0 0.0
    %546 = vmatpush1.msra.mxu0 0.0
    %547 = vmatprep.subr.mxu0 0.0
    %548 = vmatpush1.msra.mxu0 0.0
    %549 = vmatprep.subr.mxu0 0.0
    %550 = vmatpush1.msra.mxu0 0.0
    %551 = vmatprep.subr.mxu0 0.0
    %552 = vmatpush1.msra.mxu0 0.0
    %553 = vmatprep.subr.mxu0 0.0
    %554 = vmatpush1.msra.mxu0 0.0
    %555 = vmatprep.subr.mxu0 0.0
    %556 = vmatpush1.msra.mxu0 0.0
    %557 = vmatprep.subr.mxu0 0.0
    %558 = vmatpush1.msra.mxu0 0.0
    %559 = vmatprep.subr.mxu0 0.0
    %560 = vmatpush1.msra.mxu0 0.0
    %561 = vmatprep.subr.mxu0 0.0
    %562 = vmatpush1.msra.mxu0 0.0
    %563 = vmatprep.subr.mxu0 0.0
    %564 = vmatpush1.msra.mxu0 0.0
    %565 = vmatprep.mubr.f32.mxu0 0.0
    %566 = vmatmul.mubr.f32.gmra.mrb[0].mxu0 %v296
    %v567 = vpop.f32.mrb[0].mxu0
    %v568 = vadd.f32 %v497, %v567
    %v569 = vpop.f32.mrb[0].mxu0
    %v570 = vadd.f32 %v499, %v569
    %571 = vdwg.mxu0
    %v573 = vlaneseq
    %v574 = vshrl.u32 %v573, 7
    %v575 = vsub.s32 0, %v574
    %v576 = vrot.slane %v58, %v575
    %v577 = vlaneseq
    %v578 = vshrl.u32 %v577, 7
    %v579 = vsub.s32 1, %v578
    %v580 = vrot.slane %v58, %v579
    %v583 = vadd.f32 %v568, %v576
    %v584 = vadd.f32 %v570, %v580
    %v585 = vmul.f32 %v583, 0.5
    %v586 = vtanh.pop %v585
    %v587 = vmul.f32 %v586, 0.5
    %v588 = vadd.f32 %v587, 0.5
    %v589 = vtanh.pop %v584
    %v590 = vmul.f32 %v584, 0.5
    %v591 = vtanh.pop %v590
    %v592 = vmul.f32 %v591, 0.5
    %v593 = vadd.f32 %v592, 0.5
    %v594 = vmul.f32 %v588, 0.0
    %v595 = vmul.f32 %v588, %v589
    %597 = vrot.lane.b32.xlu0 %v595, 64
    %v598 = vpop.permute.xlu0 %597
    %v600 = vadd.f32 %v594, %v598
    %v601 = vtanh.pop %v600
    %v602 = vmul.f32 %v593, %v601
    %s603 = sshll.u32 %s274, 4
    %604 = dma.done %s44, %s603
    %v605 = vld [vmem:[#allocation5] sm:$0xff]
    %v606 = vld [vmem:[#allocation5 + $0x8] sm:$0xff]
    %v607 = vld [vmem:[#allocation5 + $0x10] sm:$0xff]
    %v608 = vld [vmem:[#allocation5 + $0x18] sm:$0xff]
    %v609 = vld [vmem:[#allocation5 + $0x20] sm:$0xff]
    %v610 = vld [vmem:[#allocation5 + $0x28] sm:$0xff]
    %v611 = vld [vmem:[#allocation5 + $0x30] sm:$0xff]
    %v612 = vld [vmem:[#allocation5 + $0x38] sm:$0xff]
    %v613 = vld [vmem:[#allocation5 + $0x40] sm:$0xff]
    %v614 = vld [vmem:[#allocation5 + $0x48] sm:$0xff]
    %v615 = vld [vmem:[#allocation5 + $0x50] sm:$0xff]
    %v616 = vld [vmem:[#allocation5 + $0x58] sm:$0xff]
    %v617 = vld [vmem:[#allocation5 + $0x60] sm:$0xff]
    %v618 = vld [vmem:[#allocation5 + $0x68] sm:$0xff]
    %v619 = vld [vmem:[#allocation5 + $0x70] sm:$0xff]
    %v620 = vld [vmem:[#allocation5 + $0x78] sm:$0xff]
    %v622 = vrot.slane %v397, 2
    %623 = vrot.lane.b32.xlu0 %v622, 64
    %v624 = vpop.permute.xlu0 %623
    %v625 = vsel %vm178, %v624, 0
    %627 = vmatprep.subr.mxu0 %v606
    %628 = vmatpush1.msra.mxu0 %v605
    %629 = vmatprep.subr.mxu0 %v608
    %630 = vmatpush1.msra.mxu0 %v607
    %631 = vmatprep.subr.mxu0 %v610
    %632 = vmatpush1.msra.mxu0 %v609
    %633 = vmatprep.subr.mxu0 %v612
    %634 = vmatpush1.msra.mxu0 %v611
    %635 = vmatprep.subr.mxu0 %v614
    %636 = vmatpush1.msra.mxu0 %v613
    %637 = vmatprep.subr.mxu0 %v616
    %638 = vmatpush1.msra.mxu0 %v615
    %639 = vmatprep.subr.mxu0 %v618
    %640 = vmatpush1.msra.mxu0 %v617
    %641 = vmatprep.subr.mxu0 %v620
    %642 = vmatpush1.msra.mxu0 %v619
    %643 = vmatprep.subr.mxu0 0.0
    %644 = vmatpush1.msra.mxu0 0.0
    %645 = vmatprep.subr.mxu0 0.0
    %646 = vmatpush1.msra.mxu0 0.0
    %647 = vmatprep.subr.mxu0 0.0
    %648 = vmatpush1.msra.mxu0 0.0
    %649 = vmatprep.subr.mxu0 0.0
    %650 = vmatpush1.msra.mxu0 0.0
    %651 = vmatprep.subr.mxu0 0.0
    %652 = vmatpush1.msra.mxu0 0.0
    %653 = vmatprep.subr.mxu0 0.0
    %654 = vmatpush1.msra.mxu0 0.0
    %655 = vmatprep.subr.mxu0 0.0
    %656 = vmatpush1.msra.mxu0 0.0
    %657 = vmatprep.subr.mxu0 0.0
    %658 = vmatpush1.msra.mxu0 0.0
    %659 = vmatprep.subr.mxu0 0.0
    %660 = vmatpush1.msra.mxu0 0.0
    %661 = vmatprep.subr.mxu0 0.0
    %662 = vmatpush1.msra.mxu0 0.0
    %663 = vmatprep.subr.mxu0 0.0
    %664 = vmatpush1.msra.mxu0 0.0
    %665 = vmatprep.subr.mxu0 0.0
    %666 = vmatpush1.msra.mxu0 0.0
    %667 = vmatprep.subr.mxu0 0.0
    %668 = vmatpush1.msra.mxu0 0.0
    %669 = vmatprep.subr.mxu0 0.0
    %670 = vmatpush1.msra.mxu0 0.0
    %671 = vmatprep.subr.mxu0 0.0
    %672 = vmatpush1.msra.mxu0 0.0
    %673 = vmatprep.subr.mxu0 0.0
    %674 = vmatpush1.msra.mxu0 0.0
    %675 = vmatprep.subr.mxu0 0.0
    %676 = vmatpush1.msra.mxu0 0.0
    %677 = vmatprep.subr.mxu0 0.0
    %678 = vmatpush1.msra.mxu0 0.0
    %679 = vmatprep.subr.mxu0 0.0
    %680 = vmatpush1.msra.mxu0 0.0
    %681 = vmatprep.subr.mxu0 0.0
    %682 = vmatpush1.msra.mxu0 0.0
    %683 = vmatprep.subr.mxu0 0.0
    %684 = vmatpush1.msra.mxu0 0.0
    %685 = vmatprep.subr.mxu0 0.0
    %686 = vmatpush1.msra.mxu0 0.0
    %687 = vmatprep.subr.mxu0 0.0
    %688 = vmatpush1.msra.mxu0 0.0
    %689 = vmatprep.subr.mxu0 0.0
    %690 = vmatpush1.msra.mxu0 0.0
    %691 = vmatprep.mubr.f32.mxu0 0.0
    %692 = vmatmul.mubr.f32.gmra.mrb[0].mxu0 %v625
    %v693 = vpop.f32.mrb[0].mxu0
    %v694 = vadd.f32 0.0, %v693
    %v695 = vpop.f32.mrb[0].mxu0
    %v696 = vadd.f32 0.0, %v695
    %697 = vdwg.mxu0
    %v700 = vrot.slane %v694, 4
    %v701 = vrot.slane %v696, 4
    %v704 = vadd.f32 %v152, %v700
    %v705 = vadd.f32 %v154, %v701
    %v706 = vmul.f32 %v704, 0.5
    %v707 = vtanh.pop %v706
    %v708 = vmul.f32 %v707, 0.5
    %v709 = vadd.f32 %v708, 0.5
    %v710 = vtanh.pop %v705
    %v711 = vmul.f32 %v705, 0.5
    %v712 = vtanh.pop %v711
    %v713 = vmul.f32 %v712, 0.5
    %v714 = vadd.f32 %v713, 0.5
    %v716 = vrot.slane %v395, 6
    %v718 = vmul.f32 %v709, %v716
    %v719 = vmul.f32 %v709, %v710
    %721 = vrot.lane.b32.xlu0 %v719, 64
    %v722 = vpop.permute.xlu0 %721
    %v724 = vadd.f32 %v718, %v722
    %v725 = vtanh.pop %v724
    %v726 = vmul.f32 %v714, %v725
    %v727 = vld [vmem:[#allocation2] sm:$0xff]
    %v728 = vld [vmem:[#allocation2 + $0x8] sm:$0xff]
    %v729 = vld [vmem:[#allocation2 + $0x10] sm:$0xff]
    %v730 = vld [vmem:[#allocation2 + $0x18] sm:$0xff]
    %v731 = vld [vmem:[#allocation2 + $0x20] sm:$0xff]
    %v732 = vld [vmem:[#allocation2 + $0x28] sm:$0xff]
    %v733 = vld [vmem:[#allocation2 + $0x30] sm:$0xff]
    %v734 = vld [vmem:[#allocation2 + $0x38] sm:$0xff]
    %v735 = vld [vmem:[#allocation2 + $0x40] sm:$0xff]
    %v736 = vld [vmem:[#allocation2 + $0x48] sm:$0xff]
    %v737 = vld [vmem:[#allocation2 + $0x50] sm:$0xff]
    %v738 = vld [vmem:[#allocation2 + $0x58] sm:$0xff]
    %v739 = vld [vmem:[#allocation2 + $0x60] sm:$0xff]
    %v740 = vld [vmem:[#allocation2 + $0x68] sm:$0xff]
    %v741 = vld [vmem:[#allocation2 + $0x70] sm:$0xff]
    %v742 = vld [vmem:[#allocation2 + $0x78] sm:$0xff]
    %v743 = vld [vmem:[#allocation2 + $0x80] sm:$0xff]
    %v744 = vld [vmem:[#allocation2 + $0x88] sm:$0xff]
    %v745 = vld [vmem:[#allocation2 + $0x90] sm:$0xff]
    %v746 = vld [vmem:[#allocation2 + $0x98] sm:$0xff]
    %v747 = vld [vmem:[#allocation2 + $0xa0] sm:$0xff]
    %v748 = vld [vmem:[#allocation2 + $0xa8] sm:$0xff]
    %v749 = vld [vmem:[#allocation2 + $0xb0] sm:$0xff]
    %v750 = vld [vmem:[#allocation2 + $0xb8] sm:$0xff]
    %v751 = vld [vmem:[#allocation2 + $0xc0] sm:$0xff]
    %v752 = vld [vmem:[#allocation2 + $0xc8] sm:$0xff]
    %v753 = vld [vmem:[#allocation2 + $0xd0] sm:$0xff]
    %v754 = vld [vmem:[#allocation2 + $0xd8] sm:$0xff]
    %v755 = vld [vmem:[#allocation2 + $0xe0] sm:$0xff]
    %v756 = vld [vmem:[#allocation2 + $0xe8] sm:$0xff]
    %v757 = vld [vmem:[#allocation2 + $0xf0] sm:$0xff]
    %v758 = vld [vmem:[#allocation2 + $0xf8] sm:$0xff]
    %760 = vrot.lane.b32.xlu0 %v602, 64
    %v761 = vpop.permute.xlu0 %760
    %v762 = vsel %vm178, %v761, 0
    %764 = vmatprep.subr.mxu0 %v744
    %765 = vmatpush1.msra.mxu0 %v743
    %766 = vmatprep.subr.mxu0 %v746
    %767 = vmatpush1.msra.mxu0 %v745
    %768 = vmatprep.subr.mxu0 %v748
    %769 = vmatpush1.msra.mxu0 %v747
    %770 = vmatprep.subr.mxu0 %v750
    %771 = vmatpush1.msra.mxu0 %v749
    %772 = vmatprep.subr.mxu0 %v752
    %773 = vmatpush1.msra.mxu0 %v751
    %774 = vmatprep.subr.mxu0 %v754
    %775 = vmatpush1.msra.mxu0 %v753
    %776 = vmatprep.subr.mxu0 %v756
    %777 = vmatpush1.msra.mxu0 %v755
    %778 = vmatprep.subr.mxu0 %v758
    %779 = vmatpush1.msra.mxu0 %v757
    %780 = vmatprep.subr.mxu0 0.0
    %781 = vmatpush1.msra.mxu0 0.0
    %782 = vmatprep.subr.mxu0 0.0
    %783 = vmatpush1.msra.mxu0 0.0
    %784 = vmatprep.subr.mxu0 0.0
    %785 = vmatpush1.msra.mxu0 0.0
    %786 = vmatprep.subr.mxu0 0.0
    %787 = vmatpush1.msra.mxu0 0.0
    %788 = vmatprep.subr.mxu0 0.0
    %789 = vmatpush1.msra.mxu0 0.0
    %790 = vmatprep.subr.mxu0 0.0
    %791 = vmatpush1.msra.mxu0 0.0
    %792 = vmatprep.subr.mxu0 0.0
    %793 = vmatpush1.msra.mxu0 0.0
    %794 = vmatprep.subr.mxu0 0.0
    %795 = vmatpush1.msra.mxu0 0.0
    %796 = vmatprep.subr.mxu0 0.0
    %797 = vmatpush1.msra.mxu0 0.0
    %798 = vmatprep.subr.mxu0 0.0
    %799 = vmatpush1.msra.mxu0 0.0
    %800 = vmatprep.subr.mxu0 0.0
    %801 = vmatpush1.msra.mxu0 0.0
    %802 = vmatprep.subr.mxu0 0.0
    %803 = vmatpush1.msra.mxu0 0.0
    %804 = vmatprep.subr.mxu0 0.0
    %805 = vmatpush1.msra.mxu0 0.0
    %806 = vmatprep.subr.mxu0 0.0
    %807 = vmatpush1.msra.mxu0 0.0
    %808 = vmatprep.subr.mxu0 0.0
    %809 = vmatpush1.msra.mxu0 0.0
    %810 = vmatprep.subr.mxu0 0.0
    %811 = vmatpush1.msra.mxu0 0.0
    %812 = vmatprep.subr.mxu0 0.0
    %813 = vmatpush1.msra.mxu0 0.0
    %814 = vmatprep.subr.mxu0 0.0
    %815 = vmatpush1.msra.mxu0 0.0
    %816 = vmatprep.subr.mxu0 0.0
    %817 = vmatpush1.msra.mxu0 0.0
    %818 = vmatprep.subr.mxu0 0.0
    %819 = vmatpush1.msra.mxu0 0.0
    %820 = vmatprep.subr.mxu0 0.0
    %821 = vmatpush1.msra.mxu0 0.0
    %822 = vmatprep.subr.mxu0 0.0
    %823 = vmatpush1.msra.mxu0 0.0
    %824 = vmatprep.subr.mxu0 0.0
    %825 = vmatpush1.msra.mxu0 0.0
    %826 = vmatprep.subr.mxu0 0.0
    %827 = vmatpush1.msra.mxu0 0.0
    %828 = vmatprep.mubr.f32.mxu0 0.0
    %829 = vmatmul.mubr.f32.gmra.mrb[0].mxu0 %v762
    %v830 = vpop.f32.mrb[0].mxu0
    %v831 = vadd.f32 0.0, %v830
    %v832 = vpop.f32.mrb[0].mxu0
    %v833 = vadd.f32 0.0, %v832
    %834 = vdwg.mxu0
    %835 = vmatprep.subr.mxu0 %v728
    %836 = vmatpush1.msra.mxu0 %v727
    %837 = vmatprep.subr.mxu0 %v730
    %838 = vmatpush1.msra.mxu0 %v729
    %839 = vmatprep.subr.mxu0 %v732
    %840 = vmatpush1.msra.mxu0 %v731
    %841 = vmatprep.subr.mxu0 %v734
    %842 = vmatpush1.msra.mxu0 %v733
    %843 = vmatprep.subr.mxu0 %v736
    %844 = vmatpush1.msra.mxu0 %v735
    %845 = vmatprep.subr.mxu0 %v738
    %846 = vmatpush1.msra.mxu0 %v737
    %847 = vmatprep.subr.mxu0 %v740
    %848 = vmatpush1.msra.mxu0 %v739
    %849 = vmatprep.subr.mxu0 %v742
    %850 = vmatpush1.msra.mxu0 %v741
    %851 = vmatprep.subr.mxu0 0.0
    %852 = vmatpush1.msra.mxu0 0.0
    %853 = vmatprep.subr.mxu0 0.0
    %854 = vmatpush1.msra.mxu0 0.0
    %855 = vmatprep.subr.mxu0 0.0
    %856 = vmatpush1.msra.mxu0 0.0
    %857 = vmatprep.subr.mxu0 0.0
    %858 = vmatpush1.msra.mxu0 0.0
    %859 = vmatprep.subr.mxu0 0.0
    %860 = vmatpush1.msra.mxu0 0.0
    %861 = vmatprep.subr.mxu0 0.0
    %862 = vmatpush1.msra.mxu0 0.0
    %863 = vmatprep.subr.mxu0 0.0
    %864 = vmatpush1.msra.mxu0 0.0
    %865 = vmatprep.subr.mxu0 0.0
    %866 = vmatpush1.msra.mxu0 0.0
    %867 = vmatprep.subr.mxu0 0.0
    %868 = vmatpush1.msra.mxu0 0.0
    %869 = vmatprep.subr.mxu0 0.0
    %870 = vmatpush1.msra.mxu0 0.0
    %871 = vmatprep.subr.mxu0 0.0
    %872 = vmatpush1.msra.mxu0 0.0
    %873 = vmatprep.subr.mxu0 0.0
    %874 = vmatpush1.msra.mxu0 0.0
    %875 = vmatprep.subr.mxu0 0.0
    %876 = vmatpush1.msra.mxu0 0.0
    %877 = vmatprep.subr.mxu0 0.0
    %878 = vmatpush1.msra.mxu0 0.0
    %879 = vmatprep.subr.mxu0 0.0
    %880 = vmatpush1.msra.mxu0 0.0
    %881 = vmatprep.subr.mxu0 0.0
    %882 = vmatpush1.msra.mxu0 0.0
    %883 = vmatprep.subr.mxu0 0.0
    %884 = vmatpush1.msra.mxu0 0.0
    %885 = vmatprep.subr.mxu0 0.0
    %886 = vmatpush1.msra.mxu0 0.0
    %887 = vmatprep.subr.mxu0 0.0
    %888 = vmatpush1.msra.mxu0 0.0
    %889 = vmatprep.subr.mxu0 0.0
    %890 = vmatpush1.msra.mxu0 0.0
    %891 = vmatprep.subr.mxu0 0.0
    %892 = vmatpush1.msra.mxu0 0.0
    %893 = vmatprep.subr.mxu0 0.0
    %894 = vmatpush1.msra.mxu0 0.0
    %895 = vmatprep.subr.mxu0 0.0
    %896 = vmatpush1.msra.mxu0 0.0
    %897 = vmatprep.subr.mxu0 0.0
    %898 = vmatpush1.msra.mxu0 0.0
    %899 = vmatprep.mubr.f32.mxu0 0.0
    %900 = vmatmul.mubr.f32.gmra.mrb[0].mxu0 %v625
    %v901 = vpop.f32.mrb[0].mxu0
    %v902 = vadd.f32 %v831, %v901
    %v903 = vpop.f32.mrb[0].mxu0
    %v904 = vadd.f32 %v833, %v903
    %905 = vdwg.mxu0
    %v906 = vadd.f32 %v902, %v576
    %v907 = vadd.f32 %v904, %v580
    %v908 = vmul.f32 %v906, 0.5
    %v909 = vtanh.pop %v908
    %v910 = vmul.f32 %v909, 0.5
    %v911 = vadd.f32 %v910, 0.5
    %v912 = vtanh.pop %v907
    %v913 = vmul.f32 %v907, 0.5
    %v914 = vtanh.pop %v913
    %v915 = vmul.f32 %v914, 0.5
    %v916 = vadd.f32 %v915, 0.5
    %v917 = vmul.f32 %v911, %v600
    %v918 = vmul.f32 %v911, %v912
    %920 = vrot.lane.b32.xlu0 %v918, 64
    %v921 = vpop.permute.xlu0 %920
    %v923 = vadd.f32 %v917, %v921
    %v924 = vtanh.pop %v923
    %v925 = vmul.f32 %v916, %v924
    %v926 = vld [vmem:[#allocation3] sm:$0xff]
    %v927 = vld [vmem:[#allocation3 + $0x8] sm:$0xff]
    %v928 = vld [vmem:[#allocation3 + $0x10] sm:$0xff]
    %v929 = vld [vmem:[#allocation3 + $0x18] sm:$0xff]
    %v930 = vld [vmem:[#allocation3 + $0x20] sm:$0xff]
    %v931 = vld [vmem:[#allocation3 + $0x28] sm:$0xff]
    %v932 = vld [vmem:[#allocation3 + $0x30] sm:$0xff]
    %v933 = vld [vmem:[#allocation3 + $0x38] sm:$0xff]
    %v934 = vld [vmem:[#allocation3 + $0x40] sm:$0xff]
    %v935 = vld [vmem:[#allocation3 + $0x48] sm:$0xff]
    %v936 = vld [vmem:[#allocation3 + $0x50] sm:$0xff]
    %v937 = vld [vmem:[#allocation3 + $0x58] sm:$0xff]
    %v938 = vld [vmem:[#allocation3 + $0x60] sm:$0xff]
    %v939 = vld [vmem:[#allocation3 + $0x68] sm:$0xff]
    %v940 = vld [vmem:[#allocation3 + $0x70] sm:$0xff]
    %v941 = vld [vmem:[#allocation3 + $0x78] sm:$0xff]
    %v942 = vld [vmem:[#allocation3 + $0x80] sm:$0xff]
    %v943 = vld [vmem:[#allocation3 + $0x88] sm:$0xff]
    %v944 = vld [vmem:[#allocation3 + $0x90] sm:$0xff]
    %v945 = vld [vmem:[#allocation3 + $0x98] sm:$0xff]
    %v946 = vld [vmem:[#allocation3 + $0xa0] sm:$0xff]
    %v947 = vld [vmem:[#allocation3 + $0xa8] sm:$0xff]
    %v948 = vld [vmem:[#allocation3 + $0xb0] sm:$0xff]
    %v949 = vld [vmem:[#allocation3 + $0xb8] sm:$0xff]
    %v950 = vld [vmem:[#allocation3 + $0xc0] sm:$0xff]
    %v951 = vld [vmem:[#allocation3 + $0xc8] sm:$0xff]
    %v952 = vld [vmem:[#allocation3 + $0xd0] sm:$0xff]
    %v953 = vld [vmem:[#allocation3 + $0xd8] sm:$0xff]
    %v954 = vld [vmem:[#allocation3 + $0xe0] sm:$0xff]
    %v955 = vld [vmem:[#allocation3 + $0xe8] sm:$0xff]
    %v956 = vld [vmem:[#allocation3 + $0xf0] sm:$0xff]
    %v957 = vld [vmem:[#allocation3 + $0xf8] sm:$0xff]
    %958 = vmatprep.subr.mxu0 %v943
    %959 = vmatpush1.msra.mxu0 %v942
    %960 = vmatprep.subr.mxu0 %v945
    %961 = vmatpush1.msra.mxu0 %v944
    %962 = vmatprep.subr.mxu0 %v947
    %963 = vmatpush1.msra.mxu0 %v946
    %964 = vmatprep.subr.mxu0 %v949
    %965 = vmatpush1.msra.mxu0 %v948
    %966 = vmatprep.subr.mxu0 %v951
    %967 = vmatpush1.msra.mxu0 %v950
    %968 = vmatprep.subr.mxu0 %v953
    %969 = vmatpush1.msra.mxu0 %v952
    %970 = vmatprep.subr.mxu0 %v955
    %971 = vmatpush1.msra.mxu0 %v954
    %972 = vmatprep.subr.mxu0 %v957
    %973 = vmatpush1.msra.mxu0 %v956
    %974 = vmatprep.subr.mxu0 0.0
    %975 = vmatpush1.msra.mxu0 0.0
    %976 = vmatprep.subr.mxu0 0.0
    %977 = vmatpush1.msra.mxu0 0.0
    %978 = vmatprep.subr.mxu0 0.0
    %979 = vmatpush1.msra.mxu0 0.0
    %980 = vmatprep.subr.mxu0 0.0
    %981 = vmatpush1.msra.mxu0 0.0
    %982 = vmatprep.subr.mxu0 0.0
    %983 = vmatpush1.msra.mxu0 0.0
    %984 = vmatprep.subr.mxu0 0.0
    %985 = vmatpush1.msra.mxu0 0.0
    %986 = vmatprep.subr.mxu0 0.0
    %987 = vmatpush1.msra.mxu0 0.0
    %988 = vmatprep.subr.mxu0 0.0
    %989 = vmatpush1.msra.mxu0 0.0
    %990 = vmatprep.subr.mxu0 0.0
    %991 = vmatpush1.msra.mxu0 0.0
    %992 = vmatprep.subr.mxu0 0.0
    %993 = vmatpush1.msra.mxu0 0.0
    %994 = vmatprep.subr.mxu0 0.0
    %995 = vmatpush1.msra.mxu0 0.0
    %996 = vmatprep.subr.mxu0 0.0
    %997 = vmatpush1.msra.mxu0 0.0
    %998 = vmatprep.subr.mxu0 0.0
    %999 = vmatpush1.msra.mxu0 0.0
    %1000 = vmatprep.subr.mxu0 0.0
    %1001 = vmatpush1.msra.mxu0 0.0
    %1002 = vmatprep.subr.mxu0 0.0
    %1003 = vmatpush1.msra.mxu0 0.0
    %1004 = vmatprep.subr.mxu0 0.0
    %1005 = vmatpush1.msra.mxu0 0.0
    %1006 = vmatprep.subr.mxu0 0.0
    %1007 = vmatpush1.msra.mxu0 0.0
    %1008 = vmatprep.subr.mxu0 0.0
    %1009 = vmatpush1.msra.mxu0 0.0
    %1010 = vmatprep.subr.mxu0 0.0
    %1011 = vmatpush1.msra.mxu0 0.0
    %1012 = vmatprep.subr.mxu0 0.0
    %1013 = vmatpush1.msra.mxu0 0.0
    %1014 = vmatprep.subr.mxu0 0.0
    %1015 = vmatpush1.msra.mxu0 0.0
    %1016 = vmatprep.subr.mxu0 0.0
    %1017 = vmatpush1.msra.mxu0 0.0
    %1018 = vmatprep.subr.mxu0 0.0
    %1019 = vmatpush1.msra.mxu0 0.0
    %1020 = vmatprep.subr.mxu0 0.0
    %1021 = vmatpush1.msra.mxu0 0.0
    %1022 = vmatprep.mubr.f32.mxu0 0.0
    %1023 = vmatmul.mubr.f32.gmra.mrb[0].mxu0 %v180
    %v1024 = vpop.f32.mrb[0].mxu0
    %v1025 = vadd.f32 0.0, %v1024
    %v1026 = vpop.f32.mrb[0].mxu0
    %v1027 = vadd.f32 0.0, %v1026
    %1028 = vdwg.mxu0
    %1029 = vmatprep.subr.mxu0 %v927
    %1030 = vmatpush1.msra.mxu0 %v926
    %1031 = vmatprep.subr.mxu0 %v929
    %1032 = vmatpush1.msra.mxu0 %v928
    %1033 = vmatprep.subr.mxu0 %v931
    %1034 = vmatpush1.msra.mxu0 %v930
    %1035 = vmatprep.subr.mxu0 %v933
    %1036 = vmatpush1.msra.mxu0 %v932
    %1037 = vmatprep.subr.mxu0 %v935
    %1038 = vmatpush1.msra.mxu0 %v934
    %1039 = vmatprep.subr.mxu0 %v937
    %1040 = vmatpush1.msra.mxu0 %v936
    %1041 = vmatprep.subr.mxu0 %v939
    %1042 = vmatpush1.msra.mxu0 %v938
    %1043 = vmatprep.subr.mxu0 %v941
    %1044 = vmatpush1.msra.mxu0 %v940
    %1045 = vmatprep.subr.mxu0 0.0
    %1046 = vmatpush1.msra.mxu0 0.0
    %1047 = vmatprep.subr.mxu0 0.0
    %1048 = vmatpush1.msra.mxu0 0.0
    %1049 = vmatprep.subr.mxu0 0.0
    %1050 = vmatpush1.msra.mxu0 0.0
    %1051 = vmatprep.subr.mxu0 0.0
    %1052 = vmatpush1.msra.mxu0 0.0
    %1053 = vmatprep.subr.mxu0 0.0
    %1054 = vmatpush1.msra.mxu0 0.0
    %1055 = vmatprep.subr.mxu0 0.0
    %1056 = vmatpush1.msra.mxu0 0.0
    %1057 = vmatprep.subr.mxu0 0.0
    %1058 = vmatpush1.msra.mxu0 0.0
    %1059 = vmatprep.subr.mxu0 0.0
    %1060 = vmatpush1.msra.mxu0 0.0
    %1061 = vmatprep.subr.mxu0 0.0
    %1062 = vmatpush1.msra.mxu0 0.0
    %1063 = vmatprep.subr.mxu0 0.0
    %1064 = vmatpush1.msra.mxu0 0.0
    %1065 = vmatprep.subr.mxu0 0.0
    %1066 = vmatpush1.msra.mxu0 0.0
    %1067 = vmatprep.subr.mxu0 0.0
    %1068 = vmatpush1.msra.mxu0 0.0
    %1069 = vmatprep.subr.mxu0 0.0
    %1070 = vmatpush1.msra.mxu0 0.0
    %1071 = vmatprep.subr.mxu0 0.0
    %1072 = vmatpush1.msra.mxu0 0.0
    %1073 = vmatprep.subr.mxu0 0.0
    %1074 = vmatpush1.msra.mxu0 0.0
    %1075 = vmatprep.subr.mxu0 0.0
    %1076 = vmatpush1.msra.mxu0 0.0
    %1077 = vmatprep.subr.mxu0 0.0
    %1078 = vmatpush1.msra.mxu0 0.0
    %1079 = vmatprep.subr.mxu0 0.0
    %1080 = vmatpush1.msra.mxu0 0.0
    %1081 = vmatprep.subr.mxu0 0.0
    %1082 = vmatpush1.msra.mxu0 0.0
    %1083 = vmatprep.subr.mxu0 0.0
    %1084 = vmatpush1.msra.mxu0 0.0
    %1085 = vmatprep.subr.mxu0 0.0
    %1086 = vmatpush1.msra.mxu0 0.0
    %1087 = vmatprep.subr.mxu0 0.0
    %1088 = vmatpush1.msra.mxu0 0.0
    %1089 = vmatprep.subr.mxu0 0.0
    %1090 = vmatpush1.msra.mxu0 0.0
    %1091 = vmatprep.subr.mxu0 0.0
    %1092 = vmatpush1.msra.mxu0 0.0
    %1093 = vmatprep.mubr.f32.mxu0 0.0
    %1094 = vmatmul.mubr.f32.gmra.mrb[0].mxu0 %v762
    %v1095 = vpop.f32.mrb[0].mxu0
    %v1096 = vadd.f32 %v1025, %v1095
    %v1097 = vpop.f32.mrb[0].mxu0
    %v1098 = vadd.f32 %v1027, %v1097
    %1099 = vdwg.mxu0
    %v1101 = vlaneseq
    %v1102 = vshrl.u32 %v1101, 7
    %v1103 = vsub.s32 0, %v1102
    %v1104 = vrot.slane %v60, %v1103
    %v1105 = vlaneseq
    %v1106 = vshrl.u32 %v1105, 7
    %v1107 = vsub.s32 1, %v1106
    %v1108 = vrot.slane %v60, %v1107
    %v1111 = vadd.f32 %v1096, %v1104
    %v1112 = vadd.f32 %v1098, %v1108
    %v1113 = vmul.f32 %v1111, 0.5
    %v1114 = vtanh.pop %v1113
    %v1115 = vmul.f32 %v1114, 0.5
    %v1116 = vadd.f32 %v1115, 0.5
    %v1117 = vtanh.pop %v1112
    %v1118 = vmul.f32 %v1112, 0.5
    %v1119 = vtanh.pop %v1118
    %v1120 = vmul.f32 %v1119, 0.5
    %v1121 = vadd.f32 %v1120, 0.5
    %v1122 = vmul.f32 %v1116, 0.0
    %v1123 = vmul.f32 %v1116, %v1117
    %1125 = vrot.lane.b32.xlu0 %v1123, 64
    %v1126 = vpop.permute.xlu0 %1125
    %v1128 = vadd.f32 %v1122, %v1126
    %v1129 = vtanh.pop %v1128
    %v1130 = vmul.f32 %v1121, %v1129
    %v1132 = vrot.slane %v726, 4
    %1133 = vrot.lane.b32.xlu0 %v1132, 64
    %v1134 = vpop.permute.xlu0 %1133
    %v1135 = vsel %vm178, %v1134, 0
    %1137 = vmatprep.subr.mxu0 %v606
    %1138 = vmatpush1.msra.mxu0 %v605
    %1139 = vmatprep.subr.mxu0 %v608
    %1140 = vmatpush1.msra.mxu0 %v607
    %1141 = vmatprep.subr.mxu0 %v610
    %1142 = vmatpush1.msra.mxu0 %v609
    %1143 = vmatprep.subr.mxu0 %v612
    %1144 = vmatpush1.msra.mxu0 %v611
    %1145 = vmatprep.subr.mxu0 %v614
    %1146 = vmatpush1.msra.mxu0 %v613
    %1147 = vmatprep.subr.mxu0 %v616
    %1148 = vmatpush1.msra.mxu0 %v615
    %1149 = vmatprep.subr.mxu0 %v618
    %1150 = vmatpush1.msra.mxu0 %v617
    %1151 = vmatprep.subr.mxu0 %v620
    %1152 = vmatpush1.msra.mxu0 %v619
    %1153 = vmatprep.subr.mxu0 0.0
    %1154 = vmatpush1.msra.mxu0 0.0
    %1155 = vmatprep.subr.mxu0 0.0
    %1156 = vmatpush1.msra.mxu0 0.0
    %1157 = vmatprep.subr.mxu0 0.0
    %1158 = vmatpush1.msra.mxu0 0.0
    %1159 = vmatprep.subr.mxu0 0.0
    %1160 = vmatpush1.msra.mxu0 0.0
    %1161 = vmatprep.subr.mxu0 0.0
    %1162 = vmatpush1.msra.mxu0 0.0
    %1163 = vmatprep.subr.mxu0 0.0
    %1164 = vmatpush1.msra.mxu0 0.0
    %1165 = vmatprep.subr.mxu0 0.0
    %1166 = vmatpush1.msra.mxu0 0.0
    %1167 = vmatprep.subr.mxu0 0.0
    %1168 = vmatpush1.msra.mxu0 0.0
    %1169 = vmatprep.subr.mxu0 0.0
    %1170 = vmatpush1.msra.mxu0 0.0
    %1171 = vmatprep.subr.mxu0 0.0
    %1172 = vmatpush1.msra.mxu0 0.0
    %1173 = vmatprep.subr.mxu0 0.0
    %1174 = vmatpush1.msra.mxu0 0.0
    %1175 = vmatprep.subr.mxu0 0.0
    %1176 = vmatpush1.msra.mxu0 0.0
    %1177 = vmatprep.subr.mxu0 0.0
    %1178 = vmatpush1.msra.mxu0 0.0
    %1179 = vmatprep.subr.mxu0 0.0
    %1180 = vmatpush1.msra.mxu0 0.0
    %1181 = vmatprep.subr.mxu0 0.0
    %1182 = vmatpush1.msra.mxu0 0.0
    %1183 = vmatprep.subr.mxu0 0.0
    %1184 = vmatpush1.msra.mxu0 0.0
    %1185 = vmatprep.subr.mxu0 0.0
    %1186 = vmatpush1.msra.mxu0 0.0
    %1187 = vmatprep.subr.mxu0 0.0
    %1188 = vmatpush1.msra.mxu0 0.0
    %1189 = vmatprep.subr.mxu0 0.0
    %1190 = vmatpush1.msra.mxu0 0.0
    %1191 = vmatprep.subr.mxu0 0.0
    %1192 = vmatpush1.msra.mxu0 0.0
    %1193 = vmatprep.subr.mxu0 0.0
    %1194 = vmatpush1.msra.mxu0 0.0
    %1195 = vmatprep.subr.mxu0 0.0
    %1196 = vmatpush1.msra.mxu0 0.0
    %1197 = vmatprep.subr.mxu0 0.0
    %1198 = vmatpush1.msra.mxu0 0.0
    %1199 = vmatprep.subr.mxu0 0.0
    %1200 = vmatpush1.msra.mxu0 0.0
    %1201 = vmatprep.mubr.f32.mxu0 0.0
    %1202 = vmatmul.mubr.f32.gmra.mrb[0].mxu0 %v1135
    %v1203 = vpop.f32.mrb[0].mxu0
    %v1204 = vadd.f32 0.0, %v1203
    %v1205 = vpop.f32.mrb[0].mxu0
    %v1206 = vadd.f32 0.0, %v1205
    %1207 = vdwg.mxu0
    %v1210 = vrot.slane %v1204, 2
    %v1211 = vrot.slane %v1206, 2
    %v1214 = vadd.f32 %v152, %v1210
    %v1215 = vadd.f32 %v154, %v1211
    %v1216 = vmul.f32 %v1214, 0.5
    %v1217 = vtanh.pop %v1216
    %v1218 = vmul.f32 %v1217, 0.5
    %v1219 = vadd.f32 %v1218, 0.5
    %v1220 = vtanh.pop %v1215
    %v1221 = vmul.f32 %v1215, 0.5
    %v1222 = vtanh.pop %v1221
    %v1223 = vmul.f32 %v1222, 0.5
    %v1224 = vadd.f32 %v1223, 0.5
    %v1226 = vrot.slane %v724, 6
    %v1228 = vmul.f32 %v1219, %v1226
    %v1229 = vmul.f32 %v1219, %v1220
    %1231 = vrot.lane.b32.xlu0 %v1229, 64
    %v1232 = vpop.permute.xlu0 %1231
    %v1234 = vadd.f32 %v1228, %v1232
    %v1235 = vtanh.pop %v1234
    %v1236 = vmul.f32 %v1224, %v1235
    %1238 = vrot.lane.b32.xlu0 %v925, 64
    %v1239 = vpop.permute.xlu0 %1238
    %v1240 = vsel %vm178, %v1239, 0
    %1242 = vmatprep.subr.mxu0 %v744
    %1243 = vmatpush1.msra.mxu0 %v743
    %1244 = vmatprep.subr.mxu0 %v746
    %1245 = vmatpush1.msra.mxu0 %v745
    %1246 = vmatprep.subr.mxu0 %v748
    %1247 = vmatpush1.msra.mxu0 %v747
    %1248 = vmatprep.subr.mxu0 %v750
    %1249 = vmatpush1.msra.mxu0 %v749
    %1250 = vmatprep.subr.mxu0 %v752
    %1251 = vmatpush1.msra.mxu0 %v751
    %1252 = vmatprep.subr.mxu0 %v754
    %1253 = vmatpush1.msra.mxu0 %v753
    %1254 = vmatprep.subr.mxu0 %v756
    %1255 = vmatpush1.msra.mxu0 %v755
    %1256 = vmatprep.subr.mxu0 %v758
    %1257 = vmatpush1.msra.mxu0 %v757
    %1258 = vmatprep.subr.mxu0 0.0
    %1259 = vmatpush1.msra.mxu0 0.0
    %1260 = vmatprep.subr.mxu0 0.0
    %1261 = vmatpush1.msra.mxu0 0.0
    %1262 = vmatprep.subr.mxu0 0.0
    %1263 = vmatpush1.msra.mxu0 0.0
    %1264 = vmatprep.subr.mxu0 0.0
    %1265 = vmatpush1.msra.mxu0 0.0
    %1266 = vmatprep.subr.mxu0 0.0
    %1267 = vmatpush1.msra.mxu0 0.0
    %1268 = vmatprep.subr.mxu0 0.0
    %1269 = vmatpush1.msra.mxu0 0.0
    %1270 = vmatprep.subr.mxu0 0.0
    %1271 = vmatpush1.msra.mxu0 0.0
    %1272 = vmatprep.subr.mxu0 0.0
    %1273 = vmatpush1.msra.mxu0 0.0
    %1274 = vmatprep.subr.mxu0 0.0
    %1275 = vmatpush1.msra.mxu0 0.0
    %1276 = vmatprep.subr.mxu0 0.0
    %1277 = vmatpush1.msra.mxu0 0.0
    %1278 = vmatprep.subr.mxu0 0.0
    %1279 = vmatpush1.msra.mxu0 0.0
    %1280 = vmatprep.subr.mxu0 0.0
    %1281 = vmatpush1.msra.mxu0 0.0
    %1282 = vmatprep.subr.mxu0 0.0
    %1283 = vmatpush1.msra.mxu0 0.0
    %1284 = vmatprep.subr.mxu0 0.0
    %1285 = vmatpush1.msra.mxu0 0.0
    %1286 = vmatprep.subr.mxu0 0.0
    %1287 = vmatpush1.msra.mxu0 0.0
    %1288 = vmatprep.subr.mxu0 0.0
    %1289 = vmatpush1.msra.mxu0 0.0
    %1290 = vmatprep.subr.mxu0 0.0
    %1291 = vmatpush1.msra.mxu0 0.0
    %1292 = vmatprep.subr.mxu0 0.0
    %1293 = vmatpush1.msra.mxu0 0.0
    %1294 = vmatprep.subr.mxu0 0.0
    %1295 = vmatpush1.msra.mxu0 0.0
    %1296 = vmatprep.subr.mxu0 0.0
    %1297 = vmatpush1.msra.mxu0 0.0
    %1298 = vmatprep.subr.mxu0 0.0
    %1299 = vmatpush1.msra.mxu0 0.0
    %1300 = vmatprep.subr.mxu0 0.0
    %1301 = vmatpush1.msra.mxu0 0.0
    %1302 = vmatprep.subr.mxu0 0.0
    %1303 = vmatpush1.msra.mxu0 0.0
    %1304 = vmatprep.subr.mxu0 0.0
    %1305 = vmatpush1.msra.mxu0 0.0
    %1306 = vmatprep.mubr.f32.mxu0 0.0
    %1307 = vmatmul.mubr.f32.gmra.mrb[0].mxu0 %v1240
    %v1308 = vpop.f32.mrb[0].mxu0
    %v1309 = vadd.f32 0.0, %v1308
    %v1310 = vpop.f32.mrb[0].mxu0
    %v1311 = vadd.f32 0.0, %v1310
    %1312 = vdwg.mxu0
    %1313 = vmatprep.subr.mxu0 %v728
    %1314 = vmatpush1.msra.mxu0 %v727
    %1315 = vmatprep.subr.mxu0 %v730
    %1316 = vmatpush1.msra.mxu0 %v729
    %1317 = vmatprep.subr.mxu0 %v732
    %1318 = vmatpush1.msra.mxu0 %v731
    %1319 = vmatprep.subr.mxu0 %v734
    %1320 = vmatpush1.msra.mxu0 %v733
    %1321 = vmatprep.subr.mxu0 %v736
    %1322 = vmatpush1.msra.mxu0 %v735
    %1323 = vmatprep.subr.mxu0 %v738
    %1324 = vmatpush1.msra.mxu0 %v737
    %1325 = vmatprep.subr.mxu0 %v740
    %1326 = vmatpush1.msra.mxu0 %v739
    %1327 = vmatprep.subr.mxu0 %v742
    %1328 = vmatpush1.msra.mxu0 %v741
    %1329 = vmatprep.subr.mxu0 0.0
    %1330 = vmatpush1.msra.mxu0 0.0
    %1331 = vmatprep.subr.mxu0 0.0
    %1332 = vmatpush1.msra.mxu0 0.0
    %1333 = vmatprep.subr.mxu0 0.0
    %1334 = vmatpush1.msra.mxu0 0.0
    %1335 = vmatprep.subr.mxu0 0.0
    %1336 = vmatpush1.msra.mxu0 0.0
    %1337 = vmatprep.subr.mxu0 0.0
    %1338 = vmatpush1.msra.mxu0 0.0
    %1339 = vmatprep.subr.mxu0 0.0
    %1340 = vmatpush1.msra.mxu0 0.0
    %1341 = vmatprep.subr.mxu0 0.0
    %1342 = vmatpush1.msra.mxu0 0.0
    %1343 = vmatprep.subr.mxu0 0.0
    %1344 = vmatpush1.msra.mxu0 0.0
    %1345 = vmatprep.subr.mxu0 0.0
    %1346 = vmatpush1.msra.mxu0 0.0
    %1347 = vmatprep.subr.mxu0 0.0
    %1348 = vmatpush1.msra.mxu0 0.0
    %1349 = vmatprep.subr.mxu0 0.0
    %1350 = vmatpush1.msra.mxu0 0.0
    %1351 = vmatprep.subr.mxu0 0.0
    %1352 = vmatpush1.msra.mxu0 0.0
    %1353 = vmatprep.subr.mxu0 0.0
    %1354 = vmatpush1.msra.mxu0 0.0
    %1355 = vmatprep.subr.mxu0 0.0
    %1356 = vmatpush1.msra.mxu0 0.0
    %1357 = vmatprep.subr.mxu0 0.0
    %1358 = vmatpush1.msra.mxu0 0.0
    %1359 = vmatprep.subr.mxu0 0.0
    %1360 = vmatpush1.msra.mxu0 0.0
    %1361 = vmatprep.subr.mxu0 0.0
    %1362 = vmatpush1.msra.mxu0 0.0
    %1363 = vmatprep.subr.mxu0 0.0
    %1364 = vmatpush1.msra.mxu0 0.0
    %1365 = vmatprep.subr.mxu0 0.0
    %1366 = vmatpush1.msra.mxu0 0.0
    %1367 = vmatprep.subr.mxu0 0.0
    %1368 = vmatpush1.msra.mxu0 0.0
    %1369 = vmatprep.subr.mxu0 0.0
    %1370 = vmatpush1.msra.mxu0 0.0
    %1371 = vmatprep.subr.mxu0 0.0
    %1372 = vmatpush1.msra.mxu0 0.0
    %1373 = vmatprep.subr.mxu0 0.0
    %1374 = vmatpush1.msra.mxu0 0.0
    %1375 = vmatprep.subr.mxu0 0.0
    %1376 = vmatpush1.msra.mxu0 0.0
    %1377 = vmatprep.mubr.f32.mxu0 0.0
    %1378 = vmatmul.mubr.f32.gmra.mrb[0].mxu0 %v1135
    %v1379 = vpop.f32.mrb[0].mxu0
    %v1380 = vadd.f32 %v1309, %v1379
    %v1381 = vpop.f32.mrb[0].mxu0
    %v1382 = vadd.f32 %v1311, %v1381
    %1383 = vdwg.mxu0
    %v1384 = vadd.f32 %v1380, %v576
    %v1385 = vadd.f32 %v1382, %v580
    %v1386 = vmul.f32 %v1384, 0.5
    %v1387 = vtanh.pop %v1386
    %v1388 = vmul.f32 %v1387, 0.5
    %v1389 = vadd.f32 %v1388, 0.5
    %v1390 = vtanh.pop %v1385
    %v1391 = vmul.f32 %v1385, 0.5
    %v1392 = vtanh.pop %v1391
    %v1393 = vmul.f32 %v1392, 0.5
    %v1394 = vadd.f32 %v1393, 0.5
    %v1395 = vmul.f32 %v1389, %v923
    %v1396 = vmul.f32 %v1389, %v1390
    %1398 = vrot.lane.b32.xlu0 %v1396, 64
    %v1399 = vpop.permute.xlu0 %1398
    %v1401 = vadd.f32 %v1395, %v1399
    %v1402 = vtanh.pop %v1401
    %v1403 = vmul.f32 %v1394, %v1402
    %1405 = vrot.lane.b32.xlu0 %v1130, 64
    %v1406 = vpop.permute.xlu0 %1405
    %v1407 = vsel %vm178, %v1406, 0
    %1409 = vmatprep.subr.mxu0 %v943
    %1410 = vmatpush1.msra.mxu0 %v942
    %1411 = vmatprep.subr.mxu0 %v945
    %1412 = vmatpush1.msra.mxu0 %v944
    %1413 = vmatprep.subr.mxu0 %v947
    %1414 = vmatpush1.msra.mxu0 %v946
    %1415 = vmatprep.subr.mxu0 %v949
    %1416 = vmatpush1.msra.mxu0 %v948
    %1417 = vmatprep.subr.mxu0 %v951
    %1418 = vmatpush1.msra.mxu0 %v950
    %1419 = vmatprep.subr.mxu0 %v953
    %1420 = vmatpush1.msra.mxu0 %v952
    %1421 = vmatprep.subr.mxu0 %v955
    %1422 = vmatpush1.msra.mxu0 %v954
    %1423 = vmatprep.subr.mxu0 %v957
    %1424 = vmatpush1.msra.mxu0 %v956
    %1425 = vmatprep.subr.mxu0 0.0
    %1426 = vmatpush1.msra.mxu0 0.0
    %1427 = vmatprep.subr.mxu0 0.0
    %1428 = vmatpush1.msra.mxu0 0.0
    %1429 = vmatprep.subr.mxu0 0.0
    %1430 = vmatpush1.msra.mxu0 0.0
    %1431 = vmatprep.subr.mxu0 0.0
    %1432 = vmatpush1.msra.mxu0 0.0
    %1433 = vmatprep.subr.mxu0 0.0
    %1434 = vmatpush1.msra.mxu0 0.0
    %1435 = vmatprep.subr.mxu0 0.0
    %1436 = vmatpush1.msra.mxu0 0.0
    %1437 = vmatprep.subr.mxu0 0.0
    %1438 = vmatpush1.msra.mxu0 0.0
    %1439 = vmatprep.subr.mxu0 0.0
    %1440 = vmatpush1.msra.mxu0 0.0
    %1441 = vmatprep.subr.mxu0 0.0
    %1442 = vmatpush1.msra.mxu0 0.0
    %1443 = vmatprep.subr.mxu0 0.0
    %1444 = vmatpush1.msra.mxu0 0.0
    %1445 = vmatprep.subr.mxu0 0.0
    %1446 = vmatpush1.msra.mxu0 0.0
    %1447 = vmatprep.subr.mxu0 0.0
    %1448 = vmatpush1.msra.mxu0 0.0
    %1449 = vmatprep.subr.mxu0 0.0
    %1450 = vmatpush1.msra.mxu0 0.0
    %1451 = vmatprep.subr.mxu0 0.0
    %1452 = vmatpush1.msra.mxu0 0.0
    %1453 = vmatprep.subr.mxu0 0.0
    %1454 = vmatpush1.msra.mxu0 0.0
    %1455 = vmatprep.subr.mxu0 0.0
    %1456 = vmatpush1.msra.mxu0 0.0
    %1457 = vmatprep.subr.mxu0 0.0
    %1458 = vmatpush1.msra.mxu0 0.0
    %1459 = vmatprep.subr.mxu0 0.0
    %1460 = vmatpush1.msra.mxu0 0.0
    %1461 = vmatprep.subr.mxu0 0.0
    %1462 = vmatpush1.msra.mxu0 0.0
    %1463 = vmatprep.subr.mxu0 0.0
    %1464 = vmatpush1.msra.mxu0 0.0
    %1465 = vmatprep.subr.mxu0 0.0
    %1466 = vmatpush1.msra.mxu0 0.0
    %1467 = vmatprep.subr.mxu0 0.0
    %1468 = vmatpush1.msra.mxu0 0.0
    %1469 = vmatprep.subr.mxu0 0.0
    %1470 = vmatpush1.msra.mxu0 0.0
    %1471 = vmatprep.subr.mxu0 0.0
    %1472 = vmatpush1.msra.mxu0 0.0
    %1473 = vmatprep.mubr.f32.mxu0 0.0
    %1474 = vmatmul.mubr.f32.gmra.mrb[0].mxu0 %v1407
    %v1475 = vpop.f32.mrb[0].mxu0
    %v1476 = vadd.f32 0.0, %v1475
    %v1477 = vpop.f32.mrb[0].mxu0
    %v1478 = vadd.f32 0.0, %v1477
    %1479 = vdwg.mxu0
    %1480 = vmatprep.subr.mxu0 %v927
    %1481 = vmatpush1.msra.mxu0 %v926
    %1482 = vmatprep.subr.mxu0 %v929
    %1483 = vmatpush1.msra.mxu0 %v928
    %1484 = vmatprep.subr.mxu0 %v931
    %1485 = vmatpush1.msra.mxu0 %v930
    %1486 = vmatprep.subr.mxu0 %v933
    %1487 = vmatpush1.msra.mxu0 %v932
    %1488 = vmatprep.subr.mxu0 %v935
    %1489 = vmatpush1.msra.mxu0 %v934
    %1490 = vmatprep.subr.mxu0 %v937
    %1491 = vmatpush1.msra.mxu0 %v936
    %1492 = vmatprep.subr.mxu0 %v939
    %1493 = vmatpush1.msra.mxu0 %v938
    %1494 = vmatprep.subr.mxu0 %v941
    %1495 = vmatpush1.msra.mxu0 %v940
    %1496 = vmatprep.subr.mxu0 0.0
    %1497 = vmatpush1.msra.mxu0 0.0
    %1498 = vmatprep.subr.mxu0 0.0
    %1499 = vmatpush1.msra.mxu0 0.0
    %1500 = vmatprep.subr.mxu0 0.0
    %1501 = vmatpush1.msra.mxu0 0.0
    %1502 = vmatprep.subr.mxu0 0.0
    %1503 = vmatpush1.msra.mxu0 0.0
    %1504 = vmatprep.subr.mxu0 0.0
    %1505 = vmatpush1.msra.mxu0 0.0
    %1506 = vmatprep.subr.mxu0 0.0
    %1507 = vmatpush1.msra.mxu0 0.0
    %1508 = vmatprep.subr.mxu0 0.0
    %1509 = vmatpush1.msra.mxu0 0.0
    %1510 = vmatprep.subr.mxu0 0.0
    %1511 = vmatpush1.msra.mxu0 0.0
    %1512 = vmatprep.subr.mxu0 0.0
    %1513 = vmatpush1.msra.mxu0 0.0
    %1514 = vmatprep.subr.mxu0 0.0
    %1515 = vmatpush1.msra.mxu0 0.0
    %1516 = vmatprep.subr.mxu0 0.0
    %1517 = vmatpush1.msra.mxu0 0.0
    %1518 = vmatprep.subr.mxu0 0.0
    %1519 = vmatpush1.msra.mxu0 0.0
    %1520 = vmatprep.subr.mxu0 0.0
    %1521 = vmatpush1.msra.mxu0 0.0
    %1522 = vmatprep.subr.mxu0 0.0
    %1523 = vmatpush1.msra.mxu0 0.0
    %1524 = vmatprep.subr.mxu0 0.0
    %1525 = vmatpush1.msra.mxu0 0.0
    %1526 = vmatprep.subr.mxu0 0.0
    %1527 = vmatpush1.msra.mxu0 0.0
    %1528 = vmatprep.subr.mxu0 0.0
    %1529 = vmatpush1.msra.mxu0 0.0
    %1530 = vmatprep.subr.mxu0 0.0
    %1531 = vmatpush1.msra.mxu0 0.0
    %1532 = vmatprep.subr.mxu0 0.0
    %1533 = vmatpush1.msra.mxu0 0.0
    %1534 = vmatprep.subr.mxu0 0.0
    %1535 = vmatpush1.msra.mxu0 0.0
    %1536 = vmatprep.subr.mxu0 0.0
    %1537 = vmatpush1.msra.mxu0 0.0
    %1538 = vmatprep.subr.mxu0 0.0
    %1539 = vmatpush1.msra.mxu0 0.0
    %1540 = vmatprep.subr.mxu0 0.0
    %1541 = vmatpush1.msra.mxu0 0.0
    %1542 = vmatprep.subr.mxu0 0.0
    %1543 = vmatpush1.msra.mxu0 0.0
    %1544 = vmatprep.mubr.f32.mxu0 0.0
    %1545 = vmatmul.mubr.f32.gmra.mrb[0].mxu0 %v1240
    %v1546 = vpop.f32.mrb[0].mxu0
    %v1547 = vadd.f32 %v1476, %v1546
    %v1548 = vpop.f32.mrb[0].mxu0
    %v1549 = vadd.f32 %v1478, %v1548
    %1550 = vdwg.mxu0
    %v1551 = vadd.f32 %v1547, %v1104
    %v1552 = vadd.f32 %v1549, %v1108
    %v1553 = vmul.f32 %v1551, 0.5
    %v1554 = vtanh.pop %v1553
    %v1555 = vmul.f32 %v1554, 0.5
    %v1556 = vadd.f32 %v1555, 0.5
    %v1557 = vtanh.pop %v1552
    %v1558 = vmul.f32 %v1552, 0.5
    %v1559 = vtanh.pop %v1558
    %v1560 = vmul.f32 %v1559, 0.5
    %v1561 = vadd.f32 %v1560, 0.5
    %v1562 = vmul.f32 %v1556, %v1128
    %v1563 = vmul.f32 %v1556, %v1557
    %1565 = vrot.lane.b32.xlu0 %v1563, 64
    %v1566 = vpop.permute.xlu0 %1565
    %v1568 = vadd.f32 %v1562, %v1566
    %v1569 = vtanh.pop %v1568
    %v1570 = vmul.f32 %v1561, %v1569
    %v1572 = vrot.slane %v1236, 6
    %1573 = vrot.lane.b32.xlu0 %v1572, 64
    %v1574 = vpop.permute.xlu0 %1573
    %v1575 = vsel %vm178, %v1574, 0
    %1577 = vmatprep.subr.mxu0 %v606
    %1578 = vmatpush1.msra.mxu0 %v605
    %1579 = vmatprep.subr.mxu0 %v608
    %1580 = vmatpush1.msra.mxu0 %v607
    %1581 = vmatprep.subr.mxu0 %v610
    %1582 = vmatpush1.msra.mxu0 %v609
    %1583 = vmatprep.subr.mxu0 %v612
    %1584 = vmatpush1.msra.mxu0 %v611
    %1585 = vmatprep.subr.mxu0 %v614
    %1586 = vmatpush1.msra.mxu0 %v613
    %1587 = vmatprep.subr.mxu0 %v616
    %1588 = vmatpush1.msra.mxu0 %v615
    %1589 = vmatprep.subr.mxu0 %v618
    %1590 = vmatpush1.msra.mxu0 %v617
    %1591 = vmatprep.subr.mxu0 %v620
    %1592 = vmatpush1.msra.mxu0 %v619
    %1593 = vmatprep.subr.mxu0 0.0
    %1594 = vmatpush1.msra.mxu0 0.0
    %1595 = vmatprep.subr.mxu0 0.0
    %1596 = vmatpush1.msra.mxu0 0.0
    %1597 = vmatprep.subr.mxu0 0.0
    %1598 = vmatpush1.msra.mxu0 0.0
    %1599 = vmatprep.subr.mxu0 0.0
    %1600 = vmatpush1.msra.mxu0 0.0
    %1601 = vmatprep.subr.mxu0 0.0
    %1602 = vmatpush1.msra.mxu0 0.0
    %1603 = vmatprep.subr.mxu0 0.0
    %1604 = vmatpush1.msra.mxu0 0.0
    %1605 = vmatprep.subr.mxu0 0.0
    %1606 = vmatpush1.msra.mxu0 0.0
    %1607 = vmatprep.subr.mxu0 0.0
    %1608 = vmatpush1.msra.mxu0 0.0
    %1609 = vmatprep.subr.mxu0 0.0
    %1610 = vmatpush1.msra.mxu0 0.0
    %1611 = vmatprep.subr.mxu0 0.0
    %1612 = vmatpush1.msra.mxu0 0.0
    %1613 = vmatprep.subr.mxu0 0.0
    %1614 = vmatpush1.msra.mxu0 0.0
    %1615 = vmatprep.subr.mxu0 0.0
    %1616 = vmatpush1.msra.mxu0 0.0
    %1617 = vmatprep.subr.mxu0 0.0
    %1618 = vmatpush1.msra.mxu0 0.0
    %1619 = vmatprep.subr.mxu0 0.0
    %1620 = vmatpush1.msra.mxu0 0.0
    %1621 = vmatprep.subr.mxu0 0.0
    %1622 = vmatpush1.msra.mxu0 0.0
    %1623 = vmatprep.subr.mxu0 0.0
    %1624 = vmatpush1.msra.mxu0 0.0
    %1625 = vmatprep.subr.mxu0 0.0
    %1626 = vmatpush1.msra.mxu0 0.0
    %1627 = vmatprep.subr.mxu0 0.0
    %1628 = vmatpush1.msra.mxu0 0.0
    %1629 = vmatprep.subr.mxu0 0.0
    %1630 = vmatpush1.msra.mxu0 0.0
    %1631 = vmatprep.subr.mxu0 0.0
    %1632 = vmatpush1.msra.mxu0 0.0
    %1633 = vmatprep.subr.mxu0 0.0
    %1634 = vmatpush1.msra.mxu0 0.0
    %1635 = vmatprep.subr.mxu0 0.0
    %1636 = vmatpush1.msra.mxu0 0.0
    %1637 = vmatprep.subr.mxu0 0.0
    %1638 = vmatpush1.msra.mxu0 0.0
    %1639 = vmatprep.subr.mxu0 0.0
    %1640 = vmatpush1.msra.mxu0 0.0
    %1641 = vmatprep.mubr.f32.mxu0 0.0
    %1642 = vmatmul.mubr.f32.gmra.mrb[0].mxu0 %v1575
    %v1643 = vpop.f32.mrb[0].mxu0
    %v1644 = vadd.f32 0.0, %v1643
    %v1645 = vpop.f32.mrb[0].mxu0
    %v1646 = vadd.f32 0.0, %v1645
    %1647 = vdwg.mxu0
    %v1648 = vadd.f32 %v158, %v1644
    %v1649 = vadd.f32 %v160, %v1646
    %v1650 = vmul.f32 %v1648, 0.5
    %v1651 = vtanh.pop %v1650
    %v1652 = vmul.f32 %v1651, 0.5
    %v1653 = vadd.f32 %v1652, 0.5
    %v1654 = vtanh.pop %v1649
    %v1655 = vmul.f32 %v1649, 0.5
    %v1656 = vtanh.pop %v1655
    %v1657 = vmul.f32 %v1656, 0.5
    %v1658 = vadd.f32 %v1657, 0.5
    %v1660 = vrot.slane %v1234, 6
    %v1662 = vmul.f32 %v1653, %v1660
    %v1663 = vmul.f32 %v1653, %v1654
    %1665 = vrot.lane.b32.xlu0 %v1663, 64
    %v1666 = vpop.permute.xlu0 %1665
    %v1668 = vadd.f32 %v1662, %v1666
    %v1669 = vtanh.pop %v1668
    %v1670 = vmul.f32 %v1658, %v1669
    %1672 = vrot.lane.b32.xlu0 %v1403, 64
    %v1673 = vpop.permute.xlu0 %1672
    %v1674 = vsel %vm178, %v1673, 0
    %1676 = vmatprep.subr.mxu0 %v744
    %1677 = vmatpush1.msra.mxu0 %v743
    %1678 = vmatprep.subr.mxu0 %v746
    %1679 = vmatpush1.msra.mxu0 %v745
    %1680 = vmatprep.subr.mxu0 %v748
    %1681 = vmatpush1.msra.mxu0 %v747
    %1682 = vmatprep.subr.mxu0 %v750
    %1683 = vmatpush1.msra.mxu0 %v749
    %1684 = vmatprep.subr.mxu0 %v752
    %1685 = vmatpush1.msra.mxu0 %v751
    %1686 = vmatprep.subr.mxu0 %v754
    %1687 = vmatpush1.msra.mxu0 %v753
    %1688 = vmatprep.subr.mxu0 %v756
    %1689 = vmatpush1.msra.mxu0 %v755
    %1690 = vmatprep.subr.mxu0 %v758
    %1691 = vmatpush1.msra.mxu0 %v757
    %1692 = vmatprep.subr.mxu0 0.0
    %1693 = vmatpush1.msra.mxu0 0.0
    %1694 = vmatprep.subr.mxu0 0.0
    %1695 = vmatpush1.msra.mxu0 0.0
    %1696 = vmatprep.subr.mxu0 0.0
    %1697 = vmatpush1.msra.mxu0 0.0
    %1698 = vmatprep.subr.mxu0 0.0
    %1699 = vmatpush1.msra.mxu0 0.0
    %1700 = vmatprep.subr.mxu0 0.0
    %1701 = vmatpush1.msra.mxu0 0.0
    %1702 = vmatprep.subr.mxu0 0.0
    %1703 = vmatpush1.msra.mxu0 0.0
    %1704 = vmatprep.subr.mxu0 0.0
    %1705 = vmatpush1.msra.mxu0 0.0
    %1706 = vmatprep.subr.mxu0 0.0
    %1707 = vmatpush1.msra.mxu0 0.0
    %1708 = vmatprep.subr.mxu0 0.0
    %1709 = vmatpush1.msra.mxu0 0.0
    %1710 = vmatprep.subr.mxu0 0.0
    %1711 = vmatpush1.msra.mxu0 0.0
    %1712 = vmatprep.subr.mxu0 0.0
    %1713 = vmatpush1.msra.mxu0 0.0
    %1714 = vmatprep.subr.mxu0 0.0
    %1715 = vmatpush1.msra.mxu0 0.0
    %1716 = vmatprep.subr.mxu0 0.0
    %1717 = vmatpush1.msra.mxu0 0.0
    %1718 = vmatprep.subr.mxu0 0.0
    %1719 = vmatpush1.msra.mxu0 0.0
    %1720 = vmatprep.subr.mxu0 0.0
    %1721 = vmatpush1.msra.mxu0 0.0
    %1722 = vmatprep.subr.mxu0 0.0
    %1723 = vmatpush1.msra.mxu0 0.0
    %1724 = vmatprep.subr.mxu0 0.0
    %1725 = vmatpush1.msra.mxu0 0.0
    %1726 = vmatprep.subr.mxu0 0.0
    %1727 = vmatpush1.msra.mxu0 0.0
    %1728 = vmatprep.subr.mxu0 0.0
    %1729 = vmatpush1.msra.mxu0 0.0
    %1730 = vmatprep.subr.mxu0 0.0
    %1731 = vmatpush1.msra.mxu0 0.0
    %1732 = vmatprep.subr.mxu0 0.0
    %1733 = vmatpush1.msra.mxu0 0.0
    %1734 = vmatprep.subr.mxu0 0.0
    %1735 = vmatpush1.msra.mxu0 0.0
    %1736 = vmatprep.subr.mxu0 0.0
    %1737 = vmatpush1.msra.mxu0 0.0
    %1738 = vmatprep.subr.mxu0 0.0
    %1739 = vmatpush1.msra.mxu0 0.0
    %1740 = vmatprep.mubr.f32.mxu0 0.0
    %1741 = vmatmul.mubr.f32.gmra.mrb[0].mxu0 %v1674
    %v1742 = vpop.f32.mrb[0].mxu0
    %v1743 = vadd.f32 0.0, %v1742
    %v1744 = vpop.f32.mrb[0].mxu0
    %v1745 = vadd.f32 0.0, %v1744
    %1746 = vdwg.mxu0
    %1747 = vmatprep.subr.mxu0 %v728
    %1748 = vmatpush1.msra.mxu0 %v727
    %1749 = vmatprep.subr.mxu0 %v730
    %1750 = vmatpush1.msra.mxu0 %v729
    %1751 = vmatprep.subr.mxu0 %v732
    %1752 = vmatpush1.msra.mxu0 %v731
    %1753 = vmatprep.subr.mxu0 %v734
    %1754 = vmatpush1.msra.mxu0 %v733
    %1755 = vmatprep.subr.mxu0 %v736
    %1756 = vmatpush1.msra.mxu0 %v735
    %1757 = vmatprep.subr.mxu0 %v738
    %1758 = vmatpush1.msra.mxu0 %v737
    %1759 = vmatprep.subr.mxu0 %v740
    %1760 = vmatpush1.msra.mxu0 %v739
    %1761 = vmatprep.subr.mxu0 %v742
    %1762 = vmatpush1.msra.mxu0 %v741
    %1763 = vmatprep.subr.mxu0 0.0
    %1764 = vmatpush1.msra.mxu0 0.0
    %1765 = vmatprep.subr.mxu0 0.0
    %1766 = vmatpush1.msra.mxu0 0.0
    %1767 = vmatprep.subr.mxu0 0.0
    %1768 = vmatpush1.msra.mxu0 0.0
    %1769 = vmatprep.subr.mxu0 0.0
    %1770 = vmatpush1.msra.mxu0 0.0
    %1771 = vmatprep.subr.mxu0 0.0
    %1772 = vmatpush1.msra.mxu0 0.0
    %1773 = vmatprep.subr.mxu0 0.0
    %1774 = vmatpush1.msra.mxu0 0.0
    %1775 = vmatprep.subr.mxu0 0.0
    %1776 = vmatpush1.msra.mxu0 0.0
    %1777 = vmatprep.subr.mxu0 0.0
    %1778 = vmatpush1.msra.mxu0 0.0
    %1779 = vmatprep.subr.mxu0 0.0
    %1780 = vmatpush1.msra.mxu0 0.0
    %1781 = vmatprep.subr.mxu0 0.0
    %1782 = vmatpush1.msra.mxu0 0.0
    %1783 = vmatprep.subr.mxu0 0.0
    %1784 = vmatpush1.msra.mxu0 0.0
    %1785 = vmatprep.subr.mxu0 0.0
    %1786 = vmatpush1.msra.mxu0 0.0
    %1787 = vmatprep.subr.mxu0 0.0
    %1788 = vmatpush1.msra.mxu0 0.0
    %1789 = vmatprep.subr.mxu0 0.0
    %1790 = vmatpush1.msra.mxu0 0.0
    %1791 = vmatprep.subr.mxu0 0.0
    %1792 = vmatpush1.msra.mxu0 0.0
    %1793 = vmatprep.subr.mxu0 0.0
    %1794 = vmatpush1.msra.mxu0 0.0
    %1795 = vmatprep.subr.mxu0 0.0
    %1796 = vmatpush1.msra.mxu0 0.0
    %1797 = vmatprep.subr.mxu0 0.0
    %1798 = vmatpush1.msra.mxu0 0.0
    %1799 = vmatprep.subr.mxu0 0.0
    %1800 = vmatpush1.msra.mxu0 0.0
    %1801 = vmatprep.subr.mxu0 0.0
    %1802 = vmatpush1.msra.mxu0 0.0
    %1803 = vmatprep.subr.mxu0 0.0
    %1804 = vmatpush1.msra.mxu0 0.0
    %1805 = vmatprep.subr.mxu0 0.0
    %1806 = vmatpush1.msra.mxu0 0.0
    %1807 = vmatprep.subr.mxu0 0.0
    %1808 = vmatpush1.msra.mxu0 0.0
    %1809 = vmatprep.subr.mxu0 0.0
    %1810 = vmatpush1.msra.mxu0 0.0
    %1811 = vmatprep.mubr.f32.mxu0 0.0
    %1812 = vmatmul.mubr.f32.gmra.mrb[0].mxu0 %v1575
    %v1813 = vpop.f32.mrb[0].mxu0
    %v1814 = vadd.f32 %v1743, %v1813
    %v1815 = vpop.f32.mrb[0].mxu0
    %v1816 = vadd.f32 %v1745, %v1815
    %1817 = vdwg.mxu0
    %v1818 = vadd.f32 %v1814, %v576
    %v1819 = vadd.f32 %v1816, %v580
    %v1820 = vmul.f32 %v1818, 0.5
    %v1821 = vtanh.pop %v1820
    %v1822 = vmul.f32 %v1821, 0.5
    %v1823 = vadd.f32 %v1822, 0.5
    %v1824 = vtanh.pop %v1819
    %v1825 = vmul.f32 %v1819, 0.5
    %v1826 = vtanh.pop %v1825
    %v1827 = vmul.f32 %v1826, 0.5
    %v1828 = vadd.f32 %v1827, 0.5
    %v1829 = vmul.f32 %v1823, %v1401
    %v1830 = vmul.f32 %v1823, %v1824
    %1832 = vrot.lane.b32.xlu0 %v1830, 64
    %v1833 = vpop.permute.xlu0 %1832
    %v1835 = vadd.f32 %v1829, %v1833
    %v1836 = vtanh.pop %v1835
    %v1837 = vmul.f32 %v1828, %v1836
    %1839 = vrot.lane.b32.xlu0 %v1570, 64
    %v1840 = vpop.permute.xlu0 %1839
    %v1841 = vsel %vm178, %v1840, 0
    %1843 = vmatprep.subr.mxu0 %v943
    %1844 = vmatpush1.msra.mxu0 %v942
    %1845 = vmatprep.subr.mxu0 %v945
    %1846 = vmatpush1.msra.mxu0 %v944
    %1847 = vmatprep.subr.mxu0 %v947
    %1848 = vmatpush1.msra.mxu0 %v946
    %1849 = vmatprep.subr.mxu0 %v949
    %1850 = vmatpush1.msra.mxu0 %v948
    %1851 = vmatprep.subr.mxu0 %v951
    %1852 = vmatpush1.msra.mxu0 %v950
    %1853 = vmatprep.subr.mxu0 %v953
    %1854 = vmatpush1.msra.mxu0 %v952
    %1855 = vmatprep.subr.mxu0 %v955
    %1856 = vmatpush1.msra.mxu0 %v954
    %1857 = vmatprep.subr.mxu0 %v957
    %1858 = vmatpush1.msra.mxu0 %v956
    %1859 = vmatprep.subr.mxu0 0.0
    %1860 = vmatpush1.msra.mxu0 0.0
    %1861 = vmatprep.subr.mxu0 0.0
    %1862 = vmatpush1.msra.mxu0 0.0
    %1863 = vmatprep.subr.mxu0 0.0
    %1864 = vmatpush1.msra.mxu0 0.0
    %1865 = vmatprep.subr.mxu0 0.0
    %1866 = vmatpush1.msra.mxu0 0.0
    %1867 = vmatprep.subr.mxu0 0.0
    %1868 = vmatpush1.msra.mxu0 0.0
    %1869 = vmatprep.subr.mxu0 0.0
    %1870 = vmatpush1.msra.mxu0 0.0
    %1871 = vmatprep.subr.mxu0 0.0
    %1872 = vmatpush1.msra.mxu0 0.0
    %1873 = vmatprep.subr.mxu0 0.0
    %1874 = vmatpush1.msra.mxu0 0.0
    %1875 = vmatprep.subr.mxu0 0.0
    %1876 = vmatpush1.msra.mxu0 0.0
    %1877 = vmatprep.subr.mxu0 0.0
    %1878 = vmatpush1.msra.mxu0 0.0
    %1879 = vmatprep.subr.mxu0 0.0
    %1880 = vmatpush1.msra.mxu0 0.0
    %1881 = vmatprep.subr.mxu0 0.0
    %1882 = vmatpush1.msra.mxu0 0.0
    %1883 = vmatprep.subr.mxu0 0.0
    %1884 = vmatpush1.msra.mxu0 0.0
    %1885 = vmatprep.subr.mxu0 0.0
    %1886 = vmatpush1.msra.mxu0 0.0
    %1887 = vmatprep.subr.mxu0 0.0
    %1888 = vmatpush1.msra.mxu0 0.0
    %1889 = vmatprep.subr.mxu0 0.0
    %1890 = vmatpush1.msra.mxu0 0.0
    %1891 = vmatprep.subr.mxu0 0.0
    %1892 = vmatpush1.msra.mxu0 0.0
    %1893 = vmatprep.subr.mxu0 0.0
    %1894 = vmatpush1.msra.mxu0 0.0
    %1895 = vmatprep.subr.mxu0 0.0
    %1896 = vmatpush1.msra.mxu0 0.0
    %1897 = vmatprep.subr.mxu0 0.0
    %1898 = vmatpush1.msra.mxu0 0.0
    %1899 = vmatprep.subr.mxu0 0.0
    %1900 = vmatpush1.msra.mxu0 0.0
    %1901 = vmatprep.subr.mxu0 0.0
    %1902 = vmatpush1.msra.mxu0 0.0
    %1903 = vmatprep.subr.mxu0 0.0
    %1904 = vmatpush1.msra.mxu0 0.0
    %1905 = vmatprep.subr.mxu0 0.0
    %1906 = vmatpush1.msra.mxu0 0.0
    %1907 = vmatprep.mubr.f32.mxu0 0.0
    %1908 = vmatmul.mubr.f32.gmra.mrb[0].mxu0 %v1841
    %v1909 = vpop.f32.mrb[0].mxu0
    %v1910 = vadd.f32 0.0, %v1909
    %v1911 = vpop.f32.mrb[0].mxu0
    %v1912 = vadd.f32 0.0, %v1911
    %1913 = vdwg.mxu0
    %1914 = vmatprep.subr.mxu0 %v927
    %1915 = vmatpush1.msra.mxu0 %v926
    %1916 = vmatprep.subr.mxu0 %v929
    %1917 = vmatpush1.msra.mxu0 %v928
    %1918 = vmatprep.subr.mxu0 %v931
    %1919 = vmatpush1.msra.mxu0 %v930
    %1920 = vmatprep.subr.mxu0 %v933
    %1921 = vmatpush1.msra.mxu0 %v932
    %1922 = vmatprep.subr.mxu0 %v935
    %1923 = vmatpush1.msra.mxu0 %v934
    %1924 = vmatprep.subr.mxu0 %v937
    %1925 = vmatpush1.msra.mxu0 %v936
    %1926 = vmatprep.subr.mxu0 %v939
    %1927 = vmatpush1.msra.mxu0 %v938
    %1928 = vmatprep.subr.mxu0 %v941
    %1929 = vmatpush1.msra.mxu0 %v940
    %1930 = vmatprep.subr.mxu0 0.0
    %1931 = vmatpush1.msra.mxu0 0.0
    %1932 = vmatprep.subr.mxu0 0.0
    %1933 = vmatpush1.msra.mxu0 0.0
    %1934 = vmatprep.subr.mxu0 0.0
    %1935 = vmatpush1.msra.mxu0 0.0
    %1936 = vmatprep.subr.mxu0 0.0
    %1937 = vmatpush1.msra.mxu0 0.0
    %1938 = vmatprep.subr.mxu0 0.0
    %1939 = vmatpush1.msra.mxu0 0.0
    %1940 = vmatprep.subr.mxu0 0.0
    %1941 = vmatpush1.msra.mxu0 0.0
    %1942 = vmatprep.subr.mxu0 0.0
    %1943 = vmatpush1.msra.mxu0 0.0
    %1944 = vmatprep.subr.mxu0 0.0
    %1945 = vmatpush1.msra.mxu0 0.0
    %1946 = vmatprep.subr.mxu0 0.0
    %1947 = vmatpush1.msra.mxu0 0.0
    %1948 = vmatprep.subr.mxu0 0.0
    %1949 = vmatpush1.msra.mxu0 0.0
    %1950 = vmatprep.subr.mxu0 0.0
    %1951 = vmatpush1.msra.mxu0 0.0
    %1952 = vmatprep.subr.mxu0 0.0
    %1953 = vmatpush1.msra.mxu0 0.0
    %1954 = vmatprep.subr.mxu0 0.0
    %1955 = vmatpush1.msra.mxu0 0.0
    %1956 = vmatprep.subr.mxu0 0.0
    %1957 = vmatpush1.msra.mxu0 0.0
    %1958 = vmatprep.subr.mxu0 0.0
    %1959 = vmatpush1.msra.mxu0 0.0
    %1960 = vmatprep.subr.mxu0 0.0
    %1961 = vmatpush1.msra.mxu0 0.0
    %1962 = vmatprep.subr.mxu0 0.0
    %1963 = vmatpush1.msra.mxu0 0.0
    %1964 = vmatprep.subr.mxu0 0.0
    %1965 = vmatpush1.msra.mxu0 0.0
    %1966 = vmatprep.subr.mxu0 0.0
    %1967 = vmatpush1.msra.mxu0 0.0
    %1968 = vmatprep.subr.mxu0 0.0
    %1969 = vmatpush1.msra.mxu0 0.0
    %1970 = vmatprep.subr.mxu0 0.0
    %1971 = vmatpush1.msra.mxu0 0.0
    %1972 = vmatprep.subr.mxu0 0.0
    %1973 = vmatpush1.msra.mxu0 0.0
    %1974 = vmatprep.subr.mxu0 0.0
    %1975 = vmatpush1.msra.mxu0 0.0
    %1976 = vmatprep.subr.mxu0 0.0
    %1977 = vmatpush1.msra.mxu0 0.0
    %1978 = vmatprep.mubr.f32.mxu0 0.0
    %1979 = vmatmul.mubr.f32.gmra.mrb[0].mxu0 %v1674
    %v1980 = vpop.f32.mrb[0].mxu0
    %v1981 = vadd.f32 %v1910, %v1980
    %v1982 = vpop.f32.mrb[0].mxu0
    %v1983 = vadd.f32 %v1912, %v1982
    %1984 = vdwg.mxu0
    %v1985 = vadd.f32 %v1981, %v1104
    %v1986 = vadd.f32 %v1983, %v1108
    %v1987 = vmul.f32 %v1985, 0.5
    %v1988 = vtanh.pop %v1987
    %v1989 = vmul.f32 %v1988, 0.5
    %v1990 = vadd.f32 %v1989, 0.5
    %v1991 = vtanh.pop %v1986
    %v1992 = vmul.f32 %v1986, 0.5
    %v1993 = vtanh.pop %v1992
    %v1994 = vmul.f32 %v1993, 0.5
    %v1995 = vadd.f32 %v1994, 0.5
    %v1996 = vmul.f32 %v1990, %v1568
    %v1997 = vmul.f32 %v1990, %v1991
    %1999 = vrot.lane.b32.xlu0 %v1997, 64
    %v2000 = vpop.permute.xlu0 %1999
    %v2002 = vadd.f32 %v1996, %v2000
    %v2003 = vtanh.pop %v2002
    %v2004 = vmul.f32 %v1995, %v2003
    %2006 = vrot.lane.b32.xlu0 %v1670, 64
    %v2007 = vpop.permute.xlu0 %2006
    %v2008 = vsel %vm178, %v2007, 0
    %2010 = vmatprep.subr.mxu0 %v606
    %2011 = vmatpush1.msra.mxu0 %v605
    %2012 = vmatprep.subr.mxu0 %v608
    %2013 = vmatpush1.msra.mxu0 %v607
    %2014 = vmatprep.subr.mxu0 %v610
    %2015 = vmatpush1.msra.mxu0 %v609
    %2016 = vmatprep.subr.mxu0 %v612
    %2017 = vmatpush1.msra.mxu0 %v611
    %2018 = vmatprep.subr.mxu0 %v614
    %2019 = vmatpush1.msra.mxu0 %v613
    %2020 = vmatprep.subr.mxu0 %v616
    %2021 = vmatpush1.msra.mxu0 %v615
    %2022 = vmatprep.subr.mxu0 %v618
    %2023 = vmatpush1.msra.mxu0 %v617
    %2024 = vmatprep.subr.mxu0 %v620
    %2025 = vmatpush1.msra.mxu0 %v619
    %2026 = vmatprep.subr.mxu0 0.0
    %2027 = vmatpush1.msra.mxu0 0.0
    %2028 = vmatprep.subr.mxu0 0.0
    %2029 = vmatpush1.msra.mxu0 0.0
    %2030 = vmatprep.subr.mxu0 0.0
    %2031 = vmatpush1.msra.mxu0 0.0
    %2032 = vmatprep.subr.mxu0 0.0
    %2033 = vmatpush1.msra.mxu0 0.0
    %2034 = vmatprep.subr.mxu0 0.0
    %2035 = vmatpush1.msra.mxu0 0.0
    %2036 = vmatprep.subr.mxu0 0.0
    %2037 = vmatpush1.msra.mxu0 0.0
    %2038 = vmatprep.subr.mxu0 0.0
    %2039 = vmatpush1.msra.mxu0 0.0
    %2040 = vmatprep.subr.mxu0 0.0
    %2041 = vmatpush1.msra.mxu0 0.0
    %2042 = vmatprep.subr.mxu0 0.0
    %2043 = vmatpush1.msra.mxu0 0.0
    %2044 = vmatprep.subr.mxu0 0.0
    %2045 = vmatpush1.msra.mxu0 0.0
    %2046 = vmatprep.subr.mxu0 0.0
    %2047 = vmatpush1.msra.mxu0 0.0
    %2048 = vmatprep.subr.mxu0 0.0
    %2049 = vmatpush1.msra.mxu0 0.0
    %2050 = vmatprep.subr.mxu0 0.0
    %2051 = vmatpush1.msra.mxu0 0.0
    %2052 = vmatprep.subr.mxu0 0.0
    %2053 = vmatpush1.msra.mxu0 0.0
    %2054 = vmatprep.subr.mxu0 0.0
    %2055 = vmatpush1.msra.mxu0 0.0
    %2056 = vmatprep.subr.mxu0 0.0
    %2057 = vmatpush1.msra.mxu0 0.0
    %2058 = vmatprep.subr.mxu0 0.0
    %2059 = vmatpush1.msra.mxu0 0.0
    %2060 = vmatprep.subr.mxu0 0.0
    %2061 = vmatpush1.msra.mxu0 0.0
    %2062 = vmatprep.subr.mxu0 0.0
    %2063 = vmatpush1.msra.mxu0 0.0
    %2064 = vmatprep.subr.mxu0 0.0
    %2065 = vmatpush1.msra.mxu0 0.0
    %2066 = vmatprep.subr.mxu0 0.0
    %2067 = vmatpush1.msra.mxu0 0.0
    %2068 = vmatprep.subr.mxu0 0.0
    %2069 = vmatpush1.msra.mxu0 0.0
    %2070 = vmatprep.subr.mxu0 0.0
    %2071 = vmatpush1.msra.mxu0 0.0
    %2072 = vmatprep.subr.mxu0 0.0
    %2073 = vmatpush1.msra.mxu0 0.0
    %2074 = vmatprep.mubr.f32.mxu0 0.0
    %2075 = vmatmul.mubr.f32.gmra.mrb[0].mxu0 %v2008
    %v2076 = vpop.f32.mrb[0].mxu0
    %v2077 = vadd.f32 0.0, %v2076
    %v2078 = vpop.f32.mrb[0].mxu0
    %v2079 = vadd.f32 0.0, %v2078
    %2080 = vdwg.mxu0
    %v2083 = vrot.slane %v2077, 6
    %v2084 = vrot.slane %v2079, 6
    %v2087 = vadd.f32 %v158, %v2083
    %v2088 = vadd.f32 %v160, %v2084
    %v2089 = vmul.f32 %v2087, 0.5
    %v2090 = vtanh.pop %v2089
    %v2091 = vmul.f32 %v2090, 0.5
    %v2092 = vadd.f32 %v2091, 0.5
    %v2093 = vtanh.pop %v2088
    %v2094 = vmul.f32 %v2088, 0.5
    %v2095 = vtanh.pop %v2094
    %v2096 = vmul.f32 %v2095, 0.5
    %v2097 = vadd.f32 %v2096, 0.5
    %v2099 = vrot.slane %v1668, 6
    %v2101 = vmul.f32 %v2092, %v2099
    %v2102 = vmul.f32 %v2092, %v2093
    %2104 = vrot.lane.b32.xlu0 %v2102, 64
    %v2105 = vpop.permute.xlu0 %2104
    %v2107 = vadd.f32 %v2101, %v2105
    %v2108 = vtanh.pop %v2107
    %v2109 = vmul.f32 %v2097, %v2108
    %2111 = vrot.lane.b32.xlu0 %v1837, 64
    %v2112 = vpop.permute.xlu0 %2111
    %v2113 = vsel %vm178, %v2112, 0
    %2115 = vmatprep.subr.mxu0 %v744
    %2116 = vmatpush1.msra.mxu0 %v743
    %2117 = vmatprep.subr.mxu0 %v746
    %2118 = vmatpush1.msra.mxu0 %v745
    %2119 = vmatprep.subr.mxu0 %v748
    %2120 = vmatpush1.msra.mxu0 %v747
    %2121 = vmatprep.subr.mxu0 %v750
    %2122 = vmatpush1.msra.mxu0 %v749
    %2123 = vmatprep.subr.mxu0 %v752
    %2124 = vmatpush1.msra.mxu0 %v751
    %2125 = vmatprep.subr.mxu0 %v754
    %2126 = vmatpush1.msra.mxu0 %v753
    %2127 = vmatprep.subr.mxu0 %v756
    %2128 = vmatpush1.msra.mxu0 %v755
    %2129 = vmatprep.subr.mxu0 %v758
    %2130 = vmatpush1.msra.mxu0 %v757
    %2131 = vmatprep.subr.mxu0 0.0
    %2132 = vmatpush1.msra.mxu0 0.0
    %2133 = vmatprep.subr.mxu0 0.0
    %2134 = vmatpush1.msra.mxu0 0.0
    %2135 = vmatprep.subr.mxu0 0.0
    %2136 = vmatpush1.msra.mxu0 0.0
    %2137 = vmatprep.subr.mxu0 0.0
    %2138 = vmatpush1.msra.mxu0 0.0
    %2139 = vmatprep.subr.mxu0 0.0
    %2140 = vmatpush1.msra.mxu0 0.0
    %2141 = vmatprep.subr.mxu0 0.0
    %2142 = vmatpush1.msra.mxu0 0.0
    %2143 = vmatprep.subr.mxu0 0.0
    %2144 = vmatpush1.msra.mxu0 0.0
    %2145 = vmatprep.subr.mxu0 0.0
    %2146 = vmatpush1.msra.mxu0 0.0
    %2147 = vmatprep.subr.mxu0 0.0
    %2148 = vmatpush1.msra.mxu0 0.0
    %2149 = vmatprep.subr.mxu0 0.0
    %2150 = vmatpush1.msra.mxu0 0.0
    %2151 = vmatprep.subr.mxu0 0.0
    %2152 = vmatpush1.msra.mxu0 0.0
    %2153 = vmatprep.subr.mxu0 0.0
    %2154 = vmatpush1.msra.mxu0 0.0
    %2155 = vmatprep.subr.mxu0 0.0
    %2156 = vmatpush1.msra.mxu0 0.0
    %2157 = vmatprep.subr.mxu0 0.0
    %2158 = vmatpush1.msra.mxu0 0.0
    %2159 = vmatprep.subr.mxu0 0.0
    %2160 = vmatpush1.msra.mxu0 0.0
    %2161 = vmatprep.subr.mxu0 0.0
    %2162 = vmatpush1.msra.mxu0 0.0
    %2163 = vmatprep.subr.mxu0 0.0
    %2164 = vmatpush1.msra.mxu0 0.0
    %2165 = vmatprep.subr.mxu0 0.0
    %2166 = vmatpush1.msra.mxu0 0.0
    %2167 = vmatprep.subr.mxu0 0.0
    %2168 = vmatpush1.msra.mxu0 0.0
    %2169 = vmatprep.subr.mxu0 0.0
    %2170 = vmatpush1.msra.mxu0 0.0
    %2171 = vmatprep.subr.mxu0 0.0
    %2172 = vmatpush1.msra.mxu0 0.0
    %2173 = vmatprep.subr.mxu0 0.0
    %2174 = vmatpush1.msra.mxu0 0.0
    %2175 = vmatprep.subr.mxu0 0.0
    %2176 = vmatpush1.msra.mxu0 0.0
    %2177 = vmatprep.subr.mxu0 0.0
    %2178 = vmatpush1.msra.mxu0 0.0
    %2179 = vmatprep.mubr.f32.mxu0 0.0
    %2180 = vmatmul.mubr.f32.gmra.mrb[0].mxu0 %v2113
    %v2181 = vpop.f32.mrb[0].mxu0
    %v2182 = vadd.f32 0.0, %v2181
    %v2183 = vpop.f32.mrb[0].mxu0
    %v2184 = vadd.f32 0.0, %v2183
    %2185 = vdwg.mxu0
    %2186 = vmatprep.subr.mxu0 %v728
    %2187 = vmatpush1.msra.mxu0 %v727
    %2188 = vmatprep.subr.mxu0 %v730
    %2189 = vmatpush1.msra.mxu0 %v729
    %2190 = vmatprep.subr.mxu0 %v732
    %2191 = vmatpush1.msra.mxu0 %v731
    %2192 = vmatprep.subr.mxu0 %v734
    %2193 = vmatpush1.msra.mxu0 %v733
    %2194 = vmatprep.subr.mxu0 %v736
    %2195 = vmatpush1.msra.mxu0 %v735
    %2196 = vmatprep.subr.mxu0 %v738
    %2197 = vmatpush1.msra.mxu0 %v737
    %2198 = vmatprep.subr.mxu0 %v740
    %2199 = vmatpush1.msra.mxu0 %v739
    %2200 = vmatprep.subr.mxu0 %v742
    %2201 = vmatpush1.msra.mxu0 %v741
    %2202 = vmatprep.subr.mxu0 0.0
    %2203 = vmatpush1.msra.mxu0 0.0
    %2204 = vmatprep.subr.mxu0 0.0
    %2205 = vmatpush1.msra.mxu0 0.0
    %2206 = vmatprep.subr.mxu0 0.0
    %2207 = vmatpush1.msra.mxu0 0.0
    %2208 = vmatprep.subr.mxu0 0.0
    %2209 = vmatpush1.msra.mxu0 0.0
    %2210 = vmatprep.subr.mxu0 0.0
    %2211 = vmatpush1.msra.mxu0 0.0
    %2212 = vmatprep.subr.mxu0 0.0
    %2213 = vmatpush1.msra.mxu0 0.0
    %2214 = vmatprep.subr.mxu0 0.0
    %2215 = vmatpush1.msra.mxu0 0.0
    %2216 = vmatprep.subr.mxu0 0.0
    %2217 = vmatpush1.msra.mxu0 0.0
    %2218 = vmatprep.subr.mxu0 0.0
    %2219 = vmatpush1.msra.mxu0 0.0
    %2220 = vmatprep.subr.mxu0 0.0
    %2221 = vmatpush1.msra.mxu0 0.0
    %2222 = vmatprep.subr.mxu0 0.0
    %2223 = vmatpush1.msra.mxu0 0.0
    %2224 = vmatprep.subr.mxu0 0.0
    %2225 = vmatpush1.msra.mxu0 0.0
    %2226 = vmatprep.subr.mxu0 0.0
    %2227 = vmatpush1.msra.mxu0 0.0
    %2228 = vmatprep.subr.mxu0 0.0
    %2229 = vmatpush1.msra.mxu0 0.0
    %2230 = vmatprep.subr.mxu0 0.0
    %2231 = vmatpush1.msra.mxu0 0.0
    %2232 = vmatprep.subr.mxu0 0.0
    %2233 = vmatpush1.msra.mxu0 0.0
    %2234 = vmatprep.subr.mxu0 0.0
    %2235 = vmatpush1.msra.mxu0 0.0
    %2236 = vmatprep.subr.mxu0 0.0
    %2237 = vmatpush1.msra.mxu0 0.0
    %2238 = vmatprep.subr.mxu0 0.0
    %2239 = vmatpush1.msra.mxu0 0.0
    %2240 = vmatprep.subr.mxu0 0.0
    %2241 = vmatpush1.msra.mxu0 0.0
    %2242 = vmatprep.subr.mxu0 0.0
    %2243 = vmatpush1.msra.mxu0 0.0
    %2244 = vmatprep.subr.mxu0 0.0
    %2245 = vmatpush1.msra.mxu0 0.0
    %2246 = vmatprep.subr.mxu0 0.0
    %2247 = vmatpush1.msra.mxu0 0.0
    %2248 = vmatprep.subr.mxu0 0.0
    %2249 = vmatpush1.msra.mxu0 0.0
    %2250 = vmatprep.mubr.f32.mxu0 0.0
    %2251 = vmatmul.mubr.f32.gmra.mrb[0].mxu0 %v2008
    %v2252 = vpop.f32.mrb[0].mxu0
    %v2253 = vadd.f32 %v2182, %v2252
    %v2254 = vpop.f32.mrb[0].mxu0
    %v2255 = vadd.f32 %v2184, %v2254
    %2256 = vdwg.mxu0
    %v2257 = vadd.f32 %v2253, %v576
    %v2258 = vadd.f32 %v2255, %v580
    %v2259 = vmul.f32 %v2257, 0.5
    %v2260 = vtanh.pop %v2259
    %v2261 = vmul.f32 %v2260, 0.5
    %v2262 = vadd.f32 %v2261, 0.5
    %v2263 = vtanh.pop %v2258
    %v2264 = vmul.f32 %v2258, 0.5
    %v2265 = vtanh.pop %v2264
    %v2266 = vmul.f32 %v2265, 0.5
    %v2267 = vadd.f32 %v2266, 0.5
    %v2268 = vmul.f32 %v2262, %v1835
    %v2269 = vmul.f32 %v2262, %v2263
    %2271 = vrot.lane.b32.xlu0 %v2269, 64
    %v2272 = vpop.permute.xlu0 %2271
    %v2274 = vadd.f32 %v2268, %v2272
    %v2275 = vtanh.pop %v2274
    %v2276 = vmul.f32 %v2267, %v2275
    %2278 = vrot.lane.b32.xlu0 %v2004, 64
    %v2279 = vpop.permute.xlu0 %2278
    %v2280 = vsel %vm178, %v2279, 0
    %2282 = vmatprep.subr.mxu0 %v943
    %2283 = vmatpush1.msra.mxu0 %v942
    %2284 = vmatprep.subr.mxu0 %v945
    %2285 = vmatpush1.msra.mxu0 %v944
    %2286 = vmatprep.subr.mxu0 %v947
    %2287 = vmatpush1.msra.mxu0 %v946
    %2288 = vmatprep.subr.mxu0 %v949
    %2289 = vmatpush1.msra.mxu0 %v948
    %2290 = vmatprep.subr.mxu0 %v951
    %2291 = vmatpush1.msra.mxu0 %v950
    %2292 = vmatprep.subr.mxu0 %v953
    %2293 = vmatpush1.msra.mxu0 %v952
    %2294 = vmatprep.subr.mxu0 %v955
    %2295 = vmatpush1.msra.mxu0 %v954
    %2296 = vmatprep.subr.mxu0 %v957
    %2297 = vmatpush1.msra.mxu0 %v956
    %2298 = vmatprep.subr.mxu0 0.0
    %2299 = vmatpush1.msra.mxu0 0.0
    %2300 = vmatprep.subr.mxu0 0.0
    %2301 = vmatpush1.msra.mxu0 0.0
    %2302 = vmatprep.subr.mxu0 0.0
    %2303 = vmatpush1.msra.mxu0 0.0
    %2304 = vmatprep.subr.mxu0 0.0
    %2305 = vmatpush1.msra.mxu0 0.0
    %2306 = vmatprep.subr.mxu0 0.0
    %2307 = vmatpush1.msra.mxu0 0.0
    %2308 = vmatprep.subr.mxu0 0.0
    %2309 = vmatpush1.msra.mxu0 0.0
    %2310 = vmatprep.subr.mxu0 0.0
    %2311 = vmatpush1.msra.mxu0 0.0
    %2312 = vmatprep.subr.mxu0 0.0
    %2313 = vmatpush1.msra.mxu0 0.0
    %2314 = vmatprep.subr.mxu0 0.0
    %2315 = vmatpush1.msra.mxu0 0.0
    %2316 = vmatprep.subr.mxu0 0.0
    %2317 = vmatpush1.msra.mxu0 0.0
    %2318 = vmatprep.subr.mxu0 0.0
    %2319 = vmatpush1.msra.mxu0 0.0
    %2320 = vmatprep.subr.mxu0 0.0
    %2321 = vmatpush1.msra.mxu0 0.0
    %2322 = vmatprep.subr.mxu0 0.0
    %2323 = vmatpush1.msra.mxu0 0.0
    %2324 = vmatprep.subr.mxu0 0.0
    %2325 = vmatpush1.msra.mxu0 0.0
    %2326 = vmatprep.subr.mxu0 0.0
    %2327 = vmatpush1.msra.mxu0 0.0
    %2328 = vmatprep.subr.mxu0 0.0
    %2329 = vmatpush1.msra.mxu0 0.0
    %2330 = vmatprep.subr.mxu0 0.0
    %2331 = vmatpush1.msra.mxu0 0.0
    %2332 = vmatprep.subr.mxu0 0.0
    %2333 = vmatpush1.msra.mxu0 0.0
    %2334 = vmatprep.subr.mxu0 0.0
    %2335 = vmatpush1.msra.mxu0 0.0
    %2336 = vmatprep.subr.mxu0 0.0
    %2337 = vmatpush1.msra.mxu0 0.0
    %2338 = vmatprep.subr.mxu0 0.0
    %2339 = vmatpush1.msra.mxu0 0.0
    %2340 = vmatprep.subr.mxu0 0.0
    %2341 = vmatpush1.msra.mxu0 0.0
    %2342 = vmatprep.subr.mxu0 0.0
    %2343 = vmatpush1.msra.mxu0 0.0
    %2344 = vmatprep.subr.mxu0 0.0
    %2345 = vmatpush1.msra.mxu0 0.0
    %2346 = vmatprep.mubr.f32.mxu0 0.0
    %2347 = vmatmul.mubr.f32.gmra.mrb[0].mxu0 %v2280
    %v2348 = vpop.f32.mrb[0].mxu0
    %v2349 = vadd.f32 0.0, %v2348
    %v2350 = vpop.f32.mrb[0].mxu0
    %v2351 = vadd.f32 0.0, %v2350
    %2352 = vdwg.mxu0
    %2353 = vmatprep.subr.mxu0 %v927
    %2354 = vmatpush1.msra.mxu0 %v926
    %2355 = vmatprep.subr.mxu0 %v929
    %2356 = vmatpush1.msra.mxu0 %v928
    %2357 = vmatprep.subr.mxu0 %v931
    %2358 = vmatpush1.msra.mxu0 %v930
    %2359 = vmatprep.subr.mxu0 %v933
    %2360 = vmatpush1.msra.mxu0 %v932
    %2361 = vmatprep.subr.mxu0 %v935
    %2362 = vmatpush1.msra.mxu0 %v934
    %2363 = vmatprep.subr.mxu0 %v937
    %2364 = vmatpush1.msra.mxu0 %v936
    %2365 = vmatprep.subr.mxu0 %v939
    %2366 = vmatpush1.msra.mxu0 %v938
    %2367 = vmatprep.subr.mxu0 %v941
    %2368 = vmatpush1.msra.mxu0 %v940
    %2369 = vmatprep.subr.mxu0 0.0
    %2370 = vmatpush1.msra.mxu0 0.0
    %2371 = vmatprep.subr.mxu0 0.0
    %2372 = vmatpush1.msra.mxu0 0.0
    %2373 = vmatprep.subr.mxu0 0.0
    %2374 = vmatpush1.msra.mxu0 0.0
    %2375 = vmatprep.subr.mxu0 0.0
    %2376 = vmatpush1.msra.mxu0 0.0
    %2377 = vmatprep.subr.mxu0 0.0
    %2378 = vmatpush1.msra.mxu0 0.0
    %2379 = vmatprep.subr.mxu0 0.0
    %2380 = vmatpush1.msra.mxu0 0.0
    %2381 = vmatprep.subr.mxu0 0.0
    %2382 = vmatpush1.msra.mxu0 0.0
    %2383 = vmatprep.subr.mxu0 0.0
    %2384 = vmatpush1.msra.mxu0 0.0
    %2385 = vmatprep.subr.mxu0 0.0
    %2386 = vmatpush1.msra.mxu0 0.0
    %2387 = vmatprep.subr.mxu0 0.0
    %2388 = vmatpush1.msra.mxu0 0.0
    %2389 = vmatprep.subr.mxu0 0.0
    %2390 = vmatpush1.msra.mxu0 0.0
    %2391 = vmatprep.subr.mxu0 0.0
    %2392 = vmatpush1.msra.mxu0 0.0
    %2393 = vmatprep.subr.mxu0 0.0
    %2394 = vmatpush1.msra.mxu0 0.0
    %2395 = vmatprep.subr.mxu0 0.0
    %2396 = vmatpush1.msra.mxu0 0.0
    %2397 = vmatprep.subr.mxu0 0.0
    %2398 = vmatpush1.msra.mxu0 0.0
    %2399 = vmatprep.subr.mxu0 0.0
    %2400 = vmatpush1.msra.mxu0 0.0
    %2401 = vmatprep.subr.mxu0 0.0
    %2402 = vmatpush1.msra.mxu0 0.0
    %2403 = vmatprep.subr.mxu0 0.0
    %2404 = vmatpush1.msra.mxu0 0.0
    %2405 = vmatprep.subr.mxu0 0.0
    %2406 = vmatpush1.msra.mxu0 0.0
    %2407 = vmatprep.subr.mxu0 0.0
    %2408 = vmatpush1.msra.mxu0 0.0
    %2409 = vmatprep.subr.mxu0 0.0
    %2410 = vmatpush1.msra.mxu0 0.0
    %2411 = vmatprep.subr.mxu0 0.0
    %2412 = vmatpush1.msra.mxu0 0.0
    %2413 = vmatprep.subr.mxu0 0.0
    %2414 = vmatpush1.msra.mxu0 0.0
    %2415 = vmatprep.subr.mxu0 0.0
    %2416 = vmatpush1.msra.mxu0 0.0
    %2417 = vmatprep.mubr.f32.mxu0 0.0
    %2418 = vmatmul.mubr.f32.gmra.mrb[0].mxu0 %v2113
    %v2419 = vpop.f32.mrb[0].mxu0
    %v2420 = vadd.f32 %v2349, %v2419
    %v2421 = vpop.f32.mrb[0].mxu0
    %v2422 = vadd.f32 %v2351, %v2421
    %2423 = vdwg.mxu0
    %v2424 = vadd.f32 %v2420, %v1104
    %v2425 = vadd.f32 %v2422, %v1108
    %v2426 = vmul.f32 %v2424, 0.5
    %v2427 = vtanh.pop %v2426
    %v2428 = vmul.f32 %v2427, 0.5
    %v2429 = vadd.f32 %v2428, 0.5
    %v2430 = vtanh.pop %v2425
    %v2431 = vmul.f32 %v2425, 0.5
    %v2432 = vtanh.pop %v2431
    %v2433 = vmul.f32 %v2432, 0.5
    %v2434 = vadd.f32 %v2433, 0.5
    %v2435 = vmul.f32 %v2429, %v2002
    %v2436 = vmul.f32 %v2429, %v2430
    %2438 = vrot.lane.b32.xlu0 %v2436, 64
    %v2439 = vpop.permute.xlu0 %2438
    %v2441 = vadd.f32 %v2435, %v2439
    %v2442 = vtanh.pop %v2441
    %v2443 = vmul.f32 %v2434, %v2442
    %v2445 = vrot.slane %v2109, 2
    %2446 = vrot.lane.b32.xlu0 %v2445, 64
    %v2447 = vpop.permute.xlu0 %2446
    %v2448 = vsel %vm178, %v2447, 0
    %2450 = vmatprep.subr.mxu0 %v606
    %2451 = vmatpush1.msra.mxu0 %v605
    %2452 = vmatprep.subr.mxu0 %v608
    %2453 = vmatpush1.msra.mxu0 %v607
    %2454 = vmatprep.subr.mxu0 %v610
    %2455 = vmatpush1.msra.mxu0 %v609
    %2456 = vmatprep.subr.mxu0 %v612
    %2457 = vmatpush1.msra.mxu0 %v611
    %2458 = vmatprep.subr.mxu0 %v614
    %2459 = vmatpush1.msra.mxu0 %v613
    %2460 = vmatprep.subr.mxu0 %v616
    %2461 = vmatpush1.msra.mxu0 %v615
    %2462 = vmatprep.subr.mxu0 %v618
    %2463 = vmatpush1.msra.mxu0 %v617
    %2464 = vmatprep.subr.mxu0 %v620
    %2465 = vmatpush1.msra.mxu0 %v619
    %2466 = vmatprep.subr.mxu0 0.0
    %2467 = vmatpush1.msra.mxu0 0.0
    %2468 = vmatprep.subr.mxu0 0.0
    %2469 = vmatpush1.msra.mxu0 0.0
    %2470 = vmatprep.subr.mxu0 0.0
    %2471 = vmatpush1.msra.mxu0 0.0
    %2472 = vmatprep.subr.mxu0 0.0
    %2473 = vmatpush1.msra.mxu0 0.0
    %2474 = vmatprep.subr.mxu0 0.0
    %2475 = vmatpush1.msra.mxu0 0.0
    %2476 = vmatprep.subr.mxu0 0.0
    %2477 = vmatpush1.msra.mxu0 0.0
    %2478 = vmatprep.subr.mxu0 0.0
    %2479 = vmatpush1.msra.mxu0 0.0
    %2480 = vmatprep.subr.mxu0 0.0
    %2481 = vmatpush1.msra.mxu0 0.0
    %2482 = vmatprep.subr.mxu0 0.0
    %2483 = vmatpush1.msra.mxu0 0.0
    %2484 = vmatprep.subr.mxu0 0.0
    %2485 = vmatpush1.msra.mxu0 0.0
    %2486 = vmatprep.subr.mxu0 0.0
    %2487 = vmatpush1.msra.mxu0 0.0
    %2488 = vmatprep.subr.mxu0 0.0
    %2489 = vmatpush1.msra.mxu0 0.0
    %2490 = vmatprep.subr.mxu0 0.0
    %2491 = vmatpush1.msra.mxu0 0.0
    %2492 = vmatprep.subr.mxu0 0.0
    %2493 = vmatpush1.msra.mxu0 0.0
    %2494 = vmatprep.subr.mxu0 0.0
    %2495 = vmatpush1.msra.mxu0 0.0
    %2496 = vmatprep.subr.mxu0 0.0
    %2497 = vmatpush1.msra.mxu0 0.0
    %2498 = vmatprep.subr.mxu0 0.0
    %2499 = vmatpush1.msra.mxu0 0.0
    %2500 = vmatprep.subr.mxu0 0.0
    %2501 = vmatpush1.msra.mxu0 0.0
    %2502 = vmatprep.subr.mxu0 0.0
    %2503 = vmatpush1.msra.mxu0 0.0
    %2504 = vmatprep.subr.mxu0 0.0
    %2505 = vmatpush1.msra.mxu0 0.0
    %2506 = vmatprep.subr.mxu0 0.0
    %2507 = vmatpush1.msra.mxu0 0.0
    %2508 = vmatprep.subr.mxu0 0.0
    %2509 = vmatpush1.msra.mxu0 0.0
    %2510 = vmatprep.subr.mxu0 0.0
    %2511 = vmatpush1.msra.mxu0 0.0
    %2512 = vmatprep.subr.mxu0 0.0
    %2513 = vmatpush1.msra.mxu0 0.0
    %2514 = vmatprep.mubr.f32.mxu0 0.0
    %2515 = vmatmul.mubr.f32.gmra.mrb[0].mxu0 %v2448
    %v2516 = vpop.f32.mrb[0].mxu0
    %v2517 = vadd.f32 0.0, %v2516
    %v2518 = vpop.f32.mrb[0].mxu0
    %v2519 = vadd.f32 0.0, %v2518
    %2520 = vdwg.mxu0
    %v2523 = vrot.slane %v2517, 4
    %v2524 = vrot.slane %v2519, 4
    %v2527 = vadd.f32 %v158, %v2523
    %v2528 = vadd.f32 %v160, %v2524
    %v2529 = vmul.f32 %v2527, 0.5
    %v2530 = vtanh.pop %v2529
    %v2531 = vmul.f32 %v2530, 0.5
    %v2532 = vadd.f32 %v2531, 0.5
    %v2533 = vtanh.pop %v2528
    %v2534 = vmul.f32 %v2528, 0.5
    %v2535 = vtanh.pop %v2534
    %v2536 = vmul.f32 %v2535, 0.5
    %v2537 = vadd.f32 %v2536, 0.5
    %v2539 = vrot.slane %v2107, 6
    %v2541 = vmul.f32 %v2532, %v2539
    %v2542 = vmul.f32 %v2532, %v2533
    %2544 = vrot.lane.b32.xlu0 %v2542, 64
    %v2545 = vpop.permute.xlu0 %2544
    %v2547 = vadd.f32 %v2541, %v2545
    %v2548 = vtanh.pop %v2547
    %v2549 = vmul.f32 %v2537, %v2548
    %2551 = vrot.lane.b32.xlu0 %v2276, 64
    %v2552 = vpop.permute.xlu0 %2551
    %v2553 = vsel %vm178, %v2552, 0
    %2555 = vmatprep.subr.mxu0 %v744
    %2556 = vmatpush1.msra.mxu0 %v743
    %2557 = vmatprep.subr.mxu0 %v746
    %2558 = vmatpush1.msra.mxu0 %v745
    %2559 = vmatprep.subr.mxu0 %v748
    %2560 = vmatpush1.msra.mxu0 %v747
    %2561 = vmatprep.subr.mxu0 %v750
    %2562 = vmatpush1.msra.mxu0 %v749
    %2563 = vmatprep.subr.mxu0 %v752
    %2564 = vmatpush1.msra.mxu0 %v751
    %2565 = vmatprep.subr.mxu0 %v754
    %2566 = vmatpush1.msra.mxu0 %v753
    %2567 = vmatprep.subr.mxu0 %v756
    %2568 = vmatpush1.msra.mxu0 %v755
    %2569 = vmatprep.subr.mxu0 %v758
    %2570 = vmatpush1.msra.mxu0 %v757
    %2571 = vmatprep.subr.mxu0 0.0
    %2572 = vmatpush1.msra.mxu0 0.0
    %2573 = vmatprep.subr.mxu0 0.0
    %2574 = vmatpush1.msra.mxu0 0.0
    %2575 = vmatprep.subr.mxu0 0.0
    %2576 = vmatpush1.msra.mxu0 0.0
    %2577 = vmatprep.subr.mxu0 0.0
    %2578 = vmatpush1.msra.mxu0 0.0
    %2579 = vmatprep.subr.mxu0 0.0
    %2580 = vmatpush1.msra.mxu0 0.0
    %2581 = vmatprep.subr.mxu0 0.0
    %2582 = vmatpush1.msra.mxu0 0.0
    %2583 = vmatprep.subr.mxu0 0.0
    %2584 = vmatpush1.msra.mxu0 0.0
    %2585 = vmatprep.subr.mxu0 0.0
    %2586 = vmatpush1.msra.mxu0 0.0
    %2587 = vmatprep.subr.mxu0 0.0
    %2588 = vmatpush1.msra.mxu0 0.0
    %2589 = vmatprep.subr.mxu0 0.0
    %2590 = vmatpush1.msra.mxu0 0.0
    %2591 = vmatprep.subr.mxu0 0.0
    %2592 = vmatpush1.msra.mxu0 0.0
    %2593 = vmatprep.subr.mxu0 0.0
    %2594 = vmatpush1.msra.mxu0 0.0
    %2595 = vmatprep.subr.mxu0 0.0
    %2596 = vmatpush1.msra.mxu0 0.0
    %2597 = vmatprep.subr.mxu0 0.0
    %2598 = vmatpush1.msra.mxu0 0.0
    %2599 = vmatprep.subr.mxu0 0.0
    %2600 = vmatpush1.msra.mxu0 0.0
    %2601 = vmatprep.subr.mxu0 0.0
    %2602 = vmatpush1.msra.mxu0 0.0
    %2603 = vmatprep.subr.mxu0 0.0
    %2604 = vmatpush1.msra.mxu0 0.0
    %2605 = vmatprep.subr.mxu0 0.0
    %2606 = vmatpush1.msra.mxu0 0.0
    %2607 = vmatprep.subr.mxu0 0.0
    %2608 = vmatpush1.msra.mxu0 0.0
    %2609 = vmatprep.subr.mxu0 0.0
    %2610 = vmatpush1.msra.mxu0 0.0
    %2611 = vmatprep.subr.mxu0 0.0
    %2612 = vmatpush1.msra.mxu0 0.0
    %2613 = vmatprep.subr.mxu0 0.0
    %2614 = vmatpush1.msra.mxu0 0.0
    %2615 = vmatprep.subr.mxu0 0.0
    %2616 = vmatpush1.msra.mxu0 0.0
    %2617 = vmatprep.subr.mxu0 0.0
    %2618 = vmatpush1.msra.mxu0 0.0
    %2619 = vmatprep.mubr.f32.mxu0 0.0
    %2620 = vmatmul.mubr.f32.gmra.mrb[0].mxu0 %v2553
    %v2621 = vpop.f32.mrb[0].mxu0
    %v2622 = vadd.f32 0.0, %v2621
    %v2623 = vpop.f32.mrb[0].mxu0
    %v2624 = vadd.f32 0.0, %v2623
    %2625 = vdwg.mxu0
    %2626 = vmatprep.subr.mxu0 %v728
    %2627 = vmatpush1.msra.mxu0 %v727
    %2628 = vmatprep.subr.mxu0 %v730
    %2629 = vmatpush1.msra.mxu0 %v729
    %2630 = vmatprep.subr.mxu0 %v732
    %2631 = vmatpush1.msra.mxu0 %v731
    %2632 = vmatprep.subr.mxu0 %v734
    %2633 = vmatpush1.msra.mxu0 %v733
    %2634 = vmatprep.subr.mxu0 %v736
    %2635 = vmatpush1.msra.mxu0 %v735
    %2636 = vmatprep.subr.mxu0 %v738
    %2637 = vmatpush1.msra.mxu0 %v737
    %2638 = vmatprep.subr.mxu0 %v740
    %2639 = vmatpush1.msra.mxu0 %v739
    %2640 = vmatprep.subr.mxu0 %v742
    %2641 = vmatpush1.msra.mxu0 %v741
    %2642 = vmatprep.subr.mxu0 0.0
    %2643 = vmatpush1.msra.mxu0 0.0
    %2644 = vmatprep.subr.mxu0 0.0
    %2645 = vmatpush1.msra.mxu0 0.0
    %2646 = vmatprep.subr.mxu0 0.0
    %2647 = vmatpush1.msra.mxu0 0.0
    %2648 = vmatprep.subr.mxu0 0.0
    %2649 = vmatpush1.msra.mxu0 0.0
    %2650 = vmatprep.subr.mxu0 0.0
    %2651 = vmatpush1.msra.mxu0 0.0
    %2652 = vmatprep.subr.mxu0 0.0
    %2653 = vmatpush1.msra.mxu0 0.0
    %2654 = vmatprep.subr.mxu0 0.0
    %2655 = vmatpush1.msra.mxu0 0.0
    %2656 = vmatprep.subr.mxu0 0.0
    %2657 = vmatpush1.msra.mxu0 0.0
    %2658 = vmatprep.subr.mxu0 0.0
    %2659 = vmatpush1.msra.mxu0 0.0
    %2660 = vmatprep.subr.mxu0 0.0
    %2661 = vmatpush1.msra.mxu0 0.0
    %2662 = vmatprep.subr.mxu0 0.0
    %2663 = vmatpush1.msra.mxu0 0.0
    %2664 = vmatprep.subr.mxu0 0.0
    %2665 = vmatpush1.msra.mxu0 0.0
    %2666 = vmatprep.subr.mxu0 0.0
    %2667 = vmatpush1.msra.mxu0 0.0
    %2668 = vmatprep.subr.mxu0 0.0
    %2669 = vmatpush1.msra.mxu0 0.0
    %2670 = vmatprep.subr.mxu0 0.0
    %2671 = vmatpush1.msra.mxu0 0.0
    %2672 = vmatprep.subr.mxu0 0.0
    %2673 = vmatpush1.msra.mxu0 0.0
    %2674 = vmatprep.subr.mxu0 0.0
    %2675 = vmatpush1.msra.mxu0 0.0
    %2676 = vmatprep.subr.mxu0 0.0
    %2677 = vmatpush1.msra.mxu0 0.0
    %2678 = vmatprep.subr.mxu0 0.0
    %2679 = vmatpush1.msra.mxu0 0.0
    %2680 = vmatprep.subr.mxu0 0.0
    %2681 = vmatpush1.msra.mxu0 0.0
    %2682 = vmatprep.subr.mxu0 0.0
    %2683 = vmatpush1.msra.mxu0 0.0
    %2684 = vmatprep.subr.mxu0 0.0
    %2685 = vmatpush1.msra.mxu0 0.0
    %2686 = vmatprep.subr.mxu0 0.0
    %2687 = vmatpush1.msra.mxu0 0.0
    %2688 = vmatprep.subr.mxu0 0.0
    %2689 = vmatpush1.msra.mxu0 0.0
    %2690 = vmatprep.mubr.f32.mxu0 0.0
    %2691 = vmatmul.mubr.f32.gmra.mrb[0].mxu0 %v2448
    %v2692 = vpop.f32.mrb[0].mxu0
    %v2693 = vadd.f32 %v2622, %v2692
    %v2694 = vpop.f32.mrb[0].mxu0
    %v2695 = vadd.f32 %v2624, %v2694
    %2696 = vdwg.mxu0
    %v2697 = vadd.f32 %v2693, %v576
    %v2698 = vadd.f32 %v2695, %v580
    %v2699 = vmul.f32 %v2697, 0.5
    %v2700 = vtanh.pop %v2699
    %v2701 = vmul.f32 %v2700, 0.5
    %v2702 = vadd.f32 %v2701, 0.5
    %v2703 = vtanh.pop %v2698
    %v2704 = vmul.f32 %v2698, 0.5
    %v2705 = vtanh.pop %v2704
    %v2706 = vmul.f32 %v2705, 0.5
    %v2707 = vadd.f32 %v2706, 0.5
    %v2708 = vmul.f32 %v2702, %v2274
    %v2709 = vmul.f32 %v2702, %v2703
    %2711 = vrot.lane.b32.xlu0 %v2709, 64
    %v2712 = vpop.permute.xlu0 %2711
    %v2714 = vadd.f32 %v2708, %v2712
    %v2715 = vtanh.pop %v2714
    %v2716 = vmul.f32 %v2707, %v2715
    %2718 = vrot.lane.b32.xlu0 %v2443, 64
    %v2719 = vpop.permute.xlu0 %2718
    %v2720 = vsel %vm178, %v2719, 0
    %2722 = vmatprep.subr.mxu0 %v943
    %2723 = vmatpush1.msra.mxu0 %v942
    %2724 = vmatprep.subr.mxu0 %v945
    %2725 = vmatpush1.msra.mxu0 %v944
    %2726 = vmatprep.subr.mxu0 %v947
    %2727 = vmatpush1.msra.mxu0 %v946
    %2728 = vmatprep.subr.mxu0 %v949
    %2729 = vmatpush1.msra.mxu0 %v948
    %2730 = vmatprep.subr.mxu0 %v951
    %2731 = vmatpush1.msra.mxu0 %v950
    %2732 = vmatprep.subr.mxu0 %v953
    %2733 = vmatpush1.msra.mxu0 %v952
    %2734 = vmatprep.subr.mxu0 %v955
    %2735 = vmatpush1.msra.mxu0 %v954
    %2736 = vmatprep.subr.mxu0 %v957
    %2737 = vmatpush1.msra.mxu0 %v956
    %2738 = vmatprep.subr.mxu0 0.0
    %2739 = vmatpush1.msra.mxu0 0.0
    %2740 = vmatprep.subr.mxu0 0.0
    %2741 = vmatpush1.msra.mxu0 0.0
    %2742 = vmatprep.subr.mxu0 0.0
    %2743 = vmatpush1.msra.mxu0 0.0
    %2744 = vmatprep.subr.mxu0 0.0
    %2745 = vmatpush1.msra.mxu0 0.0
    %2746 = vmatprep.subr.mxu0 0.0
    %2747 = vmatpush1.msra.mxu0 0.0
    %2748 = vmatprep.subr.mxu0 0.0
    %2749 = vmatpush1.msra.mxu0 0.0
    %2750 = vmatprep.subr.mxu0 0.0
    %2751 = vmatpush1.msra.mxu0 0.0
    %2752 = vmatprep.subr.mxu0 0.0
    %2753 = vmatpush1.msra.mxu0 0.0
    %2754 = vmatprep.subr.mxu0 0.0
    %2755 = vmatpush1.msra.mxu0 0.0
    %2756 = vmatprep.subr.mxu0 0.0
    %2757 = vmatpush1.msra.mxu0 0.0
    %2758 = vmatprep.subr.mxu0 0.0
    %2759 = vmatpush1.msra.mxu0 0.0
    %2760 = vmatprep.subr.mxu0 0.0
    %2761 = vmatpush1.msra.mxu0 0.0
    %2762 = vmatprep.subr.mxu0 0.0
    %2763 = vmatpush1.msra.mxu0 0.0
    %2764 = vmatprep.subr.mxu0 0.0
    %2765 = vmatpush1.msra.mxu0 0.0
    %2766 = vmatprep.subr.mxu0 0.0
    %2767 = vmatpush1.msra.mxu0 0.0
    %2768 = vmatprep.subr.mxu0 0.0
    %2769 = vmatpush1.msra.mxu0 0.0
    %2770 = vmatprep.subr.mxu0 0.0
    %2771 = vmatpush1.msra.mxu0 0.0
    %2772 = vmatprep.subr.mxu0 0.0
    %2773 = vmatpush1.msra.mxu0 0.0
    %2774 = vmatprep.subr.mxu0 0.0
    %2775 = vmatpush1.msra.mxu0 0.0
    %2776 = vmatprep.subr.mxu0 0.0
    %2777 = vmatpush1.msra.mxu0 0.0
    %2778 = vmatprep.subr.mxu0 0.0
    %2779 = vmatpush1.msra.mxu0 0.0
    %2780 = vmatprep.subr.mxu0 0.0
    %2781 = vmatpush1.msra.mxu0 0.0
    %2782 = vmatprep.subr.mxu0 0.0
    %2783 = vmatpush1.msra.mxu0 0.0
    %2784 = vmatprep.subr.mxu0 0.0
    %2785 = vmatpush1.msra.mxu0 0.0
    %2786 = vmatprep.mubr.f32.mxu0 0.0
    %2787 = vmatmul.mubr.f32.gmra.mrb[0].mxu0 %v2720
    %v2788 = vpop.f32.mrb[0].mxu0
    %v2789 = vadd.f32 0.0, %v2788
    %v2790 = vpop.f32.mrb[0].mxu0
    %v2791 = vadd.f32 0.0, %v2790
    %2792 = vdwg.mxu0
    %2793 = vmatprep.subr.mxu0 %v927
    %2794 = vmatpush1.msra.mxu0 %v926
    %2795 = vmatprep.subr.mxu0 %v929
    %2796 = vmatpush1.msra.mxu0 %v928
    %2797 = vmatprep.subr.mxu0 %v931
    %2798 = vmatpush1.msra.mxu0 %v930
    %2799 = vmatprep.subr.mxu0 %v933
    %2800 = vmatpush1.msra.mxu0 %v932
    %2801 = vmatprep.subr.mxu0 %v935
    %2802 = vmatpush1.msra.mxu0 %v934
    %2803 = vmatprep.subr.mxu0 %v937
    %2804 = vmatpush1.msra.mxu0 %v936
    %2805 = vmatprep.subr.mxu0 %v939
    %2806 = vmatpush1.msra.mxu0 %v938
    %2807 = vmatprep.subr.mxu0 %v941
    %2808 = vmatpush1.msra.mxu0 %v940
    %2809 = vmatprep.subr.mxu0 0.0
    %2810 = vmatpush1.msra.mxu0 0.0
    %2811 = vmatprep.subr.mxu0 0.0
    %2812 = vmatpush1.msra.mxu0 0.0
    %2813 = vmatprep.subr.mxu0 0.0
    %2814 = vmatpush1.msra.mxu0 0.0
    %2815 = vmatprep.subr.mxu0 0.0
    %2816 = vmatpush1.msra.mxu0 0.0
    %2817 = vmatprep.subr.mxu0 0.0
    %2818 = vmatpush1.msra.mxu0 0.0
    %2819 = vmatprep.subr.mxu0 0.0
    %2820 = vmatpush1.msra.mxu0 0.0
    %2821 = vmatprep.subr.mxu0 0.0
    %2822 = vmatpush1.msra.mxu0 0.0
    %2823 = vmatprep.subr.mxu0 0.0
    %2824 = vmatpush1.msra.mxu0 0.0
    %2825 = vmatprep.subr.mxu0 0.0
    %2826 = vmatpush1.msra.mxu0 0.0
    %2827 = vmatprep.subr.mxu0 0.0
    %2828 = vmatpush1.msra.mxu0 0.0
    %2829 = vmatprep.subr.mxu0 0.0
    %2830 = vmatpush1.msra.mxu0 0.0
    %2831 = vmatprep.subr.mxu0 0.0
    %2832 = vmatpush1.msra.mxu0 0.0
    %2833 = vmatprep.subr.mxu0 0.0
    %2834 = vmatpush1.msra.mxu0 0.0
    %2835 = vmatprep.subr.mxu0 0.0
    %2836 = vmatpush1.msra.mxu0 0.0
    %2837 = vmatprep.subr.mxu0 0.0
    %2838 = vmatpush1.msra.mxu0 0.0
    %2839 = vmatprep.subr.mxu0 0.0
    %2840 = vmatpush1.msra.mxu0 0.0
    %2841 = vmatprep.subr.mxu0 0.0
    %2842 = vmatpush1.msra.mxu0 0.0
    %2843 = vmatprep.subr.mxu0 0.0
    %2844 = vmatpush1.msra.mxu0 0.0
    %2845 = vmatprep.subr.mxu0 0.0
    %2846 = vmatpush1.msra.mxu0 0.0
    %2847 = vmatprep.subr.mxu0 0.0
    %2848 = vmatpush1.msra.mxu0 0.0
    %2849 = vmatprep.subr.mxu0 0.0
    %2850 = vmatpush1.msra.mxu0 0.0
    %2851 = vmatprep.subr.mxu0 0.0
    %2852 = vmatpush1.msra.mxu0 0.0
    %2853 = vmatprep.subr.mxu0 0.0
    %2854 = vmatpush1.msra.mxu0 0.0
    %2855 = vmatprep.subr.mxu0 0.0
    %2856 = vmatpush1.msra.mxu0 0.0
    %2857 = vmatprep.mubr.f32.mxu0 0.0
    %2858 = vmatmul.mubr.f32.gmra.mrb[0].mxu0 %v2553
    %v2859 = vpop.f32.mrb[0].mxu0
    %v2860 = vadd.f32 %v2789, %v2859
    %v2861 = vpop.f32.mrb[0].mxu0
    %v2862 = vadd.f32 %v2791, %v2861
    %2863 = vdwg.mxu0
    %v2864 = vadd.f32 %v2860, %v1104
    %v2865 = vadd.f32 %v2862, %v1108
    %v2866 = vmul.f32 %v2864, 0.5
    %v2867 = vtanh.pop %v2866
    %v2868 = vmul.f32 %v2867, 0.5
    %v2869 = vadd.f32 %v2868, 0.5
    %v2870 = vtanh.pop %v2865
    %v2871 = vmul.f32 %v2865, 0.5
    %v2872 = vtanh.pop %v2871
    %v2873 = vmul.f32 %v2872, 0.5
    %v2874 = vadd.f32 %v2873, 0.5
    %v2875 = vmul.f32 %v2869, %v2441
    %v2876 = vmul.f32 %v2869, %v2870
    %2878 = vrot.lane.b32.xlu0 %v2876, 64
    %v2879 = vpop.permute.xlu0 %2878
    %v2881 = vadd.f32 %v2875, %v2879
    %v2882 = vtanh.pop %v2881
    %v2883 = vmul.f32 %v2874, %v2882
    %v2885 = vrot.slane %v2549, 4
    %2886 = vrot.lane.b32.xlu0 %v2885, 64
    %v2887 = vpop.permute.xlu0 %2886
    %v2888 = vsel %vm178, %v2887, 0
    %2890 = vmatprep.subr.mxu0 %v606
    %2891 = vmatpush1.msra.mxu0 %v605
    %2892 = vmatprep.subr.mxu0 %v608
    %2893 = vmatpush1.msra.mxu0 %v607
    %2894 = vmatprep.subr.mxu0 %v610
    %2895 = vmatpush1.msra.mxu0 %v609
    %2896 = vmatprep.subr.mxu0 %v612
    %2897 = vmatpush1.msra.mxu0 %v611
    %2898 = vmatprep.subr.mxu0 %v614
    %2899 = vmatpush1.msra.mxu0 %v613
    %2900 = vmatprep.subr.mxu0 %v616
    %2901 = vmatpush1.msra.mxu0 %v615
    %2902 = vmatprep.subr.mxu0 %v618
    %2903 = vmatpush1.msra.mxu0 %v617
    %2904 = vmatprep.subr.mxu0 %v620
    %2905 = vmatpush1.msra.mxu0 %v619
    %2906 = vmatprep.subr.mxu0 0.0
    %2907 = vmatpush1.msra.mxu0 0.0
    %2908 = vmatprep.subr.mxu0 0.0
    %2909 = vmatpush1.msra.mxu0 0.0
    %2910 = vmatprep.subr.mxu0 0.0
    %2911 = vmatpush1.msra.mxu0 0.0
    %2912 = vmatprep.subr.mxu0 0.0
    %2913 = vmatpush1.msra.mxu0 0.0
    %2914 = vmatprep.subr.mxu0 0.0
    %2915 = vmatpush1.msra.mxu0 0.0
    %2916 = vmatprep.subr.mxu0 0.0
    %2917 = vmatpush1.msra.mxu0 0.0
    %2918 = vmatprep.subr.mxu0 0.0
    %2919 = vmatpush1.msra.mxu0 0.0
    %2920 = vmatprep.subr.mxu0 0.0
    %2921 = vmatpush1.msra.mxu0 0.0
    %2922 = vmatprep.subr.mxu0 0.0
    %2923 = vmatpush1.msra.mxu0 0.0
    %2924 = vmatprep.subr.mxu0 0.0
    %2925 = vmatpush1.msra.mxu0 0.0
    %2926 = vmatprep.subr.mxu0 0.0
    %2927 = vmatpush1.msra.mxu0 0.0
    %2928 = vmatprep.subr.mxu0 0.0
    %2929 = vmatpush1.msra.mxu0 0.0
    %2930 = vmatprep.subr.mxu0 0.0
    %2931 = vmatpush1.msra.mxu0 0.0
    %2932 = vmatprep.subr.mxu0 0.0
    %2933 = vmatpush1.msra.mxu0 0.0
    %2934 = vmatprep.subr.mxu0 0.0
    %2935 = vmatpush1.msra.mxu0 0.0
    %2936 = vmatprep.subr.mxu0 0.0
    %2937 = vmatpush1.msra.mxu0 0.0
    %2938 = vmatprep.subr.mxu0 0.0
    %2939 = vmatpush1.msra.mxu0 0.0
    %2940 = vmatprep.subr.mxu0 0.0
    %2941 = vmatpush1.msra.mxu0 0.0
    %2942 = vmatprep.subr.mxu0 0.0
    %2943 = vmatpush1.msra.mxu0 0.0
    %2944 = vmatprep.subr.mxu0 0.0
    %2945 = vmatpush1.msra.mxu0 0.0
    %2946 = vmatprep.subr.mxu0 0.0
    %2947 = vmatpush1.msra.mxu0 0.0
    %2948 = vmatprep.subr.mxu0 0.0
    %2949 = vmatpush1.msra.mxu0 0.0
    %2950 = vmatprep.subr.mxu0 0.0
    %2951 = vmatpush1.msra.mxu0 0.0
    %2952 = vmatprep.subr.mxu0 0.0
    %2953 = vmatpush1.msra.mxu0 0.0
    %2954 = vmatprep.mubr.f32.mxu0 0.0
    %2955 = vmatmul.mubr.f32.gmra.mrb[0].mxu0 %v2888
    %v2956 = vpop.f32.mrb[0].mxu0
    %v2957 = vadd.f32 0.0, %v2956
    %v2958 = vpop.f32.mrb[0].mxu0
    %v2959 = vadd.f32 0.0, %v2958
    %2960 = vdwg.mxu0
    %v2963 = vrot.slane %v2957, 2
    %v2964 = vrot.slane %v2959, 2
    %v2967 = vadd.f32 %v158, %v2963
    %v2968 = vadd.f32 %v160, %v2964
    %v2969 = vmul.f32 %v2967, 0.5
    %v2970 = vtanh.pop %v2969
    %v2971 = vmul.f32 %v2970, 0.5
    %v2972 = vadd.f32 %v2971, 0.5
    %v2973 = vtanh.pop %v2968
    %v2974 = vmul.f32 %v2968, 0.5
    %v2975 = vtanh.pop %v2974
    %v2976 = vmul.f32 %v2975, 0.5
    %v2977 = vadd.f32 %v2976, 0.5
    %v2979 = vrot.slane %v2547, 6
    %v2981 = vmul.f32 %v2972, %v2979
    %v2982 = vmul.f32 %v2972, %v2973
    %2984 = vrot.lane.b32.xlu0 %v2982, 64
    %v2985 = vpop.permute.xlu0 %2984
    %v2987 = vadd.f32 %v2981, %v2985
    %v2988 = vtanh.pop %v2987
    %v2989 = vmul.f32 %v2977, %v2988
    %2991 = vrot.lane.b32.xlu0 %v2716, 64
    %v2992 = vpop.permute.xlu0 %2991
    %v2993 = vsel %vm178, %v2992, 0
    %2995 = vmatprep.subr.mxu0 %v744
    %2996 = vmatpush1.msra.mxu0 %v743
    %2997 = vmatprep.subr.mxu0 %v746
    %2998 = vmatpush1.msra.mxu0 %v745
    %2999 = vmatprep.subr.mxu0 %v748
    %3000 = vmatpush1.msra.mxu0 %v747
    %3001 = vmatprep.subr.mxu0 %v750
    %3002 = vmatpush1.msra.mxu0 %v749
    %3003 = vmatprep.subr.mxu0 %v752
    %3004 = vmatpush1.msra.mxu0 %v751
    %3005 = vmatprep.subr.mxu0 %v754
    %3006 = vmatpush1.msra.mxu0 %v753
    %3007 = vmatprep.subr.mxu0 %v756
    %3008 = vmatpush1.msra.mxu0 %v755
    %3009 = vmatprep.subr.mxu0 %v758
    %3010 = vmatpush1.msra.mxu0 %v757
    %3011 = vmatprep.subr.mxu0 0.0
    %3012 = vmatpush1.msra.mxu0 0.0
    %3013 = vmatprep.subr.mxu0 0.0
    %3014 = vmatpush1.msra.mxu0 0.0
    %3015 = vmatprep.subr.mxu0 0.0
    %3016 = vmatpush1.msra.mxu0 0.0
    %3017 = vmatprep.subr.mxu0 0.0
    %3018 = vmatpush1.msra.mxu0 0.0
    %3019 = vmatprep.subr.mxu0 0.0
    %3020 = vmatpush1.msra.mxu0 0.0
    %3021 = vmatprep.subr.mxu0 0.0
    %3022 = vmatpush1.msra.mxu0 0.0
    %3023 = vmatprep.subr.mxu0 0.0
    %3024 = vmatpush1.msra.mxu0 0.0
    %3025 = vmatprep.subr.mxu0 0.0
    %3026 = vmatpush1.msra.mxu0 0.0
    %3027 = vmatprep.subr.mxu0 0.0
    %3028 = vmatpush1.msra.mxu0 0.0
    %3029 = vmatprep.subr.mxu0 0.0
    %3030 = vmatpush1.msra.mxu0 0.0
    %3031 = vmatprep.subr.mxu0 0.0
    %3032 = vmatpush1.msra.mxu0 0.0
    %3033 = vmatprep.subr.mxu0 0.0
    %3034 = vmatpush1.msra.mxu0 0.0
    %3035 = vmatprep.subr.mxu0 0.0
    %3036 = vmatpush1.msra.mxu0 0.0
    %3037 = vmatprep.subr.mxu0 0.0
    %3038 = vmatpush1.msra.mxu0 0.0
    %3039 = vmatprep.subr.mxu0 0.0
    %3040 = vmatpush1.msra.mxu0 0.0
    %3041 = vmatprep.subr.mxu0 0.0
    %3042 = vmatpush1.msra.mxu0 0.0
    %3043 = vmatprep.subr.mxu0 0.0
    %3044 = vmatpush1.msra.mxu0 0.0
    %3045 = vmatprep.subr.mxu0 0.0
    %3046 = vmatpush1.msra.mxu0 0.0
    %3047 = vmatprep.subr.mxu0 0.0
    %3048 = vmatpush1.msra.mxu0 0.0
    %3049 = vmatprep.subr.mxu0 0.0
    %3050 = vmatpush1.msra.mxu0 0.0
    %3051 = vmatprep.subr.mxu0 0.0
    %3052 = vmatpush1.msra.mxu0 0.0
    %3053 = vmatprep.subr.mxu0 0.0
    %3054 = vmatpush1.msra.mxu0 0.0
    %3055 = vmatprep.subr.mxu0 0.0
    %3056 = vmatpush1.msra.mxu0 0.0
    %3057 = vmatprep.subr.mxu0 0.0
    %3058 = vmatpush1.msra.mxu0 0.0
    %3059 = vmatprep.mubr.f32.mxu0 0.0
    %3060 = vmatmul.mubr.f32.gmra.mrb[0].mxu0 %v2993
    %v3061 = vpop.f32.mrb[0].mxu0
    %v3062 = vadd.f32 0.0, %v3061
    %v3063 = vpop.f32.mrb[0].mxu0
    %v3064 = vadd.f32 0.0, %v3063
    %3065 = vdwg.mxu0
    %3066 = vmatprep.subr.mxu0 %v728
    %3067 = vmatpush1.msra.mxu0 %v727
    %3068 = vmatprep.subr.mxu0 %v730
    %3069 = vmatpush1.msra.mxu0 %v729
    %3070 = vmatprep.subr.mxu0 %v732
    %3071 = vmatpush1.msra.mxu0 %v731
    %3072 = vmatprep.subr.mxu0 %v734
    %3073 = vmatpush1.msra.mxu0 %v733
    %3074 = vmatprep.subr.mxu0 %v736
    %3075 = vmatpush1.msra.mxu0 %v735
    %3076 = vmatprep.subr.mxu0 %v738
    %3077 = vmatpush1.msra.mxu0 %v737
    %3078 = vmatprep.subr.mxu0 %v740
    %3079 = vmatpush1.msra.mxu0 %v739
    %3080 = vmatprep.subr.mxu0 %v742
    %3081 = vmatpush1.msra.mxu0 %v741
    %3082 = vmatprep.subr.mxu0 0.0
    %3083 = vmatpush1.msra.mxu0 0.0
    %3084 = vmatprep.subr.mxu0 0.0
    %3085 = vmatpush1.msra.mxu0 0.0
    %3086 = vmatprep.subr.mxu0 0.0
    %3087 = vmatpush1.msra.mxu0 0.0
    %3088 = vmatprep.subr.mxu0 0.0
    %3089 = vmatpush1.msra.mxu0 0.0
    %3090 = vmatprep.subr.mxu0 0.0
    %3091 = vmatpush1.msra.mxu0 0.0
    %3092 = vmatprep.subr.mxu0 0.0
    %3093 = vmatpush1.msra.mxu0 0.0
    %3094 = vmatprep.subr.mxu0 0.0
    %3095 = vmatpush1.msra.mxu0 0.0
    %3096 = vmatprep.subr.mxu0 0.0
    %3097 = vmatpush1.msra.mxu0 0.0
    %3098 = vmatprep.subr.mxu0 0.0
    %3099 = vmatpush1.msra.mxu0 0.0
    %3100 = vmatprep.subr.mxu0 0.0
    %3101 = vmatpush1.msra.mxu0 0.0
    %3102 = vmatprep.subr.mxu0 0.0
    %3103 = vmatpush1.msra.mxu0 0.0
    %3104 = vmatprep.subr.mxu0 0.0
    %3105 = vmatpush1.msra.mxu0 0.0
    %3106 = vmatprep.subr.mxu0 0.0
    %3107 = vmatpush1.msra.mxu0 0.0
    %3108 = vmatprep.subr.mxu0 0.0
    %3109 = vmatpush1.msra.mxu0 0.0
    %3110 = vmatprep.subr.mxu0 0.0
    %3111 = vmatpush1.msra.mxu0 0.0
    %3112 = vmatprep.subr.mxu0 0.0
    %3113 = vmatpush1.msra.mxu0 0.0
    %3114 = vmatprep.subr.mxu0 0.0
    %3115 = vmatpush1.msra.mxu0 0.0
    %3116 = vmatprep.subr.mxu0 0.0
    %3117 = vmatpush1.msra.mxu0 0.0
    %3118 = vmatprep.subr.mxu0 0.0
    %3119 = vmatpush1.msra.mxu0 0.0
    %3120 = vmatprep.subr.mxu0 0.0
    %3121 = vmatpush1.msra.mxu0 0.0
    %3122 = vmatprep.subr.mxu0 0.0
    %3123 = vmatpush1.msra.mxu0 0.0
    %3124 = vmatprep.subr.mxu0 0.0
    %3125 = vmatpush1.msra.mxu0 0.0
    %3126 = vmatprep.subr.mxu0 0.0
    %3127 = vmatpush1.msra.mxu0 0.0
    %3128 = vmatprep.subr.mxu0 0.0
    %3129 = vmatpush1.msra.mxu0 0.0
    %3130 = vmatprep.mubr.f32.mxu0 0.0
    %3131 = vmatmul.mubr.f32.gmra.mrb[0].mxu0 %v2888
    %v3132 = vpop.f32.mrb[0].mxu0
    %v3133 = vadd.f32 %v3062, %v3132
    %v3134 = vpop.f32.mrb[0].mxu0
    %v3135 = vadd.f32 %v3064, %v3134
    %3136 = vdwg.mxu0
    %v3137 = vadd.f32 %v3133, %v576
    %v3138 = vadd.f32 %v3135, %v580
    %v3139 = vmul.f32 %v3137, 0.5
    %v3140 = vtanh.pop %v3139
    %v3141 = vmul.f32 %v3140, 0.5
    %v3142 = vadd.f32 %v3141, 0.5
    %v3143 = vtanh.pop %v3138
    %v3144 = vmul.f32 %v3138, 0.5
    %v3145 = vtanh.pop %v3144
    %v3146 = vmul.f32 %v3145, 0.5
    %v3147 = vadd.f32 %v3146, 0.5
    %v3148 = vmul.f32 %v3142, %v2714
    %v3149 = vmul.f32 %v3142, %v3143
    %3151 = vrot.lane.b32.xlu0 %v3149, 64
    %v3152 = vpop.permute.xlu0 %3151
    %v3154 = vadd.f32 %v3148, %v3152
    %v3155 = vtanh.pop %v3154
    %v3156 = vmul.f32 %v3147, %v3155
    %3158 = vrot.lane.b32.xlu0 %v2883, 64
    %v3159 = vpop.permute.xlu0 %3158
    %v3160 = vsel %vm178, %v3159, 0
    %3162 = vmatprep.subr.mxu0 %v943
    %3163 = vmatpush1.msra.mxu0 %v942
    %3164 = vmatprep.subr.mxu0 %v945
    %3165 = vmatpush1.msra.mxu0 %v944
    %3166 = vmatprep.subr.mxu0 %v947
    %3167 = vmatpush1.msra.mxu0 %v946
    %3168 = vmatprep.subr.mxu0 %v949
    %3169 = vmatpush1.msra.mxu0 %v948
    %3170 = vmatprep.subr.mxu0 %v951
    %3171 = vmatpush1.msra.mxu0 %v950
    %3172 = vmatprep.subr.mxu0 %v953
    %3173 = vmatpush1.msra.mxu0 %v952
    %3174 = vmatprep.subr.mxu0 %v955
    %3175 = vmatpush1.msra.mxu0 %v954
    %3176 = vmatprep.subr.mxu0 %v957
    %3177 = vmatpush1.msra.mxu0 %v956
    %3178 = vmatprep.subr.mxu0 0.0
    %3179 = vmatpush1.msra.mxu0 0.0
    %3180 = vmatprep.subr.mxu0 0.0
    %3181 = vmatpush1.msra.mxu0 0.0
    %3182 = vmatprep.subr.mxu0 0.0
    %3183 = vmatpush1.msra.mxu0 0.0
    %3184 = vmatprep.subr.mxu0 0.0
    %3185 = vmatpush1.msra.mxu0 0.0
    %3186 = vmatprep.subr.mxu0 0.0
    %3187 = vmatpush1.msra.mxu0 0.0
    %3188 = vmatprep.subr.mxu0 0.0
    %3189 = vmatpush1.msra.mxu0 0.0
    %3190 = vmatprep.subr.mxu0 0.0
    %3191 = vmatpush1.msra.mxu0 0.0
    %3192 = vmatprep.subr.mxu0 0.0
    %3193 = vmatpush1.msra.mxu0 0.0
    %3194 = vmatprep.subr.mxu0 0.0
    %3195 = vmatpush1.msra.mxu0 0.0
    %3196 = vmatprep.subr.mxu0 0.0
    %3197 = vmatpush1.msra.mxu0 0.0
    %3198 = vmatprep.subr.mxu0 0.0
    %3199 = vmatpush1.msra.mxu0 0.0
    %3200 = vmatprep.subr.mxu0 0.0
    %3201 = vmatpush1.msra.mxu0 0.0
    %3202 = vmatprep.subr.mxu0 0.0
    %3203 = vmatpush1.msra.mxu0 0.0
    %3204 = vmatprep.subr.mxu0 0.0
    %3205 = vmatpush1.msra.mxu0 0.0
    %3206 = vmatprep.subr.mxu0 0.0
    %3207 = vmatpush1.msra.mxu0 0.0
    %3208 = vmatprep.subr.mxu0 0.0
    %3209 = vmatpush1.msra.mxu0 0.0
    %3210 = vmatprep.subr.mxu0 0.0
    %3211 = vmatpush1.msra.mxu0 0.0
    %3212 = vmatprep.subr.mxu0 0.0
    %3213 = vmatpush1.msra.mxu0 0.0
    %3214 = vmatprep.subr.mxu0 0.0
    %3215 = vmatpush1.msra.mxu0 0.0
    %3216 = vmatprep.subr.mxu0 0.0
    %3217 = vmatpush1.msra.mxu0 0.0
    %3218 = vmatprep.subr.mxu0 0.0
    %3219 = vmatpush1.msra.mxu0 0.0
    %3220 = vmatprep.subr.mxu0 0.0
    %3221 = vmatpush1.msra.mxu0 0.0
    %3222 = vmatprep.subr.mxu0 0.0
    %3223 = vmatpush1.msra.mxu0 0.0
    %3224 = vmatprep.subr.mxu0 0.0
    %3225 = vmatpush1.msra.mxu0 0.0
    %3226 = vmatprep.mubr.f32.mxu0 0.0
    %3227 = vmatmul.mubr.f32.gmra.mrb[0].mxu0 %v3160
    %v3228 = vpop.f32.mrb[0].mxu0
    %v3229 = vadd.f32 0.0, %v3228
    %v3230 = vpop.f32.mrb[0].mxu0
    %v3231 = vadd.f32 0.0, %v3230
    %3232 = vdwg.mxu0
    %3233 = vmatprep.subr.mxu0 %v927
    %3234 = vmatpush1.msra.mxu0 %v926
    %3235 = vmatprep.subr.mxu0 %v929
    %3236 = vmatpush1.msra.mxu0 %v928
    %3237 = vmatprep.subr.mxu0 %v931
    %3238 = vmatpush1.msra.mxu0 %v930
    %3239 = vmatprep.subr.mxu0 %v933
    %3240 = vmatpush1.msra.mxu0 %v932
    %3241 = vmatprep.subr.mxu0 %v935
    %3242 = vmatpush1.msra.mxu0 %v934
    %3243 = vmatprep.subr.mxu0 %v937
    %3244 = vmatpush1.msra.mxu0 %v936
    %3245 = vmatprep.subr.mxu0 %v939
    %3246 = vmatpush1.msra.mxu0 %v938
    %3247 = vmatprep.subr.mxu0 %v941
    %3248 = vmatpush1.msra.mxu0 %v940
    %3249 = vmatprep.subr.mxu0 0.0
    %3250 = vmatpush1.msra.mxu0 0.0
    %3251 = vmatprep.subr.mxu0 0.0
    %3252 = vmatpush1.msra.mxu0 0.0
    %3253 = vmatprep.subr.mxu0 0.0
    %3254 = vmatpush1.msra.mxu0 0.0
    %3255 = vmatprep.subr.mxu0 0.0
    %3256 = vmatpush1.msra.mxu0 0.0
    %3257 = vmatprep.subr.mxu0 0.0
    %3258 = vmatpush1.msra.mxu0 0.0
    %3259 = vmatprep.subr.mxu0 0.0
    %3260 = vmatpush1.msra.mxu0 0.0
    %3261 = vmatprep.subr.mxu0 0.0
    %3262 = vmatpush1.msra.mxu0 0.0
    %3263 = vmatprep.subr.mxu0 0.0
    %3264 = vmatpush1.msra.mxu0 0.0
    %3265 = vmatprep.subr.mxu0 0.0
    %3266 = vmatpush1.msra.mxu0 0.0
    %3267 = vmatprep.subr.mxu0 0.0
    %3268 = vmatpush1.msra.mxu0 0.0
    %3269 = vmatprep.subr.mxu0 0.0
    %3270 = vmatpush1.msra.mxu0 0.0
    %3271 = vmatprep.subr.mxu0 0.0
    %3272 = vmatpush1.msra.mxu0 0.0
    %3273 = vmatprep.subr.mxu0 0.0
    %3274 = vmatpush1.msra.mxu0 0.0
    %3275 = vmatprep.subr.mxu0 0.0
    %3276 = vmatpush1.msra.mxu0 0.0
    %3277 = vmatprep.subr.mxu0 0.0
    %3278 = vmatpush1.msra.mxu0 0.0
    %3279 = vmatprep.subr.mxu0 0.0
    %3280 = vmatpush1.msra.mxu0 0.0
    %3281 = vmatprep.subr.mxu0 0.0
    %3282 = vmatpush1.msra.mxu0 0.0
    %3283 = vmatprep.subr.mxu0 0.0
    %3284 = vmatpush1.msra.mxu0 0.0
    %3285 = vmatprep.subr.mxu0 0.0
    %3286 = vmatpush1.msra.mxu0 0.0
    %3287 = vmatprep.subr.mxu0 0.0
    %3288 = vmatpush1.msra.mxu0 0.0
    %3289 = vmatprep.subr.mxu0 0.0
    %3290 = vmatpush1.msra.mxu0 0.0
    %3291 = vmatprep.subr.mxu0 0.0
    %3292 = vmatpush1.msra.mxu0 0.0
    %3293 = vmatprep.subr.mxu0 0.0
    %3294 = vmatpush1.msra.mxu0 0.0
    %3295 = vmatprep.subr.mxu0 0.0
    %3296 = vmatpush1.msra.mxu0 0.0
    %3297 = vmatprep.mubr.f32.mxu0 0.0
    %3298 = vmatmul.mubr.f32.gmra.mrb[0].mxu0 %v2993
    %v3299 = vpop.f32.mrb[0].mxu0
    %v3300 = vadd.f32 %v3229, %v3299
    %v3301 = vpop.f32.mrb[0].mxu0
    %v3302 = vadd.f32 %v3231, %v3301
    %3303 = vdwg.mxu0
    %v3304 = vadd.f32 %v3300, %v1104
    %v3305 = vadd.f32 %v3302, %v1108
    %v3306 = vmul.f32 %v3304, 0.5
    %v3307 = vtanh.pop %v3306
    %v3308 = vmul.f32 %v3307, 0.5
    %v3309 = vadd.f32 %v3308, 0.5
    %v3310 = vtanh.pop %v3305
    %v3311 = vmul.f32 %v3305, 0.5
    %v3312 = vtanh.pop %v3311
    %v3313 = vmul.f32 %v3312, 0.5
    %v3314 = vadd.f32 %v3313, 0.5
    %v3315 = vmul.f32 %v3309, %v2881
    %v3316 = vmul.f32 %v3309, %v3310
    %3318 = vrot.lane.b32.xlu0 %v3316, 64
    %v3319 = vpop.permute.xlu0 %3318
    %v3321 = vadd.f32 %v3315, %v3319
    %v3322 = vtanh.pop %v3321
    %v3323 = vmul.f32 %v3314, %v3322
    %3325 = vrot.lane.b32.xlu0 %v3156, 64
    %v3326 = vpop.permute.xlu0 %3325
    %v3327 = vsel %vm178, %v3326, 0
    %3329 = vmatprep.subr.mxu0 %v744
    %3330 = vmatpush1.msra.mxu0 %v743
    %3331 = vmatprep.subr.mxu0 %v746
    %3332 = vmatpush1.msra.mxu0 %v745
    %3333 = vmatprep.subr.mxu0 %v748
    %3334 = vmatpush1.msra.mxu0 %v747
    %3335 = vmatprep.subr.mxu0 %v750
    %3336 = vmatpush1.msra.mxu0 %v749
    %3337 = vmatprep.subr.mxu0 %v752
    %3338 = vmatpush1.msra.mxu0 %v751
    %3339 = vmatprep.subr.mxu0 %v754
    %3340 = vmatpush1.msra.mxu0 %v753
    %3341 = vmatprep.subr.mxu0 %v756
    %3342 = vmatpush1.msra.mxu0 %v755
    %3343 = vmatprep.subr.mxu0 %v758
    %3344 = vmatpush1.msra.mxu0 %v757
    %3345 = vmatprep.subr.mxu0 0.0
    %3346 = vmatpush1.msra.mxu0 0.0
    %3347 = vmatprep.subr.mxu0 0.0
    %3348 = vmatpush1.msra.mxu0 0.0
    %3349 = vmatprep.subr.mxu0 0.0
    %3350 = vmatpush1.msra.mxu0 0.0
    %3351 = vmatprep.subr.mxu0 0.0
    %3352 = vmatpush1.msra.mxu0 0.0
    %3353 = vmatprep.subr.mxu0 0.0
    %3354 = vmatpush1.msra.mxu0 0.0
    %3355 = vmatprep.subr.mxu0 0.0
    %3356 = vmatpush1.msra.mxu0 0.0
    %3357 = vmatprep.subr.mxu0 0.0
    %3358 = vmatpush1.msra.mxu0 0.0
    %3359 = vmatprep.subr.mxu0 0.0
    %3360 = vmatpush1.msra.mxu0 0.0
    %3361 = vmatprep.subr.mxu0 0.0
    %3362 = vmatpush1.msra.mxu0 0.0
    %3363 = vmatprep.subr.mxu0 0.0
    %3364 = vmatpush1.msra.mxu0 0.0
    %3365 = vmatprep.subr.mxu0 0.0
    %3366 = vmatpush1.msra.mxu0 0.0
    %3367 = vmatprep.subr.mxu0 0.0
    %3368 = vmatpush1.msra.mxu0 0.0
    %3369 = vmatprep.subr.mxu0 0.0
    %3370 = vmatpush1.msra.mxu0 0.0
    %3371 = vmatprep.subr.mxu0 0.0
    %3372 = vmatpush1.msra.mxu0 0.0
    %3373 = vmatprep.subr.mxu0 0.0
    %3374 = vmatpush1.msra.mxu0 0.0
    %3375 = vmatprep.subr.mxu0 0.0
    %3376 = vmatpush1.msra.mxu0 0.0
    %3377 = vmatprep.subr.mxu0 0.0
    %3378 = vmatpush1.msra.mxu0 0.0
    %3379 = vmatprep.subr.mxu0 0.0
    %3380 = vmatpush1.msra.mxu0 0.0
    %3381 = vmatprep.subr.mxu0 0.0
    %3382 = vmatpush1.msra.mxu0 0.0
    %3383 = vmatprep.subr.mxu0 0.0
    %3384 = vmatpush1.msra.mxu0 0.0
    %3385 = vmatprep.subr.mxu0 0.0
    %3386 = vmatpush1.msra.mxu0 0.0
    %3387 = vmatprep.subr.mxu0 0.0
    %3388 = vmatpush1.msra.mxu0 0.0
    %3389 = vmatprep.subr.mxu0 0.0
    %3390 = vmatpush1.msra.mxu0 0.0
    %3391 = vmatprep.subr.mxu0 0.0
    %3392 = vmatpush1.msra.mxu0 0.0
    %3393 = vmatprep.mubr.f32.mxu0 0.0
    %3394 = vmatmul.mubr.f32.gmra.mrb[0].mxu0 %v3327
    %v3395 = vpop.f32.mrb[0].mxu0
    %v3396 = vadd.f32 0.0, %v3395
    %v3397 = vpop.f32.mrb[0].mxu0
    %v3398 = vadd.f32 0.0, %v3397
    %3399 = vdwg.mxu0
    %v3401 = vrot.slane %v2989, 6
    %3402 = vrot.lane.b32.xlu0 %v3401, 64
    %v3403 = vpop.permute.xlu0 %3402
    %v3404 = vsel %vm178, %v3403, 0
    %3406 = vmatprep.subr.mxu0 %v728
    %3407 = vmatpush1.msra.mxu0 %v727
    %3408 = vmatprep.subr.mxu0 %v730
    %3409 = vmatpush1.msra.mxu0 %v729
    %3410 = vmatprep.subr.mxu0 %v732
    %3411 = vmatpush1.msra.mxu0 %v731
    %3412 = vmatprep.subr.mxu0 %v734
    %3413 = vmatpush1.msra.mxu0 %v733
    %3414 = vmatprep.subr.mxu0 %v736
    %3415 = vmatpush1.msra.mxu0 %v735
    %3416 = vmatprep.subr.mxu0 %v738
    %3417 = vmatpush1.msra.mxu0 %v737
    %3418 = vmatprep.subr.mxu0 %v740
    %3419 = vmatpush1.msra.mxu0 %v739
    %3420 = vmatprep.subr.mxu0 %v742
    %3421 = vmatpush1.msra.mxu0 %v741
    %3422 = vmatprep.subr.mxu0 0.0
    %3423 = vmatpush1.msra.mxu0 0.0
    %3424 = vmatprep.subr.mxu0 0.0
    %3425 = vmatpush1.msra.mxu0 0.0
    %3426 = vmatprep.subr.mxu0 0.0
    %3427 = vmatpush1.msra.mxu0 0.0
    %3428 = vmatprep.subr.mxu0 0.0
    %3429 = vmatpush1.msra.mxu0 0.0
    %3430 = vmatprep.subr.mxu0 0.0
    %3431 = vmatpush1.msra.mxu0 0.0
    %3432 = vmatprep.subr.mxu0 0.0
    %3433 = vmatpush1.msra.mxu0 0.0
    %3434 = vmatprep.subr.mxu0 0.0
    %3435 = vmatpush1.msra.mxu0 0.0
    %3436 = vmatprep.subr.mxu0 0.0
    %3437 = vmatpush1.msra.mxu0 0.0
    %3438 = vmatprep.subr.mxu0 0.0
    %3439 = vmatpush1.msra.mxu0 0.0
    %3440 = vmatprep.subr.mxu0 0.0
    %3441 = vmatpush1.msra.mxu0 0.0
    %3442 = vmatprep.subr.mxu0 0.0
    %3443 = vmatpush1.msra.mxu0 0.0
    %3444 = vmatprep.subr.mxu0 0.0
    %3445 = vmatpush1.msra.mxu0 0.0
    %3446 = vmatprep.subr.mxu0 0.0
    %3447 = vmatpush1.msra.mxu0 0.0
    %3448 = vmatprep.subr.mxu0 0.0
    %3449 = vmatpush1.msra.mxu0 0.0
    %3450 = vmatprep.subr.mxu0 0.0
    %3451 = vmatpush1.msra.mxu0 0.0
    %3452 = vmatprep.subr.mxu0 0.0
    %3453 = vmatpush1.msra.mxu0 0.0
    %3454 = vmatprep.subr.mxu0 0.0
    %3455 = vmatpush1.msra.mxu0 0.0
    %3456 = vmatprep.subr.mxu0 0.0
    %3457 = vmatpush1.msra.mxu0 0.0
    %3458 = vmatprep.subr.mxu0 0.0
    %3459 = vmatpush1.msra.mxu0 0.0
    %3460 = vmatprep.subr.mxu0 0.0
    %3461 = vmatpush1.msra.mxu0 0.0
    %3462 = vmatprep.subr.mxu0 0.0
    %3463 = vmatpush1.msra.mxu0 0.0
    %3464 = vmatprep.subr.mxu0 0.0
    %3465 = vmatpush1.msra.mxu0 0.0
    %3466 = vmatprep.subr.mxu0 0.0
    %3467 = vmatpush1.msra.mxu0 0.0
    %3468 = vmatprep.subr.mxu0 0.0
    %3469 = vmatpush1.msra.mxu0 0.0
    %3470 = vmatprep.mubr.f32.mxu0 0.0
    %3471 = vmatmul.mubr.f32.gmra.mrb[0].mxu0 %v3404
    %v3472 = vpop.f32.mrb[0].mxu0
    %v3473 = vadd.f32 %v3396, %v3472
    %v3474 = vpop.f32.mrb[0].mxu0
    %v3475 = vadd.f32 %v3398, %v3474
    %3476 = vdwg.mxu0
    %v3477 = vadd.f32 %v3473, %v576
    %v3478 = vadd.f32 %v3475, %v580
    %v3479 = vmul.f32 %v3477, 0.5
    %v3480 = vtanh.pop %v3479
    %v3481 = vmul.f32 %v3480, 0.5
    %v3482 = vadd.f32 %v3481, 0.5
    %v3483 = vtanh.pop %v3478
    %v3484 = vmul.f32 %v3478, 0.5
    %v3485 = vtanh.pop %v3484
    %v3486 = vmul.f32 %v3485, 0.5
    %v3487 = vadd.f32 %v3486, 0.5
    %v3488 = vmul.f32 %v3482, %v3154
    %v3489 = vmul.f32 %v3482, %v3483
    %3491 = vrot.lane.b32.xlu0 %v3489, 64
    %v3492 = vpop.permute.xlu0 %3491
    %v3494 = vadd.f32 %v3488, %v3492
    %v3495 = vtanh.pop %v3494
    %v3496 = vmul.f32 %v3487, %v3495
    %3498 = vrot.lane.b32.xlu0 %v3323, 64
    %v3499 = vpop.permute.xlu0 %3498
    %v3500 = vsel %vm178, %v3499, 0
    %3502 = vmatprep.subr.mxu0 %v943
    %3503 = vmatpush1.msra.mxu0 %v942
    %3504 = vmatprep.subr.mxu0 %v945
    %3505 = vmatpush1.msra.mxu0 %v944
    %3506 = vmatprep.subr.mxu0 %v947
    %3507 = vmatpush1.msra.mxu0 %v946
    %3508 = vmatprep.subr.mxu0 %v949
    %3509 = vmatpush1.msra.mxu0 %v948
    %3510 = vmatprep.subr.mxu0 %v951
    %3511 = vmatpush1.msra.mxu0 %v950
    %3512 = vmatprep.subr.mxu0 %v953
    %3513 = vmatpush1.msra.mxu0 %v952
    %3514 = vmatprep.subr.mxu0 %v955
    %3515 = vmatpush1.msra.mxu0 %v954
    %3516 = vmatprep.subr.mxu0 %v957
    %3517 = vmatpush1.msra.mxu0 %v956
    %3518 = vmatprep.subr.mxu0 0.0
    %3519 = vmatpush1.msra.mxu0 0.0
    %3520 = vmatprep.subr.mxu0 0.0
    %3521 = vmatpush1.msra.mxu0 0.0
    %3522 = vmatprep.subr.mxu0 0.0
    %3523 = vmatpush1.msra.mxu0 0.0
    %3524 = vmatprep.subr.mxu0 0.0
    %3525 = vmatpush1.msra.mxu0 0.0
    %3526 = vmatprep.subr.mxu0 0.0
    %3527 = vmatpush1.msra.mxu0 0.0
    %3528 = vmatprep.subr.mxu0 0.0
    %3529 = vmatpush1.msra.mxu0 0.0
    %3530 = vmatprep.subr.mxu0 0.0
    %3531 = vmatpush1.msra.mxu0 0.0
    %3532 = vmatprep.subr.mxu0 0.0
    %3533 = vmatpush1.msra.mxu0 0.0
    %3534 = vmatprep.subr.mxu0 0.0
    %3535 = vmatpush1.msra.mxu0 0.0
    %3536 = vmatprep.subr.mxu0 0.0
    %3537 = vmatpush1.msra.mxu0 0.0
    %3538 = vmatprep.subr.mxu0 0.0
    %3539 = vmatpush1.msra.mxu0 0.0
    %3540 = vmatprep.subr.mxu0 0.0
    %3541 = vmatpush1.msra.mxu0 0.0
    %3542 = vmatprep.subr.mxu0 0.0
    %3543 = vmatpush1.msra.mxu0 0.0
    %3544 = vmatprep.subr.mxu0 0.0
    %3545 = vmatpush1.msra.mxu0 0.0
    %3546 = vmatprep.subr.mxu0 0.0
    %3547 = vmatpush1.msra.mxu0 0.0
    %3548 = vmatprep.subr.mxu0 0.0
    %3549 = vmatpush1.msra.mxu0 0.0
    %3550 = vmatprep.subr.mxu0 0.0
    %3551 = vmatpush1.msra.mxu0 0.0
    %3552 = vmatprep.subr.mxu0 0.0
    %3553 = vmatpush1.msra.mxu0 0.0
    %3554 = vmatprep.subr.mxu0 0.0
    %3555 = vmatpush1.msra.mxu0 0.0
    %3556 = vmatprep.subr.mxu0 0.0
    %3557 = vmatpush1.msra.mxu0 0.0
    %3558 = vmatprep.subr.mxu0 0.0
    %3559 = vmatpush1.msra.mxu0 0.0
    %3560 = vmatprep.subr.mxu0 0.0
    %3561 = vmatpush1.msra.mxu0 0.0
    %3562 = vmatprep.subr.mxu0 0.0
    %3563 = vmatpush1.msra.mxu0 0.0
    %3564 = vmatprep.subr.mxu0 0.0
    %3565 = vmatpush1.msra.mxu0 0.0
    %3566 = vmatprep.mubr.f32.mxu0 0.0
    %3567 = vmatmul.mubr.f32.gmra.mrb[0].mxu0 %v3500
    %v3568 = vpop.f32.mrb[0].mxu0
    %v3569 = vadd.f32 0.0, %v3568
    %v3570 = vpop.f32.mrb[0].mxu0
    %v3571 = vadd.f32 0.0, %v3570
    %3572 = vdwg.mxu0
    %3573 = vmatprep.subr.mxu0 %v927
    %3574 = vmatpush1.msra.mxu0 %v926
    %3575 = vmatprep.subr.mxu0 %v929
    %3576 = vmatpush1.msra.mxu0 %v928
    %3577 = vmatprep.subr.mxu0 %v931
    %3578 = vmatpush1.msra.mxu0 %v930
    %3579 = vmatprep.subr.mxu0 %v933
    %3580 = vmatpush1.msra.mxu0 %v932
    %3581 = vmatprep.subr.mxu0 %v935
    %3582 = vmatpush1.msra.mxu0 %v934
    %3583 = vmatprep.subr.mxu0 %v937
    %3584 = vmatpush1.msra.mxu0 %v936
    %3585 = vmatprep.subr.mxu0 %v939
    %3586 = vmatpush1.msra.mxu0 %v938
    %3587 = vmatprep.subr.mxu0 %v941
    %3588 = vmatpush1.msra.mxu0 %v940
    %3589 = vmatprep.subr.mxu0 0.0
    %3590 = vmatpush1.msra.mxu0 0.0
    %3591 = vmatprep.subr.mxu0 0.0
    %3592 = vmatpush1.msra.mxu0 0.0
    %3593 = vmatprep.subr.mxu0 0.0
    %3594 = vmatpush1.msra.mxu0 0.0
    %3595 = vmatprep.subr.mxu0 0.0
    %3596 = vmatpush1.msra.mxu0 0.0
    %3597 = vmatprep.subr.mxu0 0.0
    %3598 = vmatpush1.msra.mxu0 0.0
    %3599 = vmatprep.subr.mxu0 0.0
    %3600 = vmatpush1.msra.mxu0 0.0
    %3601 = vmatprep.subr.mxu0 0.0
    %3602 = vmatpush1.msra.mxu0 0.0
    %3603 = vmatprep.subr.mxu0 0.0
    %3604 = vmatpush1.msra.mxu0 0.0
    %3605 = vmatprep.subr.mxu0 0.0
    %3606 = vmatpush1.msra.mxu0 0.0
    %3607 = vmatprep.subr.mxu0 0.0
    %3608 = vmatpush1.msra.mxu0 0.0
    %3609 = vmatprep.subr.mxu0 0.0
    %3610 = vmatpush1.msra.mxu0 0.0
    %3611 = vmatprep.subr.mxu0 0.0
    %3612 = vmatpush1.msra.mxu0 0.0
    %3613 = vmatprep.subr.mxu0 0.0
    %3614 = vmatpush1.msra.mxu0 0.0
    %3615 = vmatprep.subr.mxu0 0.0
    %3616 = vmatpush1.msra.mxu0 0.0
    %3617 = vmatprep.subr.mxu0 0.0
    %3618 = vmatpush1.msra.mxu0 0.0
    %3619 = vmatprep.subr.mxu0 0.0
    %3620 = vmatpush1.msra.mxu0 0.0
    %3621 = vmatprep.subr.mxu0 0.0
    %3622 = vmatpush1.msra.mxu0 0.0
    %3623 = vmatprep.subr.mxu0 0.0
    %3624 = vmatpush1.msra.mxu0 0.0
    %3625 = vmatprep.subr.mxu0 0.0
    %3626 = vmatpush1.msra.mxu0 0.0
    %3627 = vmatprep.subr.mxu0 0.0
    %3628 = vmatpush1.msra.mxu0 0.0
    %3629 = vmatprep.subr.mxu0 0.0
    %3630 = vmatpush1.msra.mxu0 0.0
    %3631 = vmatprep.subr.mxu0 0.0
    %3632 = vmatpush1.msra.mxu0 0.0
    %3633 = vmatprep.subr.mxu0 0.0
    %3634 = vmatpush1.msra.mxu0 0.0
    %3635 = vmatprep.subr.mxu0 0.0
    %3636 = vmatpush1.msra.mxu0 0.0
    %3637 = vmatprep.mubr.f32.mxu0 0.0
    %3638 = vmatmul.mubr.f32.gmra.mrb[0].mxu0 %v3327
    %v3639 = vpop.f32.mrb[0].mxu0
    %v3640 = vadd.f32 %v3569, %v3639
    %v3641 = vpop.f32.mrb[0].mxu0
    %v3642 = vadd.f32 %v3571, %v3641
    %3643 = vdwg.mxu0
    %v3644 = vadd.f32 %v3640, %v1104
    %v3645 = vadd.f32 %v3642, %v1108
    %v3646 = vmul.f32 %v3644, 0.5
    %v3647 = vtanh.pop %v3646
    %v3648 = vmul.f32 %v3647, 0.5
    %v3649 = vadd.f32 %v3648, 0.5
    %v3650 = vtanh.pop %v3645
    %v3651 = vmul.f32 %v3645, 0.5
    %v3652 = vtanh.pop %v3651
    %v3653 = vmul.f32 %v3652, 0.5
    %v3654 = vadd.f32 %v3653, 0.5
    %v3655 = vmul.f32 %v3649, %v3321
    %v3656 = vmul.f32 %v3649, %v3650
    %3658 = vrot.lane.b32.xlu0 %v3656, 64
    %v3659 = vpop.permute.xlu0 %3658
    %v3661 = vadd.f32 %v3655, %v3659
    %v3662 = vtanh.pop %v3661
    %v3663 = vmul.f32 %v3654, %v3662
    %3665 = vrot.lane.b32.xlu0 %v3663, 64
    %v3666 = vpop.permute.xlu0 %3665
    %v3667 = vsel %vm178, %v3666, 0
    %3669 = vmatprep.subr.mxu0 %v943
    %3670 = vmatpush1.msra.mxu0 %v942
    %3671 = vmatprep.subr.mxu0 %v945
    %3672 = vmatpush1.msra.mxu0 %v944
    %3673 = vmatprep.subr.mxu0 %v947
    %3674 = vmatpush1.msra.mxu0 %v946
    %3675 = vmatprep.subr.mxu0 %v949
    %3676 = vmatpush1.msra.mxu0 %v948
    %3677 = vmatprep.subr.mxu0 %v951
    %3678 = vmatpush1.msra.mxu0 %v950
    %3679 = vmatprep.subr.mxu0 %v953
    %3680 = vmatpush1.msra.mxu0 %v952
    %3681 = vmatprep.subr.mxu0 %v955
    %3682 = vmatpush1.msra.mxu0 %v954
    %3683 = vmatprep.subr.mxu0 %v957
    %3684 = vmatpush1.msra.mxu0 %v956
    %3685 = vmatprep.subr.mxu0 0.0
    %3686 = vmatpush1.msra.mxu0 0.0
    %3687 = vmatprep.subr.mxu0 0.0
    %3688 = vmatpush1.msra.mxu0 0.0
    %3689 = vmatprep.subr.mxu0 0.0
    %3690 = vmatpush1.msra.mxu0 0.0
    %3691 = vmatprep.subr.mxu0 0.0
    %3692 = vmatpush1.msra.mxu0 0.0
    %3693 = vmatprep.subr.mxu0 0.0
    %3694 = vmatpush1.msra.mxu0 0.0
    %3695 = vmatprep.subr.mxu0 0.0
    %3696 = vmatpush1.msra.mxu0 0.0
    %3697 = vmatprep.subr.mxu0 0.0
    %3698 = vmatpush1.msra.mxu0 0.0
    %3699 = vmatprep.subr.mxu0 0.0
    %3700 = vmatpush1.msra.mxu0 0.0
    %3701 = vmatprep.subr.mxu0 0.0
    %3702 = vmatpush1.msra.mxu0 0.0
    %3703 = vmatprep.subr.mxu0 0.0
    %3704 = vmatpush1.msra.mxu0 0.0
    %3705 = vmatprep.subr.mxu0 0.0
    %3706 = vmatpush1.msra.mxu0 0.0
    %3707 = vmatprep.subr.mxu0 0.0
    %3708 = vmatpush1.msra.mxu0 0.0
    %3709 = vmatprep.subr.mxu0 0.0
    %3710 = vmatpush1.msra.mxu0 0.0
    %3711 = vmatprep.subr.mxu0 0.0
    %3712 = vmatpush1.msra.mxu0 0.0
    %3713 = vmatprep.subr.mxu0 0.0
    %3714 = vmatpush1.msra.mxu0 0.0
    %3715 = vmatprep.subr.mxu0 0.0
    %3716 = vmatpush1.msra.mxu0 0.0
    %3717 = vmatprep.subr.mxu0 0.0
    %3718 = vmatpush1.msra.mxu0 0.0
    %3719 = vmatprep.subr.mxu0 0.0
    %3720 = vmatpush1.msra.mxu0 0.0
    %3721 = vmatprep.subr.mxu0 0.0
    %3722 = vmatpush1.msra.mxu0 0.0
    %3723 = vmatprep.subr.mxu0 0.0
    %3724 = vmatpush1.msra.mxu0 0.0
    %3725 = vmatprep.subr.mxu0 0.0
    %3726 = vmatpush1.msra.mxu0 0.0
    %3727 = vmatprep.subr.mxu0 0.0
    %3728 = vmatpush1.msra.mxu0 0.0
    %3729 = vmatprep.subr.mxu0 0.0
    %3730 = vmatpush1.msra.mxu0 0.0
    %3731 = vmatprep.subr.mxu0 0.0
    %3732 = vmatpush1.msra.mxu0 0.0
    %3733 = vmatprep.mubr.f32.mxu0 0.0
    %3734 = vmatmul.mubr.f32.gmra.mrb[0].mxu0 %v3667
    %v3735 = vpop.f32.mrb[0].mxu0
    %v3736 = vadd.f32 0.0, %v3735
    %v3737 = vpop.f32.mrb[0].mxu0
    %v3738 = vadd.f32 0.0, %v3737
    %3739 = vdwg.mxu0
    %3741 = vrot.lane.b32.xlu0 %v3496, 64
    %v3742 = vpop.permute.xlu0 %3741
    %v3743 = vsel %vm178, %v3742, 0
    %3745 = vmatprep.subr.mxu0 %v927
    %3746 = vmatpush1.msra.mxu0 %v926
    %3747 = vmatprep.subr.mxu0 %v929
    %3748 = vmatpush1.msra.mxu0 %v928
    %3749 = vmatprep.subr.mxu0 %v931
    %3750 = vmatpush1.msra.mxu0 %v930
    %3751 = vmatprep.subr.mxu0 %v933
    %3752 = vmatpush1.msra.mxu0 %v932
    %3753 = vmatprep.subr.mxu0 %v935
    %3754 = vmatpush1.msra.mxu0 %v934
    %3755 = vmatprep.subr.mxu0 %v937
    %3756 = vmatpush1.msra.mxu0 %v936
    %3757 = vmatprep.subr.mxu0 %v939
    %3758 = vmatpush1.msra.mxu0 %v938
    %3759 = vmatprep.subr.mxu0 %v941
    %3760 = vmatpush1.msra.mxu0 %v940
    %3761 = vmatprep.subr.mxu0 0.0
    %3762 = vmatpush1.msra.mxu0 0.0
    %3763 = vmatprep.subr.mxu0 0.0
    %3764 = vmatpush1.msra.mxu0 0.0
    %3765 = vmatprep.subr.mxu0 0.0
    %3766 = vmatpush1.msra.mxu0 0.0
    %3767 = vmatprep.subr.mxu0 0.0
    %3768 = vmatpush1.msra.mxu0 0.0
    %3769 = vmatprep.subr.mxu0 0.0
    %3770 = vmatpush1.msra.mxu0 0.0
    %3771 = vmatprep.subr.mxu0 0.0
    %3772 = vmatpush1.msra.mxu0 0.0
    %3773 = vmatprep.subr.mxu0 0.0
    %3774 = vmatpush1.msra.mxu0 0.0
    %3775 = vmatprep.subr.mxu0 0.0
    %3776 = vmatpush1.msra.mxu0 0.0
    %3777 = vmatprep.subr.mxu0 0.0
    %3778 = vmatpush1.msra.mxu0 0.0
    %3779 = vmatprep.subr.mxu0 0.0
    %3780 = vmatpush1.msra.mxu0 0.0
    %3781 = vmatprep.subr.mxu0 0.0
    %3782 = vmatpush1.msra.mxu0 0.0
    %3783 = vmatprep.subr.mxu0 0.0
    %3784 = vmatpush1.msra.mxu0 0.0
    %3785 = vmatprep.subr.mxu0 0.0
    %3786 = vmatpush1.msra.mxu0 0.0
    %3787 = vmatprep.subr.mxu0 0.0
    %3788 = vmatpush1.msra.mxu0 0.0
    %3789 = vmatprep.subr.mxu0 0.0
    %3790 = vmatpush1.msra.mxu0 0.0
    %3791 = vmatprep.subr.mxu0 0.0
    %3792 = vmatpush1.msra.mxu0 0.0
    %3793 = vmatprep.subr.mxu0 0.0
    %3794 = vmatpush1.msra.mxu0 0.0
    %3795 = vmatprep.subr.mxu0 0.0
    %3796 = vmatpush1.msra.mxu0 0.0
    %3797 = vmatprep.subr.mxu0 0.0
    %3798 = vmatpush1.msra.mxu0 0.0
    %3799 = vmatprep.subr.mxu0 0.0
    %3800 = vmatpush1.msra.mxu0 0.0
    %3801 = vmatprep.subr.mxu0 0.0
    %3802 = vmatpush1.msra.mxu0 0.0
    %3803 = vmatprep.subr.mxu0 0.0
    %3804 = vmatpush1.msra.mxu0 0.0
    %3805 = vmatprep.subr.mxu0 0.0
    %3806 = vmatpush1.msra.mxu0 0.0
    %3807 = vmatprep.subr.mxu0 0.0
    %3808 = vmatpush1.msra.mxu0 0.0
    %3809 = vmatprep.mubr.f32.mxu0 0.0
    %3810 = vmatmul.mubr.f32.gmra.mrb[0].mxu0 %v3743
    %v3811 = vpop.f32.mrb[0].mxu0
    %v3812 = vadd.f32 %v3736, %v3811
    %v3813 = vpop.f32.mrb[0].mxu0
    %v3814 = vadd.f32 %v3738, %v3813
    %3815 = vdwg.mxu0
    %v3816 = vadd.f32 %v3812, %v1104
    %v3817 = vadd.f32 %v3814, %v1108
    %v3818 = vmul.f32 %v3816, 0.5
    %v3819 = vtanh.pop %v3818
    %v3820 = vmul.f32 %v3819, 0.5
    %v3821 = vadd.f32 %v3820, 0.5
    %v3822 = vtanh.pop %v3817
    %v3823 = vmul.f32 %v3817, 0.5
    %v3824 = vtanh.pop %v3823
    %v3825 = vmul.f32 %v3824, 0.5
    %v3826 = vadd.f32 %v3825, 0.5
    %v3827 = vmul.f32 %v3821, %v3661
    %v3828 = vmul.f32 %v3821, %v3822
    %3830 = vrot.lane.b32.xlu0 %v3828, 64
    %v3831 = vpop.permute.xlu0 %3830
    %v3833 = vadd.f32 %v3827, %v3831
    %v3834 = vtanh.pop %v3833
    %v3835 = vmul.f32 %v3826, %v3834
    %3837 = vrot.lane.b32.xlu0 %v61, 64
    %v3838 = vpop.permute.xlu0 %3837
    %v3840 = vmul.f32 %v3835, %v3838
    %3842 = vrot.lane.b32.xlu0 %v3840, 64
    %v3843 = vpop.permute.xlu0 %3842
    %vm3845 = vcmask 517120
    %v3846 = vsel %vm3845, %v3843, 0.0
    %3847 = vadd.xlane.f32.xlu0 %v3846
    %v3848 = vpop.xlane.xlu0 %3847
    %v3849 = vadd.f32 %v3848, %v62
    %vm3850 = vcmask 1024
    %3851 = vst.msk [vmem:[%s6] sm:$0x3] %vm3850, %v3849
    // Predicated region
    $region30: #{lstm_forward.1} parent=1 // pred_check
      _
    $region31: #{lstm_forward.1} parent=1 // pred_check_branch
      %3853 = sbr.rel (0) target = $region33
    $region32: #{lstm_forward.1} parent=1 // pred_region
      _
    $region33: #{lstm_forward.1} parent=1 // pred_fallthru
      _
    // Predicated region
    $region34: #{lstm_forward.1} parent=1 // pred_check
      _
    $region35: #{lstm_forward.1} parent=1 // pred_check_branch
      %3855 = sbr.rel (0) target = $region37
    $region36: #{lstm_forward.1} parent=1 // pred_region
      _
    $region37: #{lstm_forward.1} parent=1 // pred_fallthru
      _
    %3856 = vsyncpa [#allocation6], 1
  %3857 = vsyncmov [#allocation4]
  %s3858 = vpop.sfrf %3857
  %p3859 = scmp.eq.s32.totalorder %s3858, 0
  %p3860 = pneg %p3859
  %3862 = shalt.err (%p3860)
  %s3863 = scalar_lea.sflag [#allocation4], 1
  %3864 = vsyncmov %s3863
  %s3865 = vpop.sfrf %3864
  %p3866 = scmp.eq.s32.totalorder %s3865, 0
  %p3867 = pneg %p3866
  %3869 = shalt.err (%p3867)

</llo_original>
